<compile_context>
chip_gen: v5e
topology: v5e:2x2
jax: 0.10.0
libtpu: 0.0.40
codegen_flags: <defaults>
</compile_context>

<pallas_src>
import jax
import jax.numpy as jnp
from jax.experimental import pallas as pl
from jax.experimental.pallas import tpu as pltpu

NUM_CLASSES = 100
LAYER_DIMS = [600, 1024, 512, 256, 128, NUM_CLASSES]  # 4 hidden (tanh) + classifier

D_IN = 600
NUM_CLASSES_PAD = 128   # lane-dense output -> unmasked vector stores


def _round_up(n, m):
    return (n + m - 1) // m * m


def _mlp_kernel(x_ref,
                w1_ref, b1_ref,
                w2_ref, b2_ref,
                w3_ref, b3_ref,
                w4_ref, b4_ref,
                w5_ref, b5_ref,
                out_ref):
    """One batch tile of the fused MLP.

    x arrives as f32 (TB, 600) and is cast to bf16 in VMEM (the pad/cast is
    fused into the kernel instead of being a separate XLA pass).  Weights
    (bf16) are VMEM-resident for every grid step (constant index_map);
    activations accumulate in f32 on the MXU, tanh runs in f32 on the EUP, and
    the hidden state is recast to bf16 only to feed the next matmul.
    """
    h = x_ref[...].astype(jnp.bfloat16)  # (TB, 600) bf16, K=600 for the first dot
    for w_ref, b_ref in ((w1_ref, b1_ref), (w2_ref, b2_ref),
                         (w3_ref, b3_ref), (w4_ref, b4_ref)):
        a = jnp.dot(h, w_ref[...], preferred_element_type=jnp.float32) + b_ref[...]
        h = jnp.tanh(a).astype(jnp.bfloat16)
    logits = jnp.dot(h, w5_ref[...], preferred_element_type=jnp.float32) + b5_ref[...]
    out_ref[...] = logits.astype(out_ref.dtype)


def prepare_params(params):
    """One-time weight prep (outside the hot path).

    params: list of (W[in, out] f32, b[1, out] f32), i.e. PyTorch nn.Linear
    weights already transposed to (in_features, out_features).

    Only the classifier layer is padded (100 -> 128 output columns) to keep
    the kernel's output lane-dense; W1 stays (600, 1024).  Weights are cast
    to bf16 once; biases stay f32 (added post-accumulation).
    Returns a flat list [w1, b1, ..., w5, b5].
    """
    flat = []
    last = len(params) - 1
    for idx, (w, b) in enumerate(params):
        if idx == last:
            w = jnp.pad(w, ((0, 0), (0, NUM_CLASSES_PAD - NUM_CLASSES)))
            b = jnp.pad(b, ((0, 0), (0, NUM_CLASSES_PAD - NUM_CLASSES)))
        flat.extend([w.astype(jnp.bfloat16), b.astype(jnp.float32)])
    return flat


def _pick_tile(B):
    """Batch tile per regime (see header notes)."""
    if B <= 16:
        return _round_up(B, 16)                 # single tile, 16-row bf16 packing
    if B <= 1024:
        return _round_up(pl.cdiv(B, 2), 16)     # >= 2 grid steps (v7x megacore)
    return 512                                  # amortize per-step overhead


@jax.jit
def purchase_classifier_forward(x, flat_params):
    """x: [B, 600] float32; flat_params: output of prepare_params."""
    B, d = x.shape
    assert d == D_IN, d

    TB = _pick_tile(B)
    B_pad = _round_up(B, TB)
    if B_pad != B:
        # Rows-only, same-dtype pad (no feature pad / cast); only when B is not
        # already tile-aligned.  Padded rows are discarded below.
        x = jnp.pad(x, ((0, B_pad - B), (0, 0)))

    # x: f32 tile, full 600-wide last dim (legal: equals the full array dim).
    in_specs = [pl.BlockSpec((TB, D_IN), lambda i: (i, 0))]
    for a in flat_params:
        # Full-array block + constant index_map: fetched once, stays resident
        # across all batch tiles.
        in_specs.append(pl.BlockSpec(a.shape, lambda i: (0, 0)))

    # Advisory cost model for XLA's scheduler around the custom call.
    mac_per_row = sum(LAYER_DIMS[i] * LAYER_DIMS[i + 1]
                      for i in range(len(LAYER_DIMS) - 2)) + 128 * NUM_CLASSES_PAD
    weight_bytes = sum(int(a.size) * a.dtype.itemsize for a in flat_params)
    cost = pl.CostEstimate(
        flops=2 * B_pad * mac_per_row,
        transcendentals=B_pad * sum(LAYER_DIMS[1:-1]),
        bytes_accessed=weight_bytes + B_pad * D_IN * 4 + B_pad * NUM_CLASSES_PAD * 4,
    )

    out_pad = pl.pallas_call(
        _mlp_kernel,
        out_shape=jax.ShapeDtypeStruct((B_pad, NUM_CLASSES_PAD), jnp.float32),
        grid=(B_pad // TB,),
        in_specs=in_specs,
        out_specs=pl.BlockSpec((TB, NUM_CLASSES_PAD), lambda i: (i, 0)),
        compiler_params=pltpu.CompilerParams(
            dimension_semantics=("parallel",),   # shard batch tiles across TCs (v7x)
            vmem_limit_bytes=32 << 20,           # under every chip's physical VMEM
        ),
        cost_estimate=cost,
    )(x, *flat_params)

    return out_pad[:B, :NUM_CLASSES]


def init_params(key):
    """Deterministic init mimicking nn.Linear default (uniform +-1/sqrt(fan_in))."""
    params = []
    for i in range(len(LAYER_DIMS) - 1):
        fan_in, fan_out = LAYER_DIMS[i], LAYER_DIMS[i + 1]
        key, kw, kb = jax.random.split(key, 3)
        bound = 1.0 / jnp.sqrt(fan_in)
        w = jax.random.uniform(kw, (fan_in, fan_out), jnp.float32, -bound, bound)
        b = jax.random.uniform(kb, (1, fan_out), jnp.float32, -bound, bound)
        params.append((w, b))
    return params


def reference_forward_f32(x, params):
    h = x
    for w, b in params[:-1]:
        h = jnp.tanh(h @ w + b)
    w, b = params[-1]
    return h @ w + b


def reference_forward_bf16(x, params):
    """Emulates the kernel's quantization: bf16 matmul inputs, f32 accumulation."""
    h = x.astype(jnp.bfloat16)
    out = None
    for i, (w, b) in enumerate(params):
        a = jnp.dot(h, w.astype(jnp.bfloat16),
                    preferred_element_type=jnp.float32) + b
        if i < len(params) - 1:
            h = jnp.tanh(a).astype(jnp.bfloat16)
        else:
            out = a
    return out


if __name__ == "__main__":
    key = jax.random.PRNGKey(0)
    key, kx = jax.random.split(key)

    B = 16
    x = jax.random.normal(kx, (B, D_IN), jnp.float32)
    params = init_params(key)
    flat_params = prepare_params(params)

    out = purchase_classifier_forward(x, flat_params)
    out = jax.block_until_ready(out)

    assert out.shape == (B, NUM_CLASSES), out.shape

    ref_q = reference_forward_bf16(x, params)   # same quantization as kernel
    ref_f = reference_forward_f32(x, params)    # full-precision reference
    err_q = float(jnp.max(jnp.abs(out - ref_q)))
    err_f = float(jnp.max(jnp.abs(out - ref_f)))
    assert err_q < 2e-2, err_q   # kernel matches bf16-emulated math tightly
    assert err_f < 1e-1, err_f   # and is close to the f32 reference

    print("KERNEL_OK")
</pallas_src>

<mosaic_0001>
module attributes {stable_mosaic.version = 11 : i64} {
  func.func @_mlp_kernel(%arg0: i32, %arg1: memref<16x600xf32, #tpu.memory_space<vmem>>, %arg2: memref<600x1024xbf16, #tpu.memory_space<vmem>>, %arg3: memref<1x1024xf32, #tpu.memory_space<vmem>>, %arg4: memref<1024x512xbf16, #tpu.memory_space<vmem>>, %arg5: memref<1x512xf32, #tpu.memory_space<vmem>>, %arg6: memref<512x256xbf16, #tpu.memory_space<vmem>>, %arg7: memref<1x256xf32, #tpu.memory_space<vmem>>, %arg8: memref<256x128xbf16, #tpu.memory_space<vmem>>, %arg9: memref<1x128xf32, #tpu.memory_space<vmem>>, %arg10: memref<128x128xbf16, #tpu.memory_space<vmem>>, %arg11: memref<1x128xf32, #tpu.memory_space<vmem>>, %arg12: memref<16x128xf32, #tpu.memory_space<vmem>>) attributes {dimension_semantics = [#tpu.dimension_semantics<parallel>], iteration_bounds = array<i64: 1>, scalar_prefetch = 0 : i64, scratch_operands = 0 : i64, tpu.core_type = #tpu.core_type<tc>, window_params = [{transform_indices = @transform_0, window_bounds = array<i64: 16, 600>}, {pipeline_mode = #tpu.pipeline_mode<synchronous>, transform_indices = @transform_1, window_bounds = array<i64: 600, 1024>}, {pipeline_mode = #tpu.pipeline_mode<synchronous>, transform_indices = @transform_2, window_bounds = array<i64: 1, 1024>}, {pipeline_mode = #tpu.pipeline_mode<synchronous>, transform_indices = @transform_3, window_bounds = array<i64: 1024, 512>}, {pipeline_mode = #tpu.pipeline_mode<synchronous>, transform_indices = @transform_4, window_bounds = array<i64: 1, 512>}, {pipeline_mode = #tpu.pipeline_mode<synchronous>, transform_indices = @transform_5, window_bounds = array<i64: 512, 256>}, {pipeline_mode = #tpu.pipeline_mode<synchronous>, transform_indices = @transform_6, window_bounds = array<i64: 1, 256>}, {pipeline_mode = #tpu.pipeline_mode<synchronous>, transform_indices = @transform_7, window_bounds = array<i64: 256, 128>}, {pipeline_mode = #tpu.pipeline_mode<synchronous>, transform_indices = @transform_8, window_bounds = array<i64: 1, 128>}, {pipeline_mode = #tpu.pipeline_mode<synchronous>, transform_indices = @transform_9, window_bounds = array<i64: 128, 128>}, {pipeline_mode = #tpu.pipeline_mode<synchronous>, transform_indices = @transform_10, window_bounds = array<i64: 1, 128>}, {transform_indices = @transform_11, window_bounds = array<i64: 16, 128>}]} {
    %c0 = arith.constant 0 : index
    %c0_0 = arith.constant 0 : index
    %0 = vector.load %arg1[%c0, %c0_0] : memref<16x600xf32, #tpu.memory_space<vmem>>, vector<16x600xf32>
    %1 = arith.truncf %0 : vector<16x600xf32> to vector<16x600xbf16>
    %c0_1 = arith.constant 0 : index
    %c0_2 = arith.constant 0 : index
    %2 = vector.load %arg2[%c0_1, %c0_2] : memref<600x1024xbf16, #tpu.memory_space<vmem>>, vector<600x1024xbf16>
    %cst = arith.constant dense<0.000000e+00> : vector<16x1024xf32>
    %3 = tpu.matmul %1, %2, %cst {dimension_numbers = #tpu.dot_dimension_numbers<[1], [0], [0], [1], [0, 0, 1, 1], [], []>} : vector<16x600xbf16>, vector<600x1024xbf16>, vector<16x1024xf32> -> vector<16x1024xf32>
    %c0_3 = arith.constant 0 : index
    %c0_4 = arith.constant 0 : index
    %4 = vector.load %arg3[%c0_3, %c0_4] : memref<1x1024xf32, #tpu.memory_space<vmem>>, vector<1x1024xf32>
    %5 = vector.broadcast %4 : vector<1x1024xf32> to vector<16x1024xf32>
    %6 = arith.addf %3, %5 : vector<16x1024xf32>
    %7 = math.tanh %6 : vector<16x1024xf32>
    %8 = arith.truncf %7 : vector<16x1024xf32> to vector<16x1024xbf16>
    %c0_5 = arith.constant 0 : index
    %c0_6 = arith.constant 0 : index
    %9 = vector.load %arg4[%c0_5, %c0_6] : memref<1024x512xbf16, #tpu.memory_space<vmem>>, vector<1024x512xbf16>
    %cst_7 = arith.constant dense<0.000000e+00> : vector<16x512xf32>
    %10 = tpu.matmul %8, %9, %cst_7 {dimension_numbers = #tpu.dot_dimension_numbers<[1], [0], [0], [1], [0, 0, 1, 1], [], []>} : vector<16x1024xbf16>, vector<1024x512xbf16>, vector<16x512xf32> -> vector<16x512xf32>
    %c0_8 = arith.constant 0 : index
    %c0_9 = arith.constant 0 : index
    %11 = vector.load %arg5[%c0_8, %c0_9] : memref<1x512xf32, #tpu.memory_space<vmem>>, vector<1x512xf32>
    %12 = vector.broadcast %11 : vector<1x512xf32> to vector<16x512xf32>
    %13 = arith.addf %10, %12 : vector<16x512xf32>
    %14 = math.tanh %13 : vector<16x512xf32>
    %15 = arith.truncf %14 : vector<16x512xf32> to vector<16x512xbf16>
    %c0_10 = arith.constant 0 : index
    %c0_11 = arith.constant 0 : index
    %16 = vector.load %arg6[%c0_10, %c0_11] : memref<512x256xbf16, #tpu.memory_space<vmem>>, vector<512x256xbf16>
    %cst_12 = arith.constant dense<0.000000e+00> : vector<16x256xf32>
    %17 = tpu.matmul %15, %16, %cst_12 {dimension_numbers = #tpu.dot_dimension_numbers<[1], [0], [0], [1], [0, 0, 1, 1], [], []>} : vector<16x512xbf16>, vector<512x256xbf16>, vector<16x256xf32> -> vector<16x256xf32>
    %c0_13 = arith.constant 0 : index
    %c0_14 = arith.constant 0 : index
    %18 = vector.load %arg7[%c0_13, %c0_14] : memref<1x256xf32, #tpu.memory_space<vmem>>, vector<1x256xf32>
    %19 = vector.broadcast %18 : vector<1x256xf32> to vector<16x256xf32>
    %20 = arith.addf %17, %19 : vector<16x256xf32>
    %21 = math.tanh %20 : vector<16x256xf32>
    %22 = arith.truncf %21 : vector<16x256xf32> to vector<16x256xbf16>
    %c0_15 = arith.constant 0 : index
    %c0_16 = arith.constant 0 : index
    %23 = vector.load %arg8[%c0_15, %c0_16] : memref<256x128xbf16, #tpu.memory_space<vmem>>, vector<256x128xbf16>
    %cst_17 = arith.constant dense<0.000000e+00> : vector<16x128xf32>
    %24 = tpu.matmul %22, %23, %cst_17 {dimension_numbers = #tpu.dot_dimension_numbers<[1], [0], [0], [1], [0, 0, 1, 1], [], []>} : vector<16x256xbf16>, vector<256x128xbf16>, vector<16x128xf32> -> vector<16x128xf32>
    %c0_18 = arith.constant 0 : index
    %c0_19 = arith.constant 0 : index
    %25 = vector.load %arg9[%c0_18, %c0_19] : memref<1x128xf32, #tpu.memory_space<vmem>>, vector<1x128xf32>
    %26 = vector.broadcast %25 : vector<1x128xf32> to vector<16x128xf32>
    %27 = arith.addf %24, %26 : vector<16x128xf32>
    %28 = math.tanh %27 : vector<16x128xf32>
    %29 = arith.truncf %28 : vector<16x128xf32> to vector<16x128xbf16>
    %c0_20 = arith.constant 0 : index
    %c0_21 = arith.constant 0 : index
    %30 = vector.load %arg10[%c0_20, %c0_21] : memref<128x128xbf16, #tpu.memory_space<vmem>>, vector<128x128xbf16>
    %cst_22 = arith.constant dense<0.000000e+00> : vector<16x128xf32>
    %31 = tpu.matmul %29, %30, %cst_22 {dimension_numbers = #tpu.dot_dimension_numbers<[1], [0], [0], [1], [0, 0, 1, 1], [], []>} : vector<16x128xbf16>, vector<128x128xbf16>, vector<16x128xf32> -> vector<16x128xf32>
    %c0_23 = arith.constant 0 : index
    %c0_24 = arith.constant 0 : index
    %32 = vector.load %arg11[%c0_23, %c0_24] : memref<1x128xf32, #tpu.memory_space<vmem>>, vector<1x128xf32>
    %33 = vector.broadcast %32 : vector<1x128xf32> to vector<16x128xf32>
    %34 = arith.addf %31, %33 : vector<16x128xf32>
    %c0_25 = arith.constant 0 : index
    %c0_26 = arith.constant 0 : index
    %35 = vector.load %arg12[%c0_25, %c0_26] : memref<16x128xf32, #tpu.memory_space<vmem>>, vector<16x128xf32>
    tpu.vector_store %arg12[%c0_25, %c0_26], %34 {strides = array<i32>} : memref<16x128xf32, #tpu.memory_space<vmem>>, vector<16x128xf32>,
    return
  }
  func.func @transform_0(%arg0: i32) -> (i32, i32) {
    %c0_i32 = arith.constant 0 : i32
    %c0_i32_0 = arith.constant 0 : i32
    return %arg0, %c0_i32 : i32, i32
  }
  func.func @transform_1(%arg0: i32) -> (i32, i32) {
    %c0_i32 = arith.constant 0 : i32
    %c0_i32_0 = arith.constant 0 : i32
    %c0_i32_1 = arith.constant 0 : i32
    return %c0_i32, %c0_i32_0 : i32, i32
  }
  func.func @transform_2(%arg0: i32) -> (i32, i32) {
    %c0_i32 = arith.constant 0 : i32
    %c0_i32_0 = arith.constant 0 : i32
    %c0_i32_1 = arith.constant 0 : i32
    return %c0_i32, %c0_i32_0 : i32, i32
  }
  func.func @transform_3(%arg0: i32) -> (i32, i32) {
    %c0_i32 = arith.constant 0 : i32
    %c0_i32_0 = arith.constant 0 : i32
    %c0_i32_1 = arith.constant 0 : i32
    return %c0_i32, %c0_i32_0 : i32, i32
  }
  func.func @transform_4(%arg0: i32) -> (i32, i32) {
    %c0_i32 = arith.constant 0 : i32
    %c0_i32_0 = arith.constant 0 : i32
    %c0_i32_1 = arith.constant 0 : i32
    return %c0_i32, %c0_i32_0 : i32, i32
  }
  func.func @transform_5(%arg0: i32) -> (i32, i32) {
    %c0_i32 = arith.constant 0 : i32
    %c0_i32_0 = arith.constant 0 : i32
    %c0_i32_1 = arith.constant 0 : i32
    return %c0_i32, %c0_i32_0 : i32, i32
  }
  func.func @transform_6(%arg0: i32) -> (i32, i32) {
    %c0_i32 = arith.constant 0 : i32
    %c0_i32_0 = arith.constant 0 : i32
    %c0_i32_1 = arith.constant 0 : i32
    return %c0_i32, %c0_i32_0 : i32, i32
  }
  func.func @transform_7(%arg0: i32) -> (i32, i32) {
    %c0_i32 = arith.constant 0 : i32
    %c0_i32_0 = arith.constant 0 : i32
    %c0_i32_1 = arith.constant 0 : i32
    return %c0_i32, %c0_i32_0 : i32, i32
  }
  func.func @transform_8(%arg0: i32) -> (i32, i32) {
    %c0_i32 = arith.constant 0 : i32
    %c0_i32_0 = arith.constant 0 : i32
    %c0_i32_1 = arith.constant 0 : i32
    return %c0_i32, %c0_i32_0 : i32, i32
  }
  func.func @transform_9(%arg0: i32) -> (i32, i32) {
    %c0_i32 = arith.constant 0 : i32
    %c0_i32_0 = arith.constant 0 : i32
    %c0_i32_1 = arith.constant 0 : i32
    return %c0_i32, %c0_i32_0 : i32, i32
  }
  func.func @transform_10(%arg0: i32) -> (i32, i32) {
    %c0_i32 = arith.constant 0 : i32
    %c0_i32_0 = arith.constant 0 : i32
    %c0_i32_1 = arith.constant 0 : i32
    return %c0_i32, %c0_i32_0 : i32, i32
  }
  func.func @transform_11(%arg0: i32) -> (i32, i32) {
    %c0_i32 = arith.constant 0 : i32
    %c0_i32_0 = arith.constant 0 : i32
    return %arg0, %c0_i32 : i32, i32
  }
}

</mosaic_0001>

<llo_original>
// kernel: purchase_classifier_forward.1
$region0: #{purchase_classifier_forward.1}
  #allocation0 [shape = 'u32[]', space=smem, size = 0x4, offset = 0x4, fixed_abs, tag = 'smem constant byte address 0x4 - core index']
  #allocation1 [shape = 'u32[72,128]{1,0:T(1,128)}', space=vmem, size = 0x9000, scoped, tag = 'internal scratch']
  %s0 = inlined_call_operand.hbm [shape: f32[16,600], index: 0, kind: input, shape index: {}]
  %s1 = inlined_call_operand.hbm [shape: bf16[600,1024], index: 1, kind: input, shape index: {}]
  %s2 = inlined_call_operand.hbm [shape: f32[1,1024], index: 2, kind: input, shape index: {}]
  %s3 = inlined_call_operand.hbm [shape: bf16[1024,512], index: 3, kind: input, shape index: {}]
  %s4 = inlined_call_operand.hbm [shape: f32[1,512], index: 4, kind: input, shape index: {}]
  %s5 = inlined_call_operand.hbm [shape: bf16[512,256], index: 5, kind: input, shape index: {}]
  %s6 = inlined_call_operand.hbm [shape: f32[1,256], index: 6, kind: input, shape index: {}]
  %s7 = inlined_call_operand.hbm [shape: bf16[256,128], index: 7, kind: input, shape index: {}]
  %s8 = inlined_call_operand.hbm [shape: f32[1,128], index: 8, kind: input, shape index: {}]
  %s9 = inlined_call_operand.hbm [shape: bf16[128,128], index: 9, kind: input, shape index: {}]
  %s10 = inlined_call_operand.hbm [shape: f32[1,128], index: 10, kind: input, shape index: {}]
  %s11 = inlined_call_operand.hbm [shape: f32[16,128], index: 11, kind: output, shape index: {}]
  %s12 = sld [smem:[#allocation0]]
  $region98: #{purchase_classifier_forward.1} parent=0
    _
  %s14 = ssub.s32 1, %s12
  %s15 = scalar_select 0, %s14, %s12
  $region1: #{purchase_classifier_forward.1} parent=0
    #allocation2 [shape = 'u8[40960]{0}', space=vmem, size = 0xa000, scoped, tag = 'input window, operand 0, single buffered']
    #allocation3 [shape = 's32[1]{0}', space=sflag, size = 0x4, scoped, tag = 'scoped memory for purchase_classifier_forward.1']
    #allocation4 [shape = 's32[1]{0}', space=sflag, size = 0x4, scoped, tag = 'scoped memory for purchase_classifier_forward.1']
    #allocation5 [shape = 'u8[1228800]{0}', space=vmem, size = 0x12c000, scoped, tag = 'input window, operand 1, single buffered']
    #allocation6 [shape = 's32[1]{0}', space=sflag, size = 0x4, scoped, tag = 'scoped memory for purchase_classifier_forward.1']
    #allocation7 [shape = 'u8[4096]{0}', space=vmem, size = 0x1000, scoped, tag = 'input window, operand 2, single buffered']
    #allocation8 [shape = 'u8[1048576]{0}', space=vmem, size = 0x100000, scoped, tag = 'input window, operand 3, single buffered']
    #allocation9 [shape = 's32[1]{0}', space=sflag, size = 0x4, scoped, tag = 'scoped memory for purchase_classifier_forward.1']
    #allocation10 [shape = 'u8[2048]{0}', space=vmem, size = 0x800, scoped, tag = 'input window, operand 4, single buffered']
    #allocation11 [shape = 'u8[262144]{0}', space=vmem, size = 0x40000, scoped, tag = 'input window, operand 5, single buffered']
    #allocation12 [shape = 's32[1]{0}', space=sflag, size = 0x4, scoped, tag = 'scoped memory for purchase_classifier_forward.1']
    #allocation13 [shape = 'u8[1024]{0}', space=vmem, size = 0x400, scoped, tag = 'input window, operand 6, single buffered']
    #allocation14 [shape = 'u8[65536]{0}', space=vmem, size = 0x10000, scoped, tag = 'input window, operand 7, single buffered']
    #allocation15 [shape = 's32[1]{0}', space=sflag, size = 0x4, scoped, tag = 'scoped memory for purchase_classifier_forward.1']
    #allocation16 [shape = 'u8[512]{0}', space=vmem, size = 0x400, scoped, tag = 'input window, operand 8, single buffered']
    #allocation17 [shape = 'u8[32768]{0}', space=vmem, size = 0x8000, scoped, tag = 'input window, operand 9, single buffered']
    #allocation18 [shape = 's32[1]{0}', space=sflag, size = 0x4, scoped, tag = 'scoped memory for purchase_classifier_forward.1']
    #allocation19 [shape = 'u8[512]{0}', space=vmem, size = 0x400, scoped, tag = 'input window, operand 10, single buffered']
    #allocation20 [shape = 'u8[8192]{0}', space=vmem, size = 0x2000, scoped, tag = 'output window, operand 0, single buffered']
    %16 = vsyncpa [#allocation3], 0
    %17 = vsyncpa [#allocation6], 0
    %18 = vsyncpa [#allocation9], 0
    %19 = vsyncpa [#allocation12], 0
    %20 = vsyncpa [#allocation15], 0
    %21 = vsyncpa [#allocation18], 0
    %22 = vsyncpa [#allocation4], 0
    // Predicated region
    $region2: #{purchase_classifier_forward.1} parent=1 // pred_check
      _
    $region3: #{purchase_classifier_forward.1} parent=1 // pred_check_branch
      %24 = sbr.rel (0) target = $region5
    $region4: #{purchase_classifier_forward.1} parent=1 // pred_region
      %26 = vsyncadd [#allocation3], 0
      %s27 = sshll.u32 %s0, 4
      %s28 = int_to_ptr.hbm [resolvable:$true] %s27
      %s29 = sshll.u32 [#allocation2], 4
      %s30 = int_to_ptr.vmem [resolvable:$true] %s29
      %35 = dma.hbm_to_vmem [thread:$0]  %s28, 1280, %s30, [#allocation3], 640, 640, 40
    $region5: #{purchase_classifier_forward.1} parent=1 // pred_fallthru
      _
    // Predicated region
    $region6: #{purchase_classifier_forward.1} parent=1 // pred_check
      _
    $region7: #{purchase_classifier_forward.1} parent=1 // pred_check_branch
      %37 = sbr.rel (0) target = $region9
    $region8: #{purchase_classifier_forward.1} parent=1 // pred_region
      %39 = vsyncadd [#allocation6], 0
      %s40 = sshll.u32 %s1, 4
      %s41 = int_to_ptr.hbm [resolvable:$true] %s40
      %s42 = sshll.u32 [#allocation5], 4
      %s43 = int_to_ptr.vmem [resolvable:$true] %s42
      %48 = dma.hbm_to_vmem [thread:$0]  %s41, 38400, %s43, [#allocation6], 512, 512, 32
    $region9: #{purchase_classifier_forward.1} parent=1 // pred_fallthru
      _
    // Predicated region
    $region10: #{purchase_classifier_forward.1} parent=1 // pred_check
      _
    $region11: #{purchase_classifier_forward.1} parent=1 // pred_check_branch
      %50 = sbr.rel (0) target = $region13
    $region12: #{purchase_classifier_forward.1} parent=1 // pred_region
      %52 = vsyncadd [#allocation6], 0
      %s54 = sshll.u32 %s2, 4
      %s55 = int_to_ptr.hbm [resolvable:$true] %s54
      %s56 = sshll.u32 [#allocation7], 4
      %s57 = int_to_ptr.vmem [resolvable:$true] %s56
      %59 = dma.hbm_to_vmem [thread:$0]  %s55, 128, %s57, [#allocation6]
    $region13: #{purchase_classifier_forward.1} parent=1 // pred_fallthru
      _
    // Predicated region
    $region14: #{purchase_classifier_forward.1} parent=1 // pred_check
      _
    $region15: #{purchase_classifier_forward.1} parent=1 // pred_check_branch
      %61 = sbr.rel (0) target = $region17
    $region16: #{purchase_classifier_forward.1} parent=1 // pred_region
      %63 = vsyncadd [#allocation9], 0
      %s64 = sshll.u32 %s3, 4
      %s65 = int_to_ptr.hbm [resolvable:$true] %s64
      %s66 = sshll.u32 [#allocation8], 4
      %s67 = int_to_ptr.vmem [resolvable:$true] %s66
      %72 = dma.hbm_to_vmem [thread:$0]  %s65, 32768, %s67, [#allocation9], 256, 256, 16
    $region17: #{purchase_classifier_forward.1} parent=1 // pred_fallthru
      _
    // Predicated region
    $region18: #{purchase_classifier_forward.1} parent=1 // pred_check
      _
    $region19: #{purchase_classifier_forward.1} parent=1 // pred_check_branch
      %74 = sbr.rel (0) target = $region21
    $region20: #{purchase_classifier_forward.1} parent=1 // pred_region
      %76 = vsyncadd [#allocation9], 0
      %s78 = sshll.u32 %s4, 4
      %s79 = int_to_ptr.hbm [resolvable:$true] %s78
      %s80 = sshll.u32 [#allocation10], 4
      %s81 = int_to_ptr.vmem [resolvable:$true] %s80
      %83 = dma.hbm_to_vmem [thread:$0]  %s79, 64, %s81, [#allocation9]
    $region21: #{purchase_classifier_forward.1} parent=1 // pred_fallthru
      _
    // Predicated region
    $region22: #{purchase_classifier_forward.1} parent=1 // pred_check
      _
    $region23: #{purchase_classifier_forward.1} parent=1 // pred_check_branch
      %85 = sbr.rel (0) target = $region25
    $region24: #{purchase_classifier_forward.1} parent=1 // pred_region
      %87 = vsyncadd [#allocation12], 0
      %s88 = sshll.u32 %s5, 4
      %s89 = int_to_ptr.hbm [resolvable:$true] %s88
      %s90 = sshll.u32 [#allocation11], 4
      %s91 = int_to_ptr.vmem [resolvable:$true] %s90
      %96 = dma.hbm_to_vmem [thread:$0]  %s89, 8192, %s91, [#allocation12], 128, 128, 8
    $region25: #{purchase_classifier_forward.1} parent=1 // pred_fallthru
      _
    // Predicated region
    $region26: #{purchase_classifier_forward.1} parent=1 // pred_check
      _
    $region27: #{purchase_classifier_forward.1} parent=1 // pred_check_branch
      %98 = sbr.rel (0) target = $region29
    $region28: #{purchase_classifier_forward.1} parent=1 // pred_region
      %100 = vsyncadd [#allocation12], 0
      %s102 = sshll.u32 %s6, 4
      %s103 = int_to_ptr.hbm [resolvable:$true] %s102
      %s104 = sshll.u32 [#allocation13], 4
      %s105 = int_to_ptr.vmem [resolvable:$true] %s104
      %107 = dma.hbm_to_vmem [thread:$0]  %s103, 32, %s105, [#allocation12]
    $region29: #{purchase_classifier_forward.1} parent=1 // pred_fallthru
      _
    // Predicated region
    $region30: #{purchase_classifier_forward.1} parent=1 // pred_check
      _
    $region31: #{purchase_classifier_forward.1} parent=1 // pred_check_branch
      %109 = sbr.rel (0) target = $region33
    $region32: #{purchase_classifier_forward.1} parent=1 // pred_region
      %111 = vsyncadd [#allocation15], 0
      %s112 = sshll.u32 %s7, 4
      %s113 = int_to_ptr.hbm [resolvable:$true] %s112
      %s114 = sshll.u32 [#allocation14], 4
      %s115 = int_to_ptr.vmem [resolvable:$true] %s114
      %120 = dma.hbm_to_vmem [thread:$0]  %s113, 2048, %s115, [#allocation15], 64, 64, 4
    $region33: #{purchase_classifier_forward.1} parent=1 // pred_fallthru
      _
    // Predicated region
    $region34: #{purchase_classifier_forward.1} parent=1 // pred_check
      _
    $region35: #{purchase_classifier_forward.1} parent=1 // pred_check_branch
      %122 = sbr.rel (0) target = $region37
    $region36: #{purchase_classifier_forward.1} parent=1 // pred_region
      %124 = vsyncadd [#allocation15], 0
      %s126 = sshll.u32 %s8, 4
      %s127 = int_to_ptr.hbm [resolvable:$true] %s126
      %s128 = sshll.u32 [#allocation16], 4
      %s129 = int_to_ptr.vmem [resolvable:$true] %s128
      %131 = dma.hbm_to_vmem [thread:$0]  %s127, 16, %s129, [#allocation15]
    $region37: #{purchase_classifier_forward.1} parent=1 // pred_fallthru
      _
    // Predicated region
    $region38: #{purchase_classifier_forward.1} parent=1 // pred_check
      _
    $region39: #{purchase_classifier_forward.1} parent=1 // pred_check_branch
      %133 = sbr.rel (0) target = $region41
    $region40: #{purchase_classifier_forward.1} parent=1 // pred_region
      %135 = vsyncadd [#allocation18], 0
      %s136 = sshll.u32 %s9, 4
      %s137 = int_to_ptr.hbm [resolvable:$true] %s136
      %s138 = sshll.u32 [#allocation17], 4
      %s139 = int_to_ptr.vmem [resolvable:$true] %s138
      %144 = dma.hbm_to_vmem [thread:$0]  %s137, 1024, %s139, [#allocation18], 64, 64, 4
    $region41: #{purchase_classifier_forward.1} parent=1 // pred_fallthru
      _
    // Predicated region
    $region42: #{purchase_classifier_forward.1} parent=1 // pred_check
      _
    $region43: #{purchase_classifier_forward.1} parent=1 // pred_check_branch
      %146 = sbr.rel (0) target = $region45
    $region44: #{purchase_classifier_forward.1} parent=1 // pred_region
      %148 = vsyncadd [#allocation18], 0
      %s150 = sshll.u32 %s10, 4
      %s151 = int_to_ptr.hbm [resolvable:$true] %s150
      %s152 = sshll.u32 [#allocation19], 4
      %s153 = int_to_ptr.vmem [resolvable:$true] %s152
      %155 = dma.hbm_to_vmem [thread:$0]  %s151, 16, %s153, [#allocation18]
    $region45: #{purchase_classifier_forward.1} parent=1 // pred_fallthru
      _
    // Predicated region
    $region46: #{purchase_classifier_forward.1} parent=1 // pred_check
      _
    $region47: #{purchase_classifier_forward.1} parent=1 // pred_check_branch
      %157 = sbr.rel (0) target = $region49
    $region48: #{purchase_classifier_forward.1} parent=1 // pred_region
      %159 = dma.done [#allocation3], 1280
    $region49: #{purchase_classifier_forward.1} parent=1 // pred_fallthru
      _
    // Predicated region
    $region50: #{purchase_classifier_forward.1} parent=1 // pred_check
      _
    $region51: #{purchase_classifier_forward.1} parent=1 // pred_check_branch
      %161 = sbr.rel (0) target = $region53
    $region52: #{purchase_classifier_forward.1} parent=1 // pred_region
      %163 = dma.done [#allocation6], 38400
    $region53: #{purchase_classifier_forward.1} parent=1 // pred_fallthru
      _
    // Predicated region
    $region54: #{purchase_classifier_forward.1} parent=1 // pred_check
      _
    $region55: #{purchase_classifier_forward.1} parent=1 // pred_check_branch
      %165 = sbr.rel (0) target = $region57
    $region56: #{purchase_classifier_forward.1} parent=1 // pred_region
      %167 = dma.done [#allocation6], 128
    $region57: #{purchase_classifier_forward.1} parent=1 // pred_fallthru
      _
    // Predicated region
    $region58: #{purchase_classifier_forward.1} parent=1 // pred_check
      _
    $region59: #{purchase_classifier_forward.1} parent=1 // pred_check_branch
      %169 = sbr.rel (0) target = $region61
    $region60: #{purchase_classifier_forward.1} parent=1 // pred_region
      %171 = dma.done [#allocation9], 32768
    $region61: #{purchase_classifier_forward.1} parent=1 // pred_fallthru
      _
    // Predicated region
    $region62: #{purchase_classifier_forward.1} parent=1 // pred_check
      _
    $region63: #{purchase_classifier_forward.1} parent=1 // pred_check_branch
      %173 = sbr.rel (0) target = $region65
    $region64: #{purchase_classifier_forward.1} parent=1 // pred_region
      %175 = dma.done [#allocation9], 64
    $region65: #{purchase_classifier_forward.1} parent=1 // pred_fallthru
      _
    // Predicated region
    $region66: #{purchase_classifier_forward.1} parent=1 // pred_check
      _
    $region67: #{purchase_classifier_forward.1} parent=1 // pred_check_branch
      %177 = sbr.rel (0) target = $region69
    $region68: #{purchase_classifier_forward.1} parent=1 // pred_region
      %179 = dma.done [#allocation12], 8192
    $region69: #{purchase_classifier_forward.1} parent=1 // pred_fallthru
      _
    // Predicated region
    $region70: #{purchase_classifier_forward.1} parent=1 // pred_check
      _
    $region71: #{purchase_classifier_forward.1} parent=1 // pred_check_branch
      %181 = sbr.rel (0) target = $region73
    $region72: #{purchase_classifier_forward.1} parent=1 // pred_region
      %183 = dma.done [#allocation12], 32
    $region73: #{purchase_classifier_forward.1} parent=1 // pred_fallthru
      _
    // Predicated region
    $region74: #{purchase_classifier_forward.1} parent=1 // pred_check
      _
    $region75: #{purchase_classifier_forward.1} parent=1 // pred_check_branch
      %185 = sbr.rel (0) target = $region77
    $region76: #{purchase_classifier_forward.1} parent=1 // pred_region
      %187 = dma.done [#allocation15], 2048
    $region77: #{purchase_classifier_forward.1} parent=1 // pred_fallthru
      _
    // Predicated region
    $region78: #{purchase_classifier_forward.1} parent=1 // pred_check
      _
    $region79: #{purchase_classifier_forward.1} parent=1 // pred_check_branch
      %189 = sbr.rel (0) target = $region81
    $region80: #{purchase_classifier_forward.1} parent=1 // pred_region
      %191 = dma.done [#allocation15], 16
    $region81: #{purchase_classifier_forward.1} parent=1 // pred_fallthru
      _
    // Predicated region
    $region82: #{purchase_classifier_forward.1} parent=1 // pred_check
      _
    $region83: #{purchase_classifier_forward.1} parent=1 // pred_check_branch
      %193 = sbr.rel (0) target = $region85
    $region84: #{purchase_classifier_forward.1} parent=1 // pred_region
      %195 = dma.done [#allocation18], 1024
    $region85: #{purchase_classifier_forward.1} parent=1 // pred_fallthru
      _
    // Predicated region
    $region86: #{purchase_classifier_forward.1} parent=1 // pred_check
      _
    $region87: #{purchase_classifier_forward.1} parent=1 // pred_check_branch
      %197 = sbr.rel (0) target = $region89
    $region88: #{purchase_classifier_forward.1} parent=1 // pred_region
      %199 = dma.done [#allocation18], 16
    $region89: #{purchase_classifier_forward.1} parent=1 // pred_fallthru
      _
    %v201 = vld [vmem:[#allocation2] sm:$0xff]
    %v202 = vld [vmem:[#allocation2 + $0x8] sm:$0xff]
    %v203 = vld [vmem:[#allocation2 + $0x10] sm:$0xff]
    %v204 = vld [vmem:[#allocation2 + $0x18] sm:$0xff]
    %v205 = vld [vmem:[#allocation2 + $0x20] sm:$0xff]
    %v206 = vld [vmem:[#allocation2 + $0x28] sm:$0xff]
    %v207 = vld [vmem:[#allocation2 + $0x30] sm:$0xff]
    %v208 = vld [vmem:[#allocation2 + $0x38] sm:$0xff]
    %v209 = vld [vmem:[#allocation2 + $0x40] sm:$0xff]
    %v210 = vld [vmem:[#allocation2 + $0x48] sm:$0xff]
    %v211 = vpack.c.bf16 %v206, %v201
    %v212 = vpack.c.bf16 %v207, %v202
    %v213 = vpack.c.bf16 %v208, %v203
    %v214 = vpack.c.bf16 %v209, %v204
    %v215 = vpack.c.bf16 %v210, %v205
    %v216 = vld [vmem:[#allocation5] sm:$0xff]
    %v217 = vld [vmem:[#allocation5 + $0x8] sm:$0xff]
    %v218 = vld [vmem:[#allocation5 + $0x10] sm:$0xff]
    %v219 = vld [vmem:[#allocation5 + $0x18] sm:$0xff]
    %v220 = vld [vmem:[#allocation5 + $0x20] sm:$0xff]
    %v221 = vld [vmem:[#allocation5 + $0x28] sm:$0xff]
    %v222 = vld [vmem:[#allocation5 + $0x30] sm:$0xff]
    %v223 = vld [vmem:[#allocation5 + $0x38] sm:$0xff]
    %v224 = vld [vmem:[#allocation5 + $0x40] sm:$0xff]
    %v225 = vld [vmem:[#allocation5 + $0x48] sm:$0xff]
    %v226 = vld [vmem:[#allocation5 + $0x50] sm:$0xff]
    %v227 = vld [vmem:[#allocation5 + $0x58] sm:$0xff]
    %v228 = vld [vmem:[#allocation5 + $0x60] sm:$0xff]
    %v229 = vld [vmem:[#allocation5 + $0x68] sm:$0xff]
    %v230 = vld [vmem:[#allocation5 + $0x70] sm:$0xff]
    %v231 = vld [vmem:[#allocation5 + $0x78] sm:$0xff]
    %v232 = vld [vmem:[#allocation5 + $0x80] sm:$0xff]
    %v233 = vld [vmem:[#allocation5 + $0x88] sm:$0xff]
    %v234 = vld [vmem:[#allocation5 + $0x90] sm:$0xff]
    %v235 = vld [vmem:[#allocation5 + $0x98] sm:$0xff]
    %v236 = vld [vmem:[#allocation5 + $0xa0] sm:$0xff]
    %v237 = vld [vmem:[#allocation5 + $0xa8] sm:$0xff]
    %v238 = vld [vmem:[#allocation5 + $0xb0] sm:$0xff]
    %v239 = vld [vmem:[#allocation5 + $0xb8] sm:$0xff]
    %v240 = vld [vmem:[#allocation5 + $0xc0] sm:$0xff]
    %v241 = vld [vmem:[#allocation5 + $0xc8] sm:$0xff]
    %v242 = vld [vmem:[#allocation5 + $0xd0] sm:$0xff]
    %v243 = vld [vmem:[#allocation5 + $0xd8] sm:$0xff]
    %v244 = vld [vmem:[#allocation5 + $0xe0] sm:$0xff]
    %v245 = vld [vmem:[#allocation5 + $0xe8] sm:$0xff]
    %v246 = vld [vmem:[#allocation5 + $0xf0] sm:$0xff]
    %v247 = vld [vmem:[#allocation5 + $0xf8] sm:$0xff]
    %v248 = vld [vmem:[#allocation5 + $0x100] sm:$0xff]
    %v249 = vld [vmem:[#allocation5 + $0x108] sm:$0xff]
    %v250 = vld [vmem:[#allocation5 + $0x110] sm:$0xff]
    %v251 = vld [vmem:[#allocation5 + $0x118] sm:$0xff]
    %v252 = vld [vmem:[#allocation5 + $0x120] sm:$0xff]
    %v253 = vld [vmem:[#allocation5 + $0x128] sm:$0xff]
    %v254 = vld [vmem:[#allocation5 + $0x130] sm:$0xff]
    %v255 = vld [vmem:[#allocation5 + $0x138] sm:$0xff]
    %v256 = vld [vmem:[#allocation5 + $0x140] sm:$0xff]
    %v257 = vld [vmem:[#allocation5 + $0x148] sm:$0xff]
    %v258 = vld [vmem:[#allocation5 + $0x150] sm:$0xff]
    %v259 = vld [vmem:[#allocation5 + $0x158] sm:$0xff]
    %v260 = vld [vmem:[#allocation5 + $0x160] sm:$0xff]
    %v261 = vld [vmem:[#allocation5 + $0x168] sm:$0xff]
    %v262 = vld [vmem:[#allocation5 + $0x170] sm:$0xff]
    %v263 = vld [vmem:[#allocation5 + $0x178] sm:$0xff]
    %v264 = vld [vmem:[#allocation5 + $0x180] sm:$0xff]
    %v265 = vld [vmem:[#allocation5 + $0x188] sm:$0xff]
    %v266 = vld [vmem:[#allocation5 + $0x190] sm:$0xff]
    %v267 = vld [vmem:[#allocation5 + $0x198] sm:$0xff]
    %v268 = vld [vmem:[#allocation5 + $0x1a0] sm:$0xff]
    %v269 = vld [vmem:[#allocation5 + $0x1a8] sm:$0xff]
    %v270 = vld [vmem:[#allocation5 + $0x1b0] sm:$0xff]
    %v271 = vld [vmem:[#allocation5 + $0x1b8] sm:$0xff]
    %v272 = vld [vmem:[#allocation5 + $0x1c0] sm:$0xff]
    %v273 = vld [vmem:[#allocation5 + $0x1c8] sm:$0xff]
    %v274 = vld [vmem:[#allocation5 + $0x1d0] sm:$0xff]
    %v275 = vld [vmem:[#allocation5 + $0x1d8] sm:$0xff]
    %v276 = vld [vmem:[#allocation5 + $0x1e0] sm:$0xff]
    %v277 = vld [vmem:[#allocation5 + $0x1e8] sm:$0xff]
    %v278 = vld [vmem:[#allocation5 + $0x1f0] sm:$0xff]
    %v279 = vld [vmem:[#allocation5 + $0x1f8] sm:$0xff]
    %v280 = vld [vmem:[#allocation5 + $0x200] sm:$0xff]
    %v281 = vld [vmem:[#allocation5 + $0x208] sm:$0xff]
    %v282 = vld [vmem:[#allocation5 + $0x210] sm:$0xff]
    %v283 = vld [vmem:[#allocation5 + $0x218] sm:$0xff]
    %v284 = vld [vmem:[#allocation5 + $0x220] sm:$0xff]
    %v285 = vld [vmem:[#allocation5 + $0x228] sm:$0xff]
    %v286 = vld [vmem:[#allocation5 + $0x230] sm:$0xff]
    %v287 = vld [vmem:[#allocation5 + $0x238] sm:$0xff]
    %v288 = vld [vmem:[#allocation5 + $0x240] sm:$0xff]
    %v289 = vld [vmem:[#allocation5 + $0x248] sm:$0xff]
    %v290 = vld [vmem:[#allocation5 + $0x250] sm:$0xff]
    %v291 = vld [vmem:[#allocation5 + $0x258] sm:$0xff]
    %v292 = vld [vmem:[#allocation5 + $0x260] sm:$0xff]
    %v293 = vld [vmem:[#allocation5 + $0x268] sm:$0xff]
    %v294 = vld [vmem:[#allocation5 + $0x270] sm:$0xff]
    %v295 = vld [vmem:[#allocation5 + $0x278] sm:$0xff]
    %v296 = vld [vmem:[#allocation5 + $0x280] sm:$0xff]
    %v297 = vld [vmem:[#allocation5 + $0x288] sm:$0xff]
    %v298 = vld [vmem:[#allocation5 + $0x290] sm:$0xff]
    %v299 = vld [vmem:[#allocation5 + $0x298] sm:$0xff]
    %v300 = vld [vmem:[#allocation5 + $0x2a0] sm:$0xff]
    %v301 = vld [vmem:[#allocation5 + $0x2a8] sm:$0xff]
    %v302 = vld [vmem:[#allocation5 + $0x2b0] sm:$0xff]
    %v303 = vld [vmem:[#allocation5 + $0x2b8] sm:$0xff]
    %v304 = vld [vmem:[#allocation5 + $0x2c0] sm:$0xff]
    %v305 = vld [vmem:[#allocation5 + $0x2c8] sm:$0xff]
    %v306 = vld [vmem:[#allocation5 + $0x2d0] sm:$0xff]
    %v307 = vld [vmem:[#allocation5 + $0x2d8] sm:$0xff]
    %v308 = vld [vmem:[#allocation5 + $0x2e0] sm:$0xff]
    %v309 = vld [vmem:[#allocation5 + $0x2e8] sm:$0xff]
    %v310 = vld [vmem:[#allocation5 + $0x2f0] sm:$0xff]
    %v311 = vld [vmem:[#allocation5 + $0x2f8] sm:$0xff]
    %v312 = vld [vmem:[#allocation5 + $0x300] sm:$0xff]
    %v313 = vld [vmem:[#allocation5 + $0x308] sm:$0xff]
    %v314 = vld [vmem:[#allocation5 + $0x310] sm:$0xff]
    %v315 = vld [vmem:[#allocation5 + $0x318] sm:$0xff]
    %v316 = vld [vmem:[#allocation5 + $0x320] sm:$0xff]
    %v317 = vld [vmem:[#allocation5 + $0x328] sm:$0xff]
    %v318 = vld [vmem:[#allocation5 + $0x330] sm:$0xff]
    %v319 = vld [vmem:[#allocation5 + $0x338] sm:$0xff]
    %v320 = vld [vmem:[#allocation5 + $0x340] sm:$0xff]
    %v321 = vld [vmem:[#allocation5 + $0x348] sm:$0xff]
    %v322 = vld [vmem:[#allocation5 + $0x350] sm:$0xff]
    %v323 = vld [vmem:[#allocation5 + $0x358] sm:$0xff]
    %v324 = vld [vmem:[#allocation5 + $0x360] sm:$0xff]
    %v325 = vld [vmem:[#allocation5 + $0x368] sm:$0xff]
    %v326 = vld [vmem:[#allocation5 + $0x370] sm:$0xff]
    %v327 = vld [vmem:[#allocation5 + $0x378] sm:$0xff]
    %v328 = vld [vmem:[#allocation5 + $0x380] sm:$0xff]
    %v329 = vld [vmem:[#allocation5 + $0x388] sm:$0xff]
    %v330 = vld [vmem:[#allocation5 + $0x390] sm:$0xff]
    %v331 = vld [vmem:[#allocation5 + $0x398] sm:$0xff]
    %v332 = vld [vmem:[#allocation5 + $0x3a0] sm:$0xff]
    %v333 = vld [vmem:[#allocation5 + $0x3a8] sm:$0xff]
    %v334 = vld [vmem:[#allocation5 + $0x3b0] sm:$0xff]
    %v335 = vld [vmem:[#allocation5 + $0x3b8] sm:$0xff]
    %v336 = vld [vmem:[#allocation5 + $0x3c0] sm:$0xff]
    %v337 = vld [vmem:[#allocation5 + $0x3c8] sm:$0xff]
    %v338 = vld [vmem:[#allocation5 + $0x3d0] sm:$0xff]
    %v339 = vld [vmem:[#allocation5 + $0x3d8] sm:$0xff]
    %v340 = vld [vmem:[#allocation5 + $0x3e0] sm:$0xff]
    %v341 = vld [vmem:[#allocation5 + $0x3e8] sm:$0xff]
    %v342 = vld [vmem:[#allocation5 + $0x3f0] sm:$0xff]
    %v343 = vld [vmem:[#allocation5 + $0x3f8] sm:$0xff]
    %v344 = vld [vmem:[#allocation5 + $0x400] sm:$0xff]
    %v345 = vld [vmem:[#allocation5 + $0x408] sm:$0xff]
    %v346 = vld [vmem:[#allocation5 + $0x410] sm:$0xff]
    %v347 = vld [vmem:[#allocation5 + $0x418] sm:$0xff]
    %v348 = vld [vmem:[#allocation5 + $0x420] sm:$0xff]
    %v349 = vld [vmem:[#allocation5 + $0x428] sm:$0xff]
    %v350 = vld [vmem:[#allocation5 + $0x430] sm:$0xff]
    %v351 = vld [vmem:[#allocation5 + $0x438] sm:$0xff]
    %v352 = vld [vmem:[#allocation5 + $0x440] sm:$0xff]
    %v353 = vld [vmem:[#allocation5 + $0x448] sm:$0xff]
    %v354 = vld [vmem:[#allocation5 + $0x450] sm:$0xff]
    %v355 = vld [vmem:[#allocation5 + $0x458] sm:$0xff]
    %v356 = vld [vmem:[#allocation5 + $0x460] sm:$0xff]
    %v357 = vld [vmem:[#allocation5 + $0x468] sm:$0xff]
    %v358 = vld [vmem:[#allocation5 + $0x470] sm:$0xff]
    %v359 = vld [vmem:[#allocation5 + $0x478] sm:$0xff]
    %v360 = vld [vmem:[#allocation5 + $0x480] sm:$0xff]
    %v361 = vld [vmem:[#allocation5 + $0x488] sm:$0xff]
    %v362 = vld [vmem:[#allocation5 + $0x490] sm:$0xff]
    %v363 = vld [vmem:[#allocation5 + $0x498] sm:$0xff]
    %v364 = vld [vmem:[#allocation5 + $0x4a0] sm:$0xff]
    %v365 = vld [vmem:[#allocation5 + $0x4a8] sm:$0xff]
    %v366 = vld [vmem:[#allocation5 + $0x4b0] sm:$0xff]
    %v367 = vld [vmem:[#allocation5 + $0x4b8] sm:$0xff]
    %v368 = vld [vmem:[#allocation5 + $0x4c0] sm:$0xff]
    %v369 = vld [vmem:[#allocation5 + $0x4c8] sm:$0xff]
    %v370 = vld [vmem:[#allocation5 + $0x4d0] sm:$0xff]
    %v371 = vld [vmem:[#allocation5 + $0x4d8] sm:$0xff]
    %v372 = vld [vmem:[#allocation5 + $0x4e0] sm:$0xff]
    %v373 = vld [vmem:[#allocation5 + $0x4e8] sm:$0xff]
    %v374 = vld [vmem:[#allocation5 + $0x4f0] sm:$0xff]
    %v375 = vld [vmem:[#allocation5 + $0x4f8] sm:$0xff]
    %v376 = vld [vmem:[#allocation5 + $0x500] sm:$0xff]
    %v377 = vld [vmem:[#allocation5 + $0x508] sm:$0xff]
    %v378 = vld [vmem:[#allocation5 + $0x510] sm:$0xff]
    %v379 = vld [vmem:[#allocation5 + $0x518] sm:$0xff]
    %v380 = vld [vmem:[#allocation5 + $0x520] sm:$0xff]
    %v381 = vld [vmem:[#allocation5 + $0x528] sm:$0xff]
    %v382 = vld [vmem:[#allocation5 + $0x530] sm:$0xff]
    %v383 = vld [vmem:[#allocation5 + $0x538] sm:$0xff]
    %v384 = vld [vmem:[#allocation5 + $0x540] sm:$0xff]
    %v385 = vld [vmem:[#allocation5 + $0x548] sm:$0xff]
    %v386 = vld [vmem:[#allocation5 + $0x550] sm:$0xff]
    %v387 = vld [vmem:[#allocation5 + $0x558] sm:$0xff]
    %v388 = vld [vmem:[#allocation5 + $0x560] sm:$0xff]
    %v389 = vld [vmem:[#allocation5 + $0x568] sm:$0xff]
    %v390 = vld [vmem:[#allocation5 + $0x570] sm:$0xff]
    %v391 = vld [vmem:[#allocation5 + $0x578] sm:$0xff]
    %v392 = vld [vmem:[#allocation5 + $0x580] sm:$0xff]
    %v393 = vld [vmem:[#allocation5 + $0x588] sm:$0xff]
    %v394 = vld [vmem:[#allocation5 + $0x590] sm:$0xff]
    %v395 = vld [vmem:[#allocation5 + $0x598] sm:$0xff]
    %v396 = vld [vmem:[#allocation5 + $0x5a0] sm:$0xff]
    %v397 = vld [vmem:[#allocation5 + $0x5a8] sm:$0xff]
    %v398 = vld [vmem:[#allocation5 + $0x5b0] sm:$0xff]
    %v399 = vld [vmem:[#allocation5 + $0x5b8] sm:$0xff]
    %v400 = vld [vmem:[#allocation5 + $0x5c0] sm:$0xff]
    %v401 = vld [vmem:[#allocation5 + $0x5c8] sm:$0xff]
    %v402 = vld [vmem:[#allocation5 + $0x5d0] sm:$0xff]
    %v403 = vld [vmem:[#allocation5 + $0x5d8] sm:$0xff]
    %v404 = vld [vmem:[#allocation5 + $0x5e0] sm:$0xff]
    %v405 = vld [vmem:[#allocation5 + $0x5e8] sm:$0xff]
    %v406 = vld [vmem:[#allocation5 + $0x5f0] sm:$0xff]
    %v407 = vld [vmem:[#allocation5 + $0x5f8] sm:$0xff]
    %v408 = vld [vmem:[#allocation5 + $0x600] sm:$0xff]
    %v409 = vld [vmem:[#allocation5 + $0x608] sm:$0xff]
    %v410 = vld [vmem:[#allocation5 + $0x610] sm:$0xff]
    %v411 = vld [vmem:[#allocation5 + $0x618] sm:$0xff]
    %v412 = vld [vmem:[#allocation5 + $0x620] sm:$0xff]
    %v413 = vld [vmem:[#allocation5 + $0x628] sm:$0xff]
    %v414 = vld [vmem:[#allocation5 + $0x630] sm:$0xff]
    %v415 = vld [vmem:[#allocation5 + $0x638] sm:$0xff]
    %v416 = vld [vmem:[#allocation5 + $0x640] sm:$0xff]
    %v417 = vld [vmem:[#allocation5 + $0x648] sm:$0xff]
    %v418 = vld [vmem:[#allocation5 + $0x650] sm:$0xff]
    %v419 = vld [vmem:[#allocation5 + $0x658] sm:$0xff]
    %v420 = vld [vmem:[#allocation5 + $0x660] sm:$0xff]
    %v421 = vld [vmem:[#allocation5 + $0x668] sm:$0xff]
    %v422 = vld [vmem:[#allocation5 + $0x670] sm:$0xff]
    %v423 = vld [vmem:[#allocation5 + $0x678] sm:$0xff]
    %v424 = vld [vmem:[#allocation5 + $0x680] sm:$0xff]
    %v425 = vld [vmem:[#allocation5 + $0x688] sm:$0xff]
    %v426 = vld [vmem:[#allocation5 + $0x690] sm:$0xff]
    %v427 = vld [vmem:[#allocation5 + $0x698] sm:$0xff]
    %v428 = vld [vmem:[#allocation5 + $0x6a0] sm:$0xff]
    %v429 = vld [vmem:[#allocation5 + $0x6a8] sm:$0xff]
    %v430 = vld [vmem:[#allocation5 + $0x6b0] sm:$0xff]
    %v431 = vld [vmem:[#allocation5 + $0x6b8] sm:$0xff]
    %v432 = vld [vmem:[#allocation5 + $0x6c0] sm:$0xff]
    %v433 = vld [vmem:[#allocation5 + $0x6c8] sm:$0xff]
    %v434 = vld [vmem:[#allocation5 + $0x6d0] sm:$0xff]
    %v435 = vld [vmem:[#allocation5 + $0x6d8] sm:$0xff]
    %v436 = vld [vmem:[#allocation5 + $0x6e0] sm:$0xff]
    %v437 = vld [vmem:[#allocation5 + $0x6e8] sm:$0xff]
    %v438 = vld [vmem:[#allocation5 + $0x6f0] sm:$0xff]
    %v439 = vld [vmem:[#allocation5 + $0x6f8] sm:$0xff]
    %v440 = vld [vmem:[#allocation5 + $0x700] sm:$0xff]
    %v441 = vld [vmem:[#allocation5 + $0x708] sm:$0xff]
    %v442 = vld [vmem:[#allocation5 + $0x710] sm:$0xff]
    %v443 = vld [vmem:[#allocation5 + $0x718] sm:$0xff]
    %v444 = vld [vmem:[#allocation5 + $0x720] sm:$0xff]
    %v445 = vld [vmem:[#allocation5 + $0x728] sm:$0xff]
    %v446 = vld [vmem:[#allocation5 + $0x730] sm:$0xff]
    %v447 = vld [vmem:[#allocation5 + $0x738] sm:$0xff]
    %v448 = vld [vmem:[#allocation5 + $0x740] sm:$0xff]
    %v449 = vld [vmem:[#allocation5 + $0x748] sm:$0xff]
    %v450 = vld [vmem:[#allocation5 + $0x750] sm:$0xff]
    %v451 = vld [vmem:[#allocation5 + $0x758] sm:$0xff]
    %v452 = vld [vmem:[#allocation5 + $0x760] sm:$0xff]
    %v453 = vld [vmem:[#allocation5 + $0x768] sm:$0xff]
    %v454 = vld [vmem:[#allocation5 + $0x770] sm:$0xff]
    %v455 = vld [vmem:[#allocation5 + $0x778] sm:$0xff]
    %v456 = vld [vmem:[#allocation5 + $0x780] sm:$0xff]
    %v457 = vld [vmem:[#allocation5 + $0x788] sm:$0xff]
    %v458 = vld [vmem:[#allocation5 + $0x790] sm:$0xff]
    %v459 = vld [vmem:[#allocation5 + $0x798] sm:$0xff]
    %v460 = vld [vmem:[#allocation5 + $0x7a0] sm:$0xff]
    %v461 = vld [vmem:[#allocation5 + $0x7a8] sm:$0xff]
    %v462 = vld [vmem:[#allocation5 + $0x7b0] sm:$0xff]
    %v463 = vld [vmem:[#allocation5 + $0x7b8] sm:$0xff]
    %v464 = vld [vmem:[#allocation5 + $0x7c0] sm:$0xff]
    %v465 = vld [vmem:[#allocation5 + $0x7c8] sm:$0xff]
    %v466 = vld [vmem:[#allocation5 + $0x7d0] sm:$0xff]
    %v467 = vld [vmem:[#allocation5 + $0x7d8] sm:$0xff]
    %v468 = vld [vmem:[#allocation5 + $0x7e0] sm:$0xff]
    %v469 = vld [vmem:[#allocation5 + $0x7e8] sm:$0xff]
    %v470 = vld [vmem:[#allocation5 + $0x7f0] sm:$0xff]
    %v471 = vld [vmem:[#allocation5 + $0x7f8] sm:$0xff]
    %v472 = vld [vmem:[#allocation5 + $0x800] sm:$0xff]
    %v473 = vld [vmem:[#allocation5 + $0x808] sm:$0xff]
    %v474 = vld [vmem:[#allocation5 + $0x810] sm:$0xff]
    %v475 = vld [vmem:[#allocation5 + $0x818] sm:$0xff]
    %v476 = vld [vmem:[#allocation5 + $0x820] sm:$0xff]
    %v477 = vld [vmem:[#allocation5 + $0x828] sm:$0xff]
    %v478 = vld [vmem:[#allocation5 + $0x830] sm:$0xff]
    %v479 = vld [vmem:[#allocation5 + $0x838] sm:$0xff]
    %v480 = vld [vmem:[#allocation5 + $0x840] sm:$0xff]
    %v481 = vld [vmem:[#allocation5 + $0x848] sm:$0xff]
    %v482 = vld [vmem:[#allocation5 + $0x850] sm:$0xff]
    %v483 = vld [vmem:[#allocation5 + $0x858] sm:$0xff]
    %v484 = vld [vmem:[#allocation5 + $0x860] sm:$0xff]
    %v485 = vld [vmem:[#allocation5 + $0x868] sm:$0xff]
    %v486 = vld [vmem:[#allocation5 + $0x870] sm:$0xff]
    %v487 = vld [vmem:[#allocation5 + $0x878] sm:$0xff]
    %v488 = vld [vmem:[#allocation5 + $0x880] sm:$0xff]
    %v489 = vld [vmem:[#allocation5 + $0x888] sm:$0xff]
    %v490 = vld [vmem:[#allocation5 + $0x890] sm:$0xff]
    %v491 = vld [vmem:[#allocation5 + $0x898] sm:$0xff]
    %v492 = vld [vmem:[#allocation5 + $0x8a0] sm:$0xff]
    %v493 = vld [vmem:[#allocation5 + $0x8a8] sm:$0xff]
    %v494 = vld [vmem:[#allocation5 + $0x8b0] sm:$0xff]
    %v495 = vld [vmem:[#allocation5 + $0x8b8] sm:$0xff]
    %v496 = vld [vmem:[#allocation5 + $0x8c0] sm:$0xff]
    %v497 = vld [vmem:[#allocation5 + $0x8c8] sm:$0xff]
    %v498 = vld [vmem:[#allocation5 + $0x8d0] sm:$0xff]
    %v499 = vld [vmem:[#allocation5 + $0x8d8] sm:$0xff]
    %v500 = vld [vmem:[#allocation5 + $0x8e0] sm:$0xff]
    %v501 = vld [vmem:[#allocation5 + $0x8e8] sm:$0xff]
    %v502 = vld [vmem:[#allocation5 + $0x8f0] sm:$0xff]
    %v503 = vld [vmem:[#allocation5 + $0x8f8] sm:$0xff]
    %v504 = vld [vmem:[#allocation5 + $0x900] sm:$0xff]
    %v505 = vld [vmem:[#allocation5 + $0x908] sm:$0xff]
    %v506 = vld [vmem:[#allocation5 + $0x910] sm:$0xff]
    %v507 = vld [vmem:[#allocation5 + $0x918] sm:$0xff]
    %v508 = vld [vmem:[#allocation5 + $0x920] sm:$0xff]
    %v509 = vld [vmem:[#allocation5 + $0x928] sm:$0xff]
    %v510 = vld [vmem:[#allocation5 + $0x930] sm:$0xff]
    %v511 = vld [vmem:[#allocation5 + $0x938] sm:$0xff]
    %v512 = vld [vmem:[#allocation5 + $0x940] sm:$0xff]
    %v513 = vld [vmem:[#allocation5 + $0x948] sm:$0xff]
    %v514 = vld [vmem:[#allocation5 + $0x950] sm:$0xff]
    %v515 = vld [vmem:[#allocation5 + $0x958] sm:$0xff]
    %v516 = vld [vmem:[#allocation7] sm:$0xff]
    %v518 = vperm.slane %v516, 0
    %v519 = vperm.slane %v516, 1
    %v520 = vperm.slane %v516, 2
    %v521 = vperm.slane %v516, 3
    %v522 = vperm.slane %v516, 4
    %v523 = vperm.slane %v516, 5
    %v524 = vperm.slane %v516, 6
    %v525 = vperm.slane %v516, 7
    %v834 = vunpack.c.l.b16 %v216
    %v835 = vunpack.c.h.b16 %v216
    %v836 = vunpack.c.l.b16 %v217
    %v837 = vunpack.c.h.b16 %v217
    %v838 = vunpack.c.l.b16 %v218
    %v839 = vunpack.c.h.b16 %v218
    %v840 = vunpack.c.l.b16 %v219
    %v841 = vunpack.c.h.b16 %v219
    %v842 = vunpack.c.l.b16 %v220
    %v843 = vunpack.c.h.b16 %v220
    %v844 = vunpack.c.l.b16 %v221
    %v845 = vunpack.c.h.b16 %v221
    %v846 = vunpack.c.l.b16 %v222
    %v847 = vunpack.c.h.b16 %v222
    %v848 = vunpack.c.l.b16 %v223
    %v849 = vunpack.c.h.b16 %v223
    %v850 = vunpack.c.l.b16 %v224
    %v851 = vunpack.c.h.b16 %v224
    %v852 = vunpack.c.l.b16 %v225
    %v853 = vunpack.c.h.b16 %v225
    %v854 = vunpack.c.l.b16 %v226
    %v855 = vunpack.c.h.b16 %v226
    %v856 = vunpack.c.l.b16 %v227
    %v857 = vunpack.c.h.b16 %v227
    %v858 = vunpack.c.l.b16 %v228
    %v859 = vunpack.c.h.b16 %v228
    %v860 = vunpack.c.l.b16 %v229
    %v861 = vunpack.c.h.b16 %v229
    %v862 = vunpack.c.l.b16 %v230
    %v863 = vunpack.c.h.b16 %v230
    %v864 = vunpack.c.l.b16 %v231
    %v865 = vunpack.c.h.b16 %v231
    %v866 = vunpack.c.l.b16 %v232
    %v867 = vunpack.c.h.b16 %v232
    %v868 = vunpack.c.l.b16 %v233
    %v869 = vunpack.c.h.b16 %v233
    %v870 = vunpack.c.l.b16 %v234
    %v871 = vunpack.c.h.b16 %v234
    %v872 = vunpack.c.l.b16 %v235
    %v873 = vunpack.c.h.b16 %v235
    %v874 = vunpack.c.l.b16 %v236
    %v875 = vunpack.c.h.b16 %v236
    %v876 = vunpack.c.l.b16 %v237
    %v877 = vunpack.c.h.b16 %v237
    %v878 = vunpack.c.l.b16 %v238
    %v879 = vunpack.c.h.b16 %v238
    %v880 = vunpack.c.l.b16 %v239
    %v881 = vunpack.c.h.b16 %v239
    %v882 = vunpack.c.l.b16 %v240
    %v883 = vunpack.c.h.b16 %v240
    %v884 = vunpack.c.l.b16 %v241
    %v885 = vunpack.c.h.b16 %v241
    %v886 = vunpack.c.l.b16 %v242
    %v887 = vunpack.c.h.b16 %v242
    %v888 = vunpack.c.l.b16 %v243
    %v889 = vunpack.c.h.b16 %v243
    %v890 = vunpack.c.l.b16 %v244
    %v891 = vunpack.c.h.b16 %v244
    %v892 = vunpack.c.l.b16 %v245
    %v893 = vunpack.c.h.b16 %v245
    %v894 = vunpack.c.l.b16 %v246
    %v895 = vunpack.c.h.b16 %v246
    %v896 = vunpack.c.l.b16 %v247
    %v897 = vunpack.c.h.b16 %v247
    %v898 = vunpack.c.l.b16 %v248
    %v899 = vunpack.c.h.b16 %v248
    %v900 = vunpack.c.l.b16 %v249
    %v901 = vunpack.c.h.b16 %v249
    %v902 = vunpack.c.l.b16 %v250
    %v903 = vunpack.c.h.b16 %v250
    %v904 = vunpack.c.l.b16 %v251
    %v905 = vunpack.c.h.b16 %v251
    %v906 = vunpack.c.l.b16 %v252
    %v907 = vunpack.c.h.b16 %v252
    %v908 = vunpack.c.l.b16 %v253
    %v909 = vunpack.c.h.b16 %v253
    %v910 = vunpack.c.l.b16 %v254
    %v911 = vunpack.c.h.b16 %v254
    %v912 = vunpack.c.l.b16 %v255
    %v913 = vunpack.c.h.b16 %v255
    %v914 = vunpack.c.l.b16 %v256
    %v915 = vunpack.c.h.b16 %v256
    %v916 = vunpack.c.l.b16 %v257
    %v917 = vunpack.c.h.b16 %v257
    %v918 = vunpack.c.l.b16 %v258
    %v919 = vunpack.c.h.b16 %v258
    %v920 = vunpack.c.l.b16 %v259
    %v921 = vunpack.c.h.b16 %v259
    %v922 = vunpack.c.l.b16 %v260
    %v923 = vunpack.c.h.b16 %v260
    %v924 = vunpack.c.l.b16 %v261
    %v925 = vunpack.c.h.b16 %v261
    %v926 = vunpack.c.l.b16 %v262
    %v927 = vunpack.c.h.b16 %v262
    %v928 = vunpack.c.l.b16 %v263
    %v929 = vunpack.c.h.b16 %v263
    %v930 = vunpack.c.l.b16 %v264
    %v931 = vunpack.c.h.b16 %v264
    %v932 = vunpack.c.l.b16 %v265
    %v933 = vunpack.c.h.b16 %v265
    %v934 = vunpack.c.l.b16 %v266
    %v935 = vunpack.c.h.b16 %v266
    %v936 = vunpack.c.l.b16 %v267
    %v937 = vunpack.c.h.b16 %v267
    %v938 = vunpack.c.l.b16 %v268
    %v939 = vunpack.c.h.b16 %v268
    %v940 = vunpack.c.l.b16 %v269
    %v941 = vunpack.c.h.b16 %v269
    %v942 = vunpack.c.l.b16 %v270
    %v943 = vunpack.c.h.b16 %v270
    %v944 = vunpack.c.l.b16 %v271
    %v945 = vunpack.c.h.b16 %v271
    %v946 = vunpack.c.l.b16 %v272
    %v947 = vunpack.c.h.b16 %v272
    %v948 = vunpack.c.l.b16 %v273
    %v949 = vunpack.c.h.b16 %v273
    %v950 = vunpack.c.l.b16 %v274
    %v951 = vunpack.c.h.b16 %v274
    %v952 = vunpack.c.l.b16 %v275
    %v953 = vunpack.c.h.b16 %v275
    %v954 = vunpack.c.l.b16 %v276
    %v955 = vunpack.c.h.b16 %v276
    %v956 = vunpack.c.l.b16 %v277
    %v957 = vunpack.c.h.b16 %v277
    %v958 = vunpack.c.l.b16 %v278
    %v959 = vunpack.c.h.b16 %v278
    %v960 = vunpack.c.l.b16 %v279
    %v961 = vunpack.c.h.b16 %v279
    %v962 = vunpack.c.l.b16 %v280
    %v963 = vunpack.c.h.b16 %v280
    %v964 = vunpack.c.l.b16 %v281
    %v965 = vunpack.c.h.b16 %v281
    %v966 = vunpack.c.l.b16 %v282
    %v967 = vunpack.c.h.b16 %v282
    %v968 = vunpack.c.l.b16 %v283
    %v969 = vunpack.c.h.b16 %v283
    %v970 = vunpack.c.l.b16 %v284
    %v971 = vunpack.c.h.b16 %v284
    %v972 = vunpack.c.l.b16 %v285
    %v973 = vunpack.c.h.b16 %v285
    %v974 = vunpack.c.l.b16 %v286
    %v975 = vunpack.c.h.b16 %v286
    %v976 = vunpack.c.l.b16 %v287
    %v977 = vunpack.c.h.b16 %v287
    %v978 = vunpack.c.l.b16 %v288
    %v979 = vunpack.c.h.b16 %v288
    %v980 = vunpack.c.l.b16 %v289
    %v981 = vunpack.c.h.b16 %v289
    %v982 = vunpack.c.l.b16 %v290
    %v983 = vunpack.c.h.b16 %v290
    %v984 = vunpack.c.l.b16 %v291
    %v985 = vunpack.c.h.b16 %v291
    %v986 = vunpack.c.l.b16 %v292
    %v987 = vunpack.c.h.b16 %v292
    %v988 = vunpack.c.l.b16 %v293
    %v989 = vunpack.c.h.b16 %v293
    %v990 = vunpack.c.l.b16 %v294
    %v991 = vunpack.c.h.b16 %v294
    %v992 = vunpack.c.l.b16 %v295
    %v993 = vunpack.c.h.b16 %v295
    %v994 = vunpack.c.l.b16 %v296
    %v995 = vunpack.c.h.b16 %v296
    %v996 = vunpack.c.l.b16 %v297
    %v997 = vunpack.c.h.b16 %v297
    %v998 = vunpack.c.l.b16 %v298
    %v999 = vunpack.c.h.b16 %v298
    %v1000 = vunpack.c.l.b16 %v299
    %v1001 = vunpack.c.h.b16 %v299
    %v1002 = vunpack.c.l.b16 %v300
    %v1003 = vunpack.c.h.b16 %v300
    %v1004 = vunpack.c.l.b16 %v301
    %v1005 = vunpack.c.h.b16 %v301
    %v1006 = vunpack.c.l.b16 %v302
    %v1007 = vunpack.c.h.b16 %v302
    %v1008 = vunpack.c.l.b16 %v303
    %v1009 = vunpack.c.h.b16 %v303
    %v1010 = vunpack.c.l.b16 %v304
    %v1011 = vunpack.c.h.b16 %v304
    %v1012 = vunpack.c.l.b16 %v305
    %v1013 = vunpack.c.h.b16 %v305
    %v1014 = vunpack.c.l.b16 %v306
    %v1015 = vunpack.c.h.b16 %v306
    %v1016 = vunpack.c.l.b16 %v307
    %v1017 = vunpack.c.h.b16 %v307
    %v1018 = vunpack.c.l.b16 %v308
    %v1019 = vunpack.c.h.b16 %v308
    %v1020 = vunpack.c.l.b16 %v309
    %v1021 = vunpack.c.h.b16 %v309
    %v1022 = vunpack.c.l.b16 %v310
    %v1023 = vunpack.c.h.b16 %v310
    %v1024 = vunpack.c.l.b16 %v311
    %v1025 = vunpack.c.h.b16 %v311
    %v1026 = vunpack.c.l.b16 %v312
    %v1027 = vunpack.c.h.b16 %v312
    %v1028 = vunpack.c.l.b16 %v313
    %v1029 = vunpack.c.h.b16 %v313
    %v1030 = vunpack.c.l.b16 %v314
    %v1031 = vunpack.c.h.b16 %v314
    %v1032 = vunpack.c.l.b16 %v315
    %v1033 = vunpack.c.h.b16 %v315
    %v1034 = vunpack.c.l.b16 %v316
    %v1035 = vunpack.c.h.b16 %v316
    %v1036 = vunpack.c.l.b16 %v317
    %v1037 = vunpack.c.h.b16 %v317
    %v1038 = vunpack.c.l.b16 %v318
    %v1039 = vunpack.c.h.b16 %v318
    %v1040 = vunpack.c.l.b16 %v319
    %v1041 = vunpack.c.h.b16 %v319
    %v1042 = vunpack.c.l.b16 %v320
    %v1043 = vunpack.c.h.b16 %v320
    %v1044 = vunpack.c.l.b16 %v321
    %v1045 = vunpack.c.h.b16 %v321
    %v1046 = vunpack.c.l.b16 %v322
    %v1047 = vunpack.c.h.b16 %v322
    %v1048 = vunpack.c.l.b16 %v323
    %v1049 = vunpack.c.h.b16 %v323
    %v1050 = vunpack.c.l.b16 %v324
    %v1051 = vunpack.c.h.b16 %v324
    %v1052 = vunpack.c.l.b16 %v325
    %v1053 = vunpack.c.h.b16 %v325
    %v1054 = vunpack.c.l.b16 %v326
    %v1055 = vunpack.c.h.b16 %v326
    %v1056 = vunpack.c.l.b16 %v327
    %v1057 = vunpack.c.h.b16 %v327
    %v1058 = vunpack.c.l.b16 %v328
    %v1059 = vunpack.c.h.b16 %v328
    %v1060 = vunpack.c.l.b16 %v329
    %v1061 = vunpack.c.h.b16 %v329
    %v1062 = vunpack.c.l.b16 %v330
    %v1063 = vunpack.c.h.b16 %v330
    %v1064 = vunpack.c.l.b16 %v331
    %v1065 = vunpack.c.h.b16 %v331
    %v1066 = vunpack.c.l.b16 %v332
    %v1067 = vunpack.c.h.b16 %v332
    %v1068 = vunpack.c.l.b16 %v333
    %v1069 = vunpack.c.h.b16 %v333
    %v1070 = vunpack.c.l.b16 %v334
    %v1071 = vunpack.c.h.b16 %v334
    %v1072 = vunpack.c.l.b16 %v335
    %v1073 = vunpack.c.h.b16 %v335
    %v1074 = vunpack.c.l.b16 %v336
    %v1075 = vunpack.c.h.b16 %v336
    %v1076 = vunpack.c.l.b16 %v337
    %v1077 = vunpack.c.h.b16 %v337
    %v1078 = vunpack.c.l.b16 %v338
    %v1079 = vunpack.c.h.b16 %v338
    %v1080 = vunpack.c.l.b16 %v339
    %v1081 = vunpack.c.h.b16 %v339
    %v1082 = vunpack.c.l.b16 %v340
    %v1083 = vunpack.c.h.b16 %v340
    %v1084 = vunpack.c.l.b16 %v341
    %v1085 = vunpack.c.h.b16 %v341
    %v1086 = vunpack.c.l.b16 %v342
    %v1087 = vunpack.c.h.b16 %v342
    %v1088 = vunpack.c.l.b16 %v343
    %v1089 = vunpack.c.h.b16 %v343
    %v1090 = vunpack.c.l.b16 %v344
    %v1091 = vunpack.c.h.b16 %v344
    %v1092 = vunpack.c.l.b16 %v345
    %v1093 = vunpack.c.h.b16 %v345
    %v1094 = vunpack.c.l.b16 %v346
    %v1095 = vunpack.c.h.b16 %v346
    %v1096 = vunpack.c.l.b16 %v347
    %v1097 = vunpack.c.h.b16 %v347
    %v1098 = vunpack.c.l.b16 %v348
    %v1099 = vunpack.c.h.b16 %v348
    %v1100 = vunpack.c.l.b16 %v349
    %v1101 = vunpack.c.h.b16 %v349
    %v1102 = vunpack.c.l.b16 %v350
    %v1103 = vunpack.c.h.b16 %v350
    %v1104 = vunpack.c.l.b16 %v351
    %v1105 = vunpack.c.h.b16 %v351
    %v1106 = vunpack.c.l.b16 %v352
    %v1107 = vunpack.c.h.b16 %v352
    %v1108 = vunpack.c.l.b16 %v353
    %v1109 = vunpack.c.h.b16 %v353
    %v1110 = vunpack.c.l.b16 %v354
    %v1111 = vunpack.c.h.b16 %v354
    %v1112 = vunpack.c.l.b16 %v355
    %v1113 = vunpack.c.h.b16 %v355
    %v1114 = vunpack.c.l.b16 %v356
    %v1115 = vunpack.c.h.b16 %v356
    %v1116 = vunpack.c.l.b16 %v357
    %v1117 = vunpack.c.h.b16 %v357
    %v1118 = vunpack.c.l.b16 %v358
    %v1119 = vunpack.c.h.b16 %v358
    %v1120 = vunpack.c.l.b16 %v359
    %v1121 = vunpack.c.h.b16 %v359
    %v1122 = vunpack.c.l.b16 %v360
    %v1123 = vunpack.c.h.b16 %v360
    %v1124 = vunpack.c.l.b16 %v361
    %v1125 = vunpack.c.h.b16 %v361
    %v1126 = vunpack.c.l.b16 %v362
    %v1127 = vunpack.c.h.b16 %v362
    %v1128 = vunpack.c.l.b16 %v363
    %v1129 = vunpack.c.h.b16 %v363
    %v1130 = vunpack.c.l.b16 %v364
    %v1131 = vunpack.c.h.b16 %v364
    %v1132 = vunpack.c.l.b16 %v365
    %v1133 = vunpack.c.h.b16 %v365
    %v1134 = vunpack.c.l.b16 %v366
    %v1135 = vunpack.c.h.b16 %v366
    %v1136 = vunpack.c.l.b16 %v367
    %v1137 = vunpack.c.h.b16 %v367
    %v1138 = vunpack.c.l.b16 %v368
    %v1139 = vunpack.c.h.b16 %v368
    %v1140 = vunpack.c.l.b16 %v369
    %v1141 = vunpack.c.h.b16 %v369
    %v1142 = vunpack.c.l.b16 %v370
    %v1143 = vunpack.c.h.b16 %v370
    %v1144 = vunpack.c.l.b16 %v371
    %v1145 = vunpack.c.h.b16 %v371
    %v1146 = vunpack.c.l.b16 %v372
    %v1147 = vunpack.c.h.b16 %v372
    %v1148 = vunpack.c.l.b16 %v373
    %v1149 = vunpack.c.h.b16 %v373
    %v1150 = vunpack.c.l.b16 %v374
    %v1151 = vunpack.c.h.b16 %v374
    %v1152 = vunpack.c.l.b16 %v375
    %v1153 = vunpack.c.h.b16 %v375
    %v1154 = vunpack.c.l.b16 %v376
    %v1155 = vunpack.c.h.b16 %v376
    %v1156 = vunpack.c.l.b16 %v377
    %v1157 = vunpack.c.h.b16 %v377
    %v1158 = vunpack.c.l.b16 %v378
    %v1159 = vunpack.c.h.b16 %v378
    %v1160 = vunpack.c.l.b16 %v379
    %v1161 = vunpack.c.h.b16 %v379
    %v1162 = vunpack.c.l.b16 %v380
    %v1163 = vunpack.c.h.b16 %v380
    %v1164 = vunpack.c.l.b16 %v381
    %v1165 = vunpack.c.h.b16 %v381
    %v1166 = vunpack.c.l.b16 %v382
    %v1167 = vunpack.c.h.b16 %v382
    %v1168 = vunpack.c.l.b16 %v383
    %v1169 = vunpack.c.h.b16 %v383
    %v1170 = vunpack.c.l.b16 %v384
    %v1171 = vunpack.c.h.b16 %v384
    %v1172 = vunpack.c.l.b16 %v385
    %v1173 = vunpack.c.h.b16 %v385
    %v1174 = vunpack.c.l.b16 %v386
    %v1175 = vunpack.c.h.b16 %v386
    %v1176 = vunpack.c.l.b16 %v387
    %v1177 = vunpack.c.h.b16 %v387
    %v1178 = vunpack.c.l.b16 %v388
    %v1179 = vunpack.c.h.b16 %v388
    %v1180 = vunpack.c.l.b16 %v389
    %v1181 = vunpack.c.h.b16 %v389
    %v1182 = vunpack.c.l.b16 %v390
    %v1183 = vunpack.c.h.b16 %v390
    %v1184 = vunpack.c.l.b16 %v391
    %v1185 = vunpack.c.h.b16 %v391
    %v1186 = vunpack.c.l.b16 %v392
    %v1187 = vunpack.c.h.b16 %v392
    %v1188 = vunpack.c.l.b16 %v393
    %v1189 = vunpack.c.h.b16 %v393
    %v1190 = vunpack.c.l.b16 %v394
    %v1191 = vunpack.c.h.b16 %v394
    %v1192 = vunpack.c.l.b16 %v395
    %v1193 = vunpack.c.h.b16 %v395
    %v1194 = vunpack.c.l.b16 %v396
    %v1195 = vunpack.c.h.b16 %v396
    %v1196 = vunpack.c.l.b16 %v397
    %v1197 = vunpack.c.h.b16 %v397
    %v1198 = vunpack.c.l.b16 %v398
    %v1199 = vunpack.c.h.b16 %v398
    %v1200 = vunpack.c.l.b16 %v399
    %v1201 = vunpack.c.h.b16 %v399
    %v1202 = vunpack.c.l.b16 %v400
    %v1203 = vunpack.c.h.b16 %v400
    %v1204 = vunpack.c.l.b16 %v401
    %v1205 = vunpack.c.h.b16 %v401
    %v1206 = vunpack.c.l.b16 %v402
    %v1207 = vunpack.c.h.b16 %v402
    %v1208 = vunpack.c.l.b16 %v403
    %v1209 = vunpack.c.h.b16 %v403
    %v1210 = vunpack.c.l.b16 %v404
    %v1211 = vunpack.c.h.b16 %v404
    %v1212 = vunpack.c.l.b16 %v405
    %v1213 = vunpack.c.h.b16 %v405
    %v1214 = vunpack.c.l.b16 %v406
    %v1215 = vunpack.c.h.b16 %v406
    %v1216 = vunpack.c.l.b16 %v407
    %v1217 = vunpack.c.h.b16 %v407
    %v1218 = vunpack.c.l.b16 %v408
    %v1219 = vunpack.c.h.b16 %v408
    %v1220 = vunpack.c.l.b16 %v409
    %v1221 = vunpack.c.h.b16 %v409
    %v1222 = vunpack.c.l.b16 %v410
    %v1223 = vunpack.c.h.b16 %v410
    %v1224 = vunpack.c.l.b16 %v411
    %v1225 = vunpack.c.h.b16 %v411
    %v1226 = vunpack.c.l.b16 %v412
    %v1227 = vunpack.c.h.b16 %v412
    %v1228 = vunpack.c.l.b16 %v413
    %v1229 = vunpack.c.h.b16 %v413
    %v1230 = vunpack.c.l.b16 %v414
    %v1231 = vunpack.c.h.b16 %v414
    %v1232 = vunpack.c.l.b16 %v415
    %v1233 = vunpack.c.h.b16 %v415
    %v1234 = vunpack.c.l.b16 %v416
    %v1235 = vunpack.c.h.b16 %v416
    %v1236 = vunpack.c.l.b16 %v417
    %v1237 = vunpack.c.h.b16 %v417
    %v1238 = vunpack.c.l.b16 %v418
    %v1239 = vunpack.c.h.b16 %v418
    %v1240 = vunpack.c.l.b16 %v419
    %v1241 = vunpack.c.h.b16 %v419
    %v1242 = vunpack.c.l.b16 %v420
    %v1243 = vunpack.c.h.b16 %v420
    %v1244 = vunpack.c.l.b16 %v421
    %v1245 = vunpack.c.h.b16 %v421
    %v1246 = vunpack.c.l.b16 %v422
    %v1247 = vunpack.c.h.b16 %v422
    %v1248 = vunpack.c.l.b16 %v423
    %v1249 = vunpack.c.h.b16 %v423
    %v1250 = vunpack.c.l.b16 %v424
    %v1251 = vunpack.c.h.b16 %v424
    %v1252 = vunpack.c.l.b16 %v425
    %v1253 = vunpack.c.h.b16 %v425
    %v1254 = vunpack.c.l.b16 %v426
    %v1255 = vunpack.c.h.b16 %v426
    %v1256 = vunpack.c.l.b16 %v427
    %v1257 = vunpack.c.h.b16 %v427
    %v1258 = vunpack.c.l.b16 %v428
    %v1259 = vunpack.c.h.b16 %v428
    %v1260 = vunpack.c.l.b16 %v429
    %v1261 = vunpack.c.h.b16 %v429
    %v1262 = vunpack.c.l.b16 %v430
    %v1263 = vunpack.c.h.b16 %v430
    %v1264 = vunpack.c.l.b16 %v431
    %v1265 = vunpack.c.h.b16 %v431
    %v1266 = vunpack.c.l.b16 %v432
    %v1267 = vunpack.c.h.b16 %v432
    %v1268 = vunpack.c.l.b16 %v433
    %v1269 = vunpack.c.h.b16 %v433
    %v1270 = vunpack.c.l.b16 %v434
    %v1271 = vunpack.c.h.b16 %v434
    %v1272 = vunpack.c.l.b16 %v435
    %v1273 = vunpack.c.h.b16 %v435
    %v1274 = vunpack.c.l.b16 %v436
    %v1275 = vunpack.c.h.b16 %v436
    %v1276 = vunpack.c.l.b16 %v437
    %v1277 = vunpack.c.h.b16 %v437
    %v1278 = vunpack.c.l.b16 %v438
    %v1279 = vunpack.c.h.b16 %v438
    %v1280 = vunpack.c.l.b16 %v439
    %v1281 = vunpack.c.h.b16 %v439
    %v1282 = vunpack.c.l.b16 %v440
    %v1283 = vunpack.c.h.b16 %v440
    %v1284 = vunpack.c.l.b16 %v441
    %v1285 = vunpack.c.h.b16 %v441
    %v1286 = vunpack.c.l.b16 %v442
    %v1287 = vunpack.c.h.b16 %v442
    %v1288 = vunpack.c.l.b16 %v443
    %v1289 = vunpack.c.h.b16 %v443
    %v1290 = vunpack.c.l.b16 %v444
    %v1291 = vunpack.c.h.b16 %v444
    %v1292 = vunpack.c.l.b16 %v445
    %v1293 = vunpack.c.h.b16 %v445
    %v1294 = vunpack.c.l.b16 %v446
    %v1295 = vunpack.c.h.b16 %v446
    %v1296 = vunpack.c.l.b16 %v447
    %v1297 = vunpack.c.h.b16 %v447
    %v1298 = vunpack.c.l.b16 %v448
    %v1299 = vunpack.c.h.b16 %v448
    %v1300 = vunpack.c.l.b16 %v449
    %v1301 = vunpack.c.h.b16 %v449
    %v1302 = vunpack.c.l.b16 %v450
    %v1303 = vunpack.c.h.b16 %v450
    %v1304 = vunpack.c.l.b16 %v451
    %v1305 = vunpack.c.h.b16 %v451
    %v1306 = vunpack.c.l.b16 %v452
    %v1307 = vunpack.c.h.b16 %v452
    %v1308 = vunpack.c.l.b16 %v453
    %v1309 = vunpack.c.h.b16 %v453
    %v1310 = vunpack.c.l.b16 %v454
    %v1311 = vunpack.c.h.b16 %v454
    %v1312 = vunpack.c.l.b16 %v455
    %v1313 = vunpack.c.h.b16 %v455
    %v1314 = vunpack.c.l.b16 %v456
    %v1315 = vunpack.c.h.b16 %v456
    %v1316 = vunpack.c.l.b16 %v457
    %v1317 = vunpack.c.h.b16 %v457
    %v1318 = vunpack.c.l.b16 %v458
    %v1319 = vunpack.c.h.b16 %v458
    %v1320 = vunpack.c.l.b16 %v459
    %v1321 = vunpack.c.h.b16 %v459
    %v1322 = vunpack.c.l.b16 %v460
    %v1323 = vunpack.c.h.b16 %v460
    %v1324 = vunpack.c.l.b16 %v461
    %v1325 = vunpack.c.h.b16 %v461
    %v1326 = vunpack.c.l.b16 %v462
    %v1327 = vunpack.c.h.b16 %v462
    %v1328 = vunpack.c.l.b16 %v463
    %v1329 = vunpack.c.h.b16 %v463
    %v1330 = vunpack.c.l.b16 %v464
    %v1331 = vunpack.c.h.b16 %v464
    %v1332 = vunpack.c.l.b16 %v465
    %v1333 = vunpack.c.h.b16 %v465
    %v1334 = vunpack.c.l.b16 %v466
    %v1335 = vunpack.c.h.b16 %v466
    %v1336 = vunpack.c.l.b16 %v467
    %v1337 = vunpack.c.h.b16 %v467
    %v1338 = vunpack.c.l.b16 %v468
    %v1339 = vunpack.c.h.b16 %v468
    %v1340 = vunpack.c.l.b16 %v469
    %v1341 = vunpack.c.h.b16 %v469
    %v1342 = vunpack.c.l.b16 %v470
    %v1343 = vunpack.c.h.b16 %v470
    %v1344 = vunpack.c.l.b16 %v471
    %v1345 = vunpack.c.h.b16 %v471
    %v1346 = vunpack.c.l.b16 %v472
    %v1347 = vunpack.c.h.b16 %v472
    %v1348 = vunpack.c.l.b16 %v473
    %v1349 = vunpack.c.h.b16 %v473
    %v1350 = vunpack.c.l.b16 %v474
    %v1351 = vunpack.c.h.b16 %v474
    %v1352 = vunpack.c.l.b16 %v475
    %v1353 = vunpack.c.h.b16 %v475
    %v1354 = vunpack.c.l.b16 %v476
    %v1355 = vunpack.c.h.b16 %v476
    %v1356 = vunpack.c.l.b16 %v477
    %v1357 = vunpack.c.h.b16 %v477
    %v1358 = vunpack.c.l.b16 %v478
    %v1359 = vunpack.c.h.b16 %v478
    %v1360 = vunpack.c.l.b16 %v479
    %v1361 = vunpack.c.h.b16 %v479
    %v1362 = vunpack.c.l.b16 %v480
    %v1363 = vunpack.c.h.b16 %v480
    %v1364 = vunpack.c.l.b16 %v481
    %v1365 = vunpack.c.h.b16 %v481
    %v1366 = vunpack.c.l.b16 %v482
    %v1367 = vunpack.c.h.b16 %v482
    %v1368 = vunpack.c.l.b16 %v483
    %v1369 = vunpack.c.h.b16 %v483
    %v1370 = vunpack.c.l.b16 %v484
    %v1371 = vunpack.c.h.b16 %v484
    %v1372 = vunpack.c.l.b16 %v485
    %v1373 = vunpack.c.h.b16 %v485
    %v1374 = vunpack.c.l.b16 %v486
    %v1375 = vunpack.c.h.b16 %v486
    %v1376 = vunpack.c.l.b16 %v487
    %v1377 = vunpack.c.h.b16 %v487
    %v1378 = vunpack.c.l.b16 %v488
    %v1379 = vunpack.c.h.b16 %v488
    %v1380 = vunpack.c.l.b16 %v489
    %v1381 = vunpack.c.h.b16 %v489
    %v1382 = vunpack.c.l.b16 %v490
    %v1383 = vunpack.c.h.b16 %v490
    %v1384 = vunpack.c.l.b16 %v491
    %v1385 = vunpack.c.h.b16 %v491
    %v1386 = vunpack.c.l.b16 %v492
    %v1387 = vunpack.c.h.b16 %v492
    %v1388 = vunpack.c.l.b16 %v493
    %v1389 = vunpack.c.h.b16 %v493
    %v1390 = vunpack.c.l.b16 %v494
    %v1391 = vunpack.c.h.b16 %v494
    %v1392 = vunpack.c.l.b16 %v495
    %v1393 = vunpack.c.h.b16 %v495
    %v1394 = vunpack.c.l.b16 %v496
    %v1395 = vunpack.c.h.b16 %v496
    %v1396 = vunpack.c.l.b16 %v497
    %v1397 = vunpack.c.h.b16 %v497
    %v1398 = vunpack.c.l.b16 %v498
    %v1399 = vunpack.c.h.b16 %v498
    %v1400 = vunpack.c.l.b16 %v499
    %v1401 = vunpack.c.h.b16 %v499
    %v1402 = vunpack.c.l.b16 %v500
    %v1403 = vunpack.c.h.b16 %v500
    %v1404 = vunpack.c.l.b16 %v501
    %v1405 = vunpack.c.h.b16 %v501
    %v1406 = vunpack.c.l.b16 %v502
    %v1407 = vunpack.c.h.b16 %v502
    %v1408 = vunpack.c.l.b16 %v503
    %v1409 = vunpack.c.h.b16 %v503
    %v1410 = vunpack.c.l.b16 %v504
    %v1411 = vunpack.c.h.b16 %v504
    %v1412 = vunpack.c.l.b16 %v505
    %v1413 = vunpack.c.h.b16 %v505
    %v1414 = vunpack.c.l.b16 %v506
    %v1415 = vunpack.c.h.b16 %v506
    %v1416 = vunpack.c.l.b16 %v507
    %v1417 = vunpack.c.h.b16 %v507
    %v1418 = vunpack.c.l.b16 %v508
    %v1419 = vunpack.c.h.b16 %v508
    %v1420 = vunpack.c.l.b16 %v509
    %v1421 = vunpack.c.h.b16 %v509
    %v1422 = vunpack.c.l.b16 %v510
    %v1423 = vunpack.c.h.b16 %v510
    %v1424 = vunpack.c.l.b16 %v511
    %v1425 = vunpack.c.h.b16 %v511
    %v1426 = vunpack.c.l.b16 %v512
    %v1427 = vunpack.c.h.b16 %v512
    %v1428 = vunpack.c.l.b16 %v513
    %v1429 = vunpack.c.h.b16 %v513
    %v1430 = vunpack.c.l.b16 %v514
    %v1431 = vunpack.c.h.b16 %v514
    %v1432 = vunpack.c.l.b16 %v515
    %v1433 = vunpack.c.h.b16 %v515
    %v1434 = vpack.c.b16 %v842, %v834
    %v1435 = vpack.c.b16 %v843, %v835
    %v1436 = vpack.c.b16 %v844, %v836
    %v1437 = vpack.c.b16 %v845, %v837
    %v1438 = vpack.c.b16 %v846, %v838
    %v1439 = vpack.c.b16 %v847, %v839
    %v1440 = vpack.c.b16 %v848, %v840
    %v1441 = vpack.c.b16 %v849, %v841
    %v1442 = vpack.c.b16 %v858, %v850
    %v1443 = vpack.c.b16 %v859, %v851
    %v1444 = vpack.c.b16 %v860, %v852
    %v1445 = vpack.c.b16 %v861, %v853
    %v1446 = vpack.c.b16 %v862, %v854
    %v1447 = vpack.c.b16 %v863, %v855
    %v1448 = vpack.c.b16 %v864, %v856
    %v1449 = vpack.c.b16 %v865, %v857
    %v1450 = vpack.c.b16 %v874, %v866
    %v1451 = vpack.c.b16 %v875, %v867
    %v1452 = vpack.c.b16 %v876, %v868
    %v1453 = vpack.c.b16 %v877, %v869
    %v1454 = vpack.c.b16 %v878, %v870
    %v1455 = vpack.c.b16 %v879, %v871
    %v1456 = vpack.c.b16 %v880, %v872
    %v1457 = vpack.c.b16 %v881, %v873
    %v1458 = vpack.c.b16 %v890, %v882
    %v1459 = vpack.c.b16 %v891, %v883
    %v1460 = vpack.c.b16 %v892, %v884
    %v1461 = vpack.c.b16 %v893, %v885
    %v1462 = vpack.c.b16 %v894, %v886
    %v1463 = vpack.c.b16 %v895, %v887
    %v1464 = vpack.c.b16 %v896, %v888
    %v1465 = vpack.c.b16 %v897, %v889
    %v1466 = vpack.c.b16 %v906, %v898
    %v1467 = vpack.c.b16 %v907, %v899
    %v1468 = vpack.c.b16 %v908, %v900
    %v1469 = vpack.c.b16 %v909, %v901
    %v1470 = vpack.c.b16 %v910, %v902
    %v1471 = vpack.c.b16 %v911, %v903
    %v1472 = vpack.c.b16 %v912, %v904
    %v1473 = vpack.c.b16 %v913, %v905
    %v1474 = vpack.c.b16 %v922, %v914
    %v1475 = vpack.c.b16 %v923, %v915
    %v1476 = vpack.c.b16 %v924, %v916
    %v1477 = vpack.c.b16 %v925, %v917
    %v1478 = vpack.c.b16 %v926, %v918
    %v1479 = vpack.c.b16 %v927, %v919
    %v1480 = vpack.c.b16 %v928, %v920
    %v1481 = vpack.c.b16 %v929, %v921
    %v1482 = vpack.c.b16 %v938, %v930
    %v1483 = vpack.c.b16 %v939, %v931
    %v1484 = vpack.c.b16 %v940, %v932
    %v1485 = vpack.c.b16 %v941, %v933
    %v1486 = vpack.c.b16 %v942, %v934
    %v1487 = vpack.c.b16 %v943, %v935
    %v1488 = vpack.c.b16 %v944, %v936
    %v1489 = vpack.c.b16 %v945, %v937
    %v1490 = vpack.c.b16 %v954, %v946
    %v1491 = vpack.c.b16 %v955, %v947
    %v1492 = vpack.c.b16 %v956, %v948
    %v1493 = vpack.c.b16 %v957, %v949
    %v1494 = vpack.c.b16 %v958, %v950
    %v1495 = vpack.c.b16 %v959, %v951
    %v1496 = vpack.c.b16 %v960, %v952
    %v1497 = vpack.c.b16 %v961, %v953
    %v1498 = vpack.c.b16 %v970, %v962
    %v1499 = vpack.c.b16 %v971, %v963
    %v1500 = vpack.c.b16 %v972, %v964
    %v1501 = vpack.c.b16 %v973, %v965
    %v1502 = vpack.c.b16 %v974, %v966
    %v1503 = vpack.c.b16 %v975, %v967
    %v1504 = vpack.c.b16 %v976, %v968
    %v1505 = vpack.c.b16 %v977, %v969
    %v1506 = vpack.c.b16 %v986, %v978
    %v1507 = vpack.c.b16 %v987, %v979
    %v1508 = vpack.c.b16 %v988, %v980
    %v1509 = vpack.c.b16 %v989, %v981
    %v1510 = vpack.c.b16 %v990, %v982
    %v1511 = vpack.c.b16 %v991, %v983
    %v1512 = vpack.c.b16 %v992, %v984
    %v1513 = vpack.c.b16 %v993, %v985
    %v1514 = vpack.c.b16 %v1002, %v994
    %v1515 = vpack.c.b16 %v1003, %v995
    %v1516 = vpack.c.b16 %v1004, %v996
    %v1517 = vpack.c.b16 %v1005, %v997
    %v1518 = vpack.c.b16 %v1006, %v998
    %v1519 = vpack.c.b16 %v1007, %v999
    %v1520 = vpack.c.b16 %v1008, %v1000
    %v1521 = vpack.c.b16 %v1009, %v1001
    %v1522 = vpack.c.b16 %v1018, %v1010
    %v1523 = vpack.c.b16 %v1019, %v1011
    %v1524 = vpack.c.b16 %v1020, %v1012
    %v1525 = vpack.c.b16 %v1021, %v1013
    %v1526 = vpack.c.b16 %v1022, %v1014
    %v1527 = vpack.c.b16 %v1023, %v1015
    %v1528 = vpack.c.b16 %v1024, %v1016
    %v1529 = vpack.c.b16 %v1025, %v1017
    %v1530 = vpack.c.b16 %v1034, %v1026
    %v1531 = vpack.c.b16 %v1035, %v1027
    %v1532 = vpack.c.b16 %v1036, %v1028
    %v1533 = vpack.c.b16 %v1037, %v1029
    %v1534 = vpack.c.b16 %v1038, %v1030
    %v1535 = vpack.c.b16 %v1039, %v1031
    %v1536 = vpack.c.b16 %v1040, %v1032
    %v1537 = vpack.c.b16 %v1041, %v1033
    %v1538 = vpack.c.b16 %v1050, %v1042
    %v1539 = vpack.c.b16 %v1051, %v1043
    %v1540 = vpack.c.b16 %v1052, %v1044
    %v1541 = vpack.c.b16 %v1053, %v1045
    %v1542 = vpack.c.b16 %v1054, %v1046
    %v1543 = vpack.c.b16 %v1055, %v1047
    %v1544 = vpack.c.b16 %v1056, %v1048
    %v1545 = vpack.c.b16 %v1057, %v1049
    %v1546 = vpack.c.b16 %v1066, %v1058
    %v1547 = vpack.c.b16 %v1067, %v1059
    %v1548 = vpack.c.b16 %v1068, %v1060
    %v1549 = vpack.c.b16 %v1069, %v1061
    %v1550 = vpack.c.b16 %v1070, %v1062
    %v1551 = vpack.c.b16 %v1071, %v1063
    %v1552 = vpack.c.b16 %v1072, %v1064
    %v1553 = vpack.c.b16 %v1073, %v1065
    %v1554 = vpack.c.b16 %v1082, %v1074
    %v1555 = vpack.c.b16 %v1083, %v1075
    %v1556 = vpack.c.b16 %v1084, %v1076
    %v1557 = vpack.c.b16 %v1085, %v1077
    %v1558 = vpack.c.b16 %v1086, %v1078
    %v1559 = vpack.c.b16 %v1087, %v1079
    %v1560 = vpack.c.b16 %v1088, %v1080
    %v1561 = vpack.c.b16 %v1089, %v1081
    %v1562 = vpack.c.b16 %v1098, %v1090
    %v1563 = vpack.c.b16 %v1099, %v1091
    %v1564 = vpack.c.b16 %v1100, %v1092
    %v1565 = vpack.c.b16 %v1101, %v1093
    %v1566 = vpack.c.b16 %v1102, %v1094
    %v1567 = vpack.c.b16 %v1103, %v1095
    %v1568 = vpack.c.b16 %v1104, %v1096
    %v1569 = vpack.c.b16 %v1105, %v1097
    %v1570 = vpack.c.b16 %v1114, %v1106
    %v1571 = vpack.c.b16 %v1115, %v1107
    %v1572 = vpack.c.b16 %v1116, %v1108
    %v1573 = vpack.c.b16 %v1117, %v1109
    %v1574 = vpack.c.b16 %v1118, %v1110
    %v1575 = vpack.c.b16 %v1119, %v1111
    %v1576 = vpack.c.b16 %v1120, %v1112
    %v1577 = vpack.c.b16 %v1121, %v1113
    %v1578 = vpack.c.b16 %v1130, %v1122
    %v1579 = vpack.c.b16 %v1131, %v1123
    %v1580 = vpack.c.b16 %v1132, %v1124
    %v1581 = vpack.c.b16 %v1133, %v1125
    %v1582 = vpack.c.b16 %v1134, %v1126
    %v1583 = vpack.c.b16 %v1135, %v1127
    %v1584 = vpack.c.b16 %v1136, %v1128
    %v1585 = vpack.c.b16 %v1137, %v1129
    %v1586 = vpack.c.b16 %v1146, %v1138
    %v1587 = vpack.c.b16 %v1147, %v1139
    %v1588 = vpack.c.b16 %v1148, %v1140
    %v1589 = vpack.c.b16 %v1149, %v1141
    %v1590 = vpack.c.b16 %v1150, %v1142
    %v1591 = vpack.c.b16 %v1151, %v1143
    %v1592 = vpack.c.b16 %v1152, %v1144
    %v1593 = vpack.c.b16 %v1153, %v1145
    %v1594 = vpack.c.b16 %v1162, %v1154
    %v1595 = vpack.c.b16 %v1163, %v1155
    %v1596 = vpack.c.b16 %v1164, %v1156
    %v1597 = vpack.c.b16 %v1165, %v1157
    %v1598 = vpack.c.b16 %v1166, %v1158
    %v1599 = vpack.c.b16 %v1167, %v1159
    %v1600 = vpack.c.b16 %v1168, %v1160
    %v1601 = vpack.c.b16 %v1169, %v1161
    %v1602 = vpack.c.b16 %v1178, %v1170
    %v1603 = vpack.c.b16 %v1179, %v1171
    %v1604 = vpack.c.b16 %v1180, %v1172
    %v1605 = vpack.c.b16 %v1181, %v1173
    %v1606 = vpack.c.b16 %v1182, %v1174
    %v1607 = vpack.c.b16 %v1183, %v1175
    %v1608 = vpack.c.b16 %v1184, %v1176
    %v1609 = vpack.c.b16 %v1185, %v1177
    %v1610 = vpack.c.b16 %v1194, %v1186
    %v1611 = vpack.c.b16 %v1195, %v1187
    %v1612 = vpack.c.b16 %v1196, %v1188
    %v1613 = vpack.c.b16 %v1197, %v1189
    %v1614 = vpack.c.b16 %v1198, %v1190
    %v1615 = vpack.c.b16 %v1199, %v1191
    %v1616 = vpack.c.b16 %v1200, %v1192
    %v1617 = vpack.c.b16 %v1201, %v1193
    %v1618 = vpack.c.b16 %v1210, %v1202
    %v1619 = vpack.c.b16 %v1211, %v1203
    %v1620 = vpack.c.b16 %v1212, %v1204
    %v1621 = vpack.c.b16 %v1213, %v1205
    %v1622 = vpack.c.b16 %v1214, %v1206
    %v1623 = vpack.c.b16 %v1215, %v1207
    %v1624 = vpack.c.b16 %v1216, %v1208
    %v1625 = vpack.c.b16 %v1217, %v1209
    %v1626 = vpack.c.b16 %v1226, %v1218
    %v1627 = vpack.c.b16 %v1227, %v1219
    %v1628 = vpack.c.b16 %v1228, %v1220
    %v1629 = vpack.c.b16 %v1229, %v1221
    %v1630 = vpack.c.b16 %v1230, %v1222
    %v1631 = vpack.c.b16 %v1231, %v1223
    %v1632 = vpack.c.b16 %v1232, %v1224
    %v1633 = vpack.c.b16 %v1233, %v1225
    %v1634 = vpack.c.b16 %v1242, %v1234
    %v1635 = vpack.c.b16 %v1243, %v1235
    %v1636 = vpack.c.b16 %v1244, %v1236
    %v1637 = vpack.c.b16 %v1245, %v1237
    %v1638 = vpack.c.b16 %v1246, %v1238
    %v1639 = vpack.c.b16 %v1247, %v1239
    %v1640 = vpack.c.b16 %v1248, %v1240
    %v1641 = vpack.c.b16 %v1249, %v1241
    %v1642 = vpack.c.b16 %v1258, %v1250
    %v1643 = vpack.c.b16 %v1259, %v1251
    %v1644 = vpack.c.b16 %v1260, %v1252
    %v1645 = vpack.c.b16 %v1261, %v1253
    %v1646 = vpack.c.b16 %v1262, %v1254
    %v1647 = vpack.c.b16 %v1263, %v1255
    %v1648 = vpack.c.b16 %v1264, %v1256
    %v1649 = vpack.c.b16 %v1265, %v1257
    %v1650 = vpack.c.b16 %v1274, %v1266
    %v1651 = vpack.c.b16 %v1275, %v1267
    %v1652 = vpack.c.b16 %v1276, %v1268
    %v1653 = vpack.c.b16 %v1277, %v1269
    %v1654 = vpack.c.b16 %v1278, %v1270
    %v1655 = vpack.c.b16 %v1279, %v1271
    %v1656 = vpack.c.b16 %v1280, %v1272
    %v1657 = vpack.c.b16 %v1281, %v1273
    %v1658 = vpack.c.b16 %v1290, %v1282
    %v1659 = vpack.c.b16 %v1291, %v1283
    %v1660 = vpack.c.b16 %v1292, %v1284
    %v1661 = vpack.c.b16 %v1293, %v1285
    %v1662 = vpack.c.b16 %v1294, %v1286
    %v1663 = vpack.c.b16 %v1295, %v1287
    %v1664 = vpack.c.b16 %v1296, %v1288
    %v1665 = vpack.c.b16 %v1297, %v1289
    %v1666 = vpack.c.b16 %v1306, %v1298
    %v1667 = vpack.c.b16 %v1307, %v1299
    %v1668 = vpack.c.b16 %v1308, %v1300
    %v1669 = vpack.c.b16 %v1309, %v1301
    %v1670 = vpack.c.b16 %v1310, %v1302
    %v1671 = vpack.c.b16 %v1311, %v1303
    %v1672 = vpack.c.b16 %v1312, %v1304
    %v1673 = vpack.c.b16 %v1313, %v1305
    %v1674 = vpack.c.b16 %v1322, %v1314
    %v1675 = vpack.c.b16 %v1323, %v1315
    %v1676 = vpack.c.b16 %v1324, %v1316
    %v1677 = vpack.c.b16 %v1325, %v1317
    %v1678 = vpack.c.b16 %v1326, %v1318
    %v1679 = vpack.c.b16 %v1327, %v1319
    %v1680 = vpack.c.b16 %v1328, %v1320
    %v1681 = vpack.c.b16 %v1329, %v1321
    %v1682 = vpack.c.b16 %v1338, %v1330
    %v1683 = vpack.c.b16 %v1339, %v1331
    %v1684 = vpack.c.b16 %v1340, %v1332
    %v1685 = vpack.c.b16 %v1341, %v1333
    %v1686 = vpack.c.b16 %v1342, %v1334
    %v1687 = vpack.c.b16 %v1343, %v1335
    %v1688 = vpack.c.b16 %v1344, %v1336
    %v1689 = vpack.c.b16 %v1345, %v1337
    %v1690 = vpack.c.b16 %v1354, %v1346
    %v1691 = vpack.c.b16 %v1355, %v1347
    %v1692 = vpack.c.b16 %v1356, %v1348
    %v1693 = vpack.c.b16 %v1357, %v1349
    %v1694 = vpack.c.b16 %v1358, %v1350
    %v1695 = vpack.c.b16 %v1359, %v1351
    %v1696 = vpack.c.b16 %v1360, %v1352
    %v1697 = vpack.c.b16 %v1361, %v1353
    %v1698 = vpack.c.b16 %v1370, %v1362
    %v1699 = vpack.c.b16 %v1371, %v1363
    %v1700 = vpack.c.b16 %v1372, %v1364
    %v1701 = vpack.c.b16 %v1373, %v1365
    %v1702 = vpack.c.b16 %v1374, %v1366
    %v1703 = vpack.c.b16 %v1375, %v1367
    %v1704 = vpack.c.b16 %v1376, %v1368
    %v1705 = vpack.c.b16 %v1377, %v1369
    %v1706 = vpack.c.b16 %v1386, %v1378
    %v1707 = vpack.c.b16 %v1387, %v1379
    %v1708 = vpack.c.b16 %v1388, %v1380
    %v1709 = vpack.c.b16 %v1389, %v1381
    %v1710 = vpack.c.b16 %v1390, %v1382
    %v1711 = vpack.c.b16 %v1391, %v1383
    %v1712 = vpack.c.b16 %v1392, %v1384
    %v1713 = vpack.c.b16 %v1393, %v1385
    %v1714 = vpack.c.b16 %v1402, %v1394
    %v1715 = vpack.c.b16 %v1403, %v1395
    %v1716 = vpack.c.b16 %v1404, %v1396
    %v1717 = vpack.c.b16 %v1405, %v1397
    %v1718 = vpack.c.b16 %v1406, %v1398
    %v1719 = vpack.c.b16 %v1407, %v1399
    %v1720 = vpack.c.b16 %v1408, %v1400
    %v1721 = vpack.c.b16 %v1409, %v1401
    %v1722 = vpack.c.b16 %v1418, %v1410
    %v1723 = vpack.c.b16 %v1419, %v1411
    %v1724 = vpack.c.b16 %v1420, %v1412
    %v1725 = vpack.c.b16 %v1421, %v1413
    %v1726 = vpack.c.b16 %v1422, %v1414
    %v1727 = vpack.c.b16 %v1423, %v1415
    %v1728 = vpack.c.b16 %v1424, %v1416
    %v1729 = vpack.c.b16 %v1425, %v1417
    %v1730 = vpack.c.b16 %v1426, %v1426
    %v1731 = vpack.c.b16 %v1427, %v1427
    %v1732 = vpack.c.b16 %v1428, %v1428
    %v1733 = vpack.c.b16 %v1429, %v1429
    %v1734 = vpack.c.b16 %v1430, %v1430
    %v1735 = vpack.c.b16 %v1431, %v1431
    %v1736 = vpack.c.b16 %v1432, %v1432
    %v1737 = vpack.c.b16 %v1433, %v1433
    %vm2034 = vcmask 719872
    %v2036 = vsel %vm2034, %v215, 0
    %vm2038 = vcmask 1043456
    %v2040 = vsel %vm2038, %v1730, 0
    %v2043 = vsel %vm2038, %v1731, 0
    %v2046 = vsel %vm2038, %v1732, 0
    %v2049 = vsel %vm2038, %v1733, 0
    %v2052 = vsel %vm2038, %v1734, 0
    %v2055 = vsel %vm2038, %v1735, 0
    %v2058 = vsel %vm2038, %v1736, 0
    %v2061 = vsel %vm2038, %v1737, 0
    %2063 = vmatpush.bf16.msra.mxu0 %v1490
    %2064 = vmatpush.bf16.msra.mxu0 %v1482
    %2065 = vmatpush.bf16.msra.mxu0 %v1474
    %2066 = vmatpush.bf16.msra.mxu0 %v1466
    %2067 = vmatpush.bf16.msra.mxu0 %v1458
    %2068 = vmatpush.bf16.msra.mxu0 %v1450
    %2069 = vmatpush.bf16.msra.mxu0 %v1442
    %2070 = vmatpush.bf16.msra.mxu0 %v1434
    %2071 = vmatmul.bf16.gmra.mxu0 %v211
    %v2072 = vpop.f32.mrf.mxu0
    %v2073 = vadd.f32 %v518, %v2072
    %v2074 = vpop.f32.mrf.mxu0
    %v2075 = vadd.f32 %v518, %v2074
    %2076 = vdwg.mxu0
    %2077 = vmatpush.bf16.msra.mxu0 %v1554
    %2078 = vmatpush.bf16.msra.mxu0 %v1546
    %2079 = vmatpush.bf16.msra.mxu0 %v1538
    %2080 = vmatpush.bf16.msra.mxu0 %v1530
    %2081 = vmatpush.bf16.msra.mxu0 %v1522
    %2082 = vmatpush.bf16.msra.mxu0 %v1514
    %2083 = vmatpush.bf16.msra.mxu0 %v1506
    %2084 = vmatpush.bf16.msra.mxu0 %v1498
    %2085 = vmatmul.bf16.gmra.mxu0 %v212
    %v2086 = vpop.f32.mrf.mxu0
    %v2087 = vadd.f32 %v2073, %v2086
    %v2088 = vpop.f32.mrf.mxu0
    %v2089 = vadd.f32 %v2075, %v2088
    %2090 = vdwg.mxu0
    %2091 = vmatpush.bf16.msra.mxu0 %v1618
    %2092 = vmatpush.bf16.msra.mxu0 %v1610
    %2093 = vmatpush.bf16.msra.mxu0 %v1602
    %2094 = vmatpush.bf16.msra.mxu0 %v1594
    %2095 = vmatpush.bf16.msra.mxu0 %v1586
    %2096 = vmatpush.bf16.msra.mxu0 %v1578
    %2097 = vmatpush.bf16.msra.mxu0 %v1570
    %2098 = vmatpush.bf16.msra.mxu0 %v1562
    %2099 = vmatmul.bf16.gmra.mxu0 %v213
    %v2100 = vpop.f32.mrf.mxu0
    %v2101 = vadd.f32 %v2087, %v2100
    %v2102 = vpop.f32.mrf.mxu0
    %v2103 = vadd.f32 %v2089, %v2102
    %2104 = vdwg.mxu0
    %2105 = vmatpush.bf16.msra.mxu0 %v1682
    %2106 = vmatpush.bf16.msra.mxu0 %v1674
    %2107 = vmatpush.bf16.msra.mxu0 %v1666
    %2108 = vmatpush.bf16.msra.mxu0 %v1658
    %2109 = vmatpush.bf16.msra.mxu0 %v1650
    %2110 = vmatpush.bf16.msra.mxu0 %v1642
    %2111 = vmatpush.bf16.msra.mxu0 %v1634
    %2112 = vmatpush.bf16.msra.mxu0 %v1626
    %2113 = vmatmul.bf16.gmra.mxu0 %v214
    %v2114 = vpop.f32.mrf.mxu0
    %v2115 = vadd.f32 %v2101, %v2114
    %v2116 = vpop.f32.mrf.mxu0
    %v2117 = vadd.f32 %v2103, %v2116
    %2118 = vdwg.mxu0
    %2119 = vmatpush.bf16.msra.mxu0 0
    %2120 = vmatpush.bf16.msra.mxu0 0
    %2121 = vmatpush.bf16.msra.mxu0 %v2040
    %2122 = vmatpush.bf16.msra.mxu0 %v1722
    %2123 = vmatpush.bf16.msra.mxu0 %v1714
    %2124 = vmatpush.bf16.msra.mxu0 %v1706
    %2125 = vmatpush.bf16.msra.mxu0 %v1698
    %2126 = vmatpush.bf16.msra.mxu0 %v1690
    %2127 = vmatmul.bf16.gmra.mxu0 %v2036
    %v2128 = vpop.f32.mrf.mxu0
    %v2129 = vadd.f32 %v2115, %v2128
    %v2130 = vpop.f32.mrf.mxu0
    %v2131 = vadd.f32 %v2117, %v2130
    %2132 = vdwg.mxu0
    %2133 = vmatpush.bf16.msra.mxu0 %v1491
    %2134 = vmatpush.bf16.msra.mxu0 %v1483
    %2135 = vmatpush.bf16.msra.mxu0 %v1475
    %2136 = vmatpush.bf16.msra.mxu0 %v1467
    %2137 = vmatpush.bf16.msra.mxu0 %v1459
    %2138 = vmatpush.bf16.msra.mxu0 %v1451
    %2139 = vmatpush.bf16.msra.mxu0 %v1443
    %2140 = vmatpush.bf16.msra.mxu0 %v1435
    %2141 = vmatmul.bf16.gmra.mxu0 %v211
    %v2142 = vpop.f32.mrf.mxu0
    %v2143 = vadd.f32 %v519, %v2142
    %v2144 = vpop.f32.mrf.mxu0
    %v2145 = vadd.f32 %v519, %v2144
    %2146 = vdwg.mxu0
    %2147 = vmatpush.bf16.msra.mxu0 %v1555
    %2148 = vmatpush.bf16.msra.mxu0 %v1547
    %2149 = vmatpush.bf16.msra.mxu0 %v1539
    %2150 = vmatpush.bf16.msra.mxu0 %v1531
    %2151 = vmatpush.bf16.msra.mxu0 %v1523
    %2152 = vmatpush.bf16.msra.mxu0 %v1515
    %2153 = vmatpush.bf16.msra.mxu0 %v1507
    %2154 = vmatpush.bf16.msra.mxu0 %v1499
    %2155 = vmatmul.bf16.gmra.mxu0 %v212
    %v2156 = vpop.f32.mrf.mxu0
    %v2157 = vadd.f32 %v2143, %v2156
    %v2158 = vpop.f32.mrf.mxu0
    %v2159 = vadd.f32 %v2145, %v2158
    %2160 = vdwg.mxu0
    %2161 = vmatpush.bf16.msra.mxu0 %v1619
    %2162 = vmatpush.bf16.msra.mxu0 %v1611
    %2163 = vmatpush.bf16.msra.mxu0 %v1603
    %2164 = vmatpush.bf16.msra.mxu0 %v1595
    %2165 = vmatpush.bf16.msra.mxu0 %v1587
    %2166 = vmatpush.bf16.msra.mxu0 %v1579
    %2167 = vmatpush.bf16.msra.mxu0 %v1571
    %2168 = vmatpush.bf16.msra.mxu0 %v1563
    %2169 = vmatmul.bf16.gmra.mxu0 %v213
    %v2170 = vpop.f32.mrf.mxu0
    %v2171 = vadd.f32 %v2157, %v2170
    %v2172 = vpop.f32.mrf.mxu0
    %v2173 = vadd.f32 %v2159, %v2172
    %2174 = vdwg.mxu0
    %2175 = vmatpush.bf16.msra.mxu0 %v1683
    %2176 = vmatpush.bf16.msra.mxu0 %v1675
    %2177 = vmatpush.bf16.msra.mxu0 %v1667
    %2178 = vmatpush.bf16.msra.mxu0 %v1659
    %2179 = vmatpush.bf16.msra.mxu0 %v1651
    %2180 = vmatpush.bf16.msra.mxu0 %v1643
    %2181 = vmatpush.bf16.msra.mxu0 %v1635
    %2182 = vmatpush.bf16.msra.mxu0 %v1627
    %2183 = vmatmul.bf16.gmra.mxu0 %v214
    %v2184 = vpop.f32.mrf.mxu0
    %v2185 = vadd.f32 %v2171, %v2184
    %v2186 = vpop.f32.mrf.mxu0
    %v2187 = vadd.f32 %v2173, %v2186
    %2188 = vdwg.mxu0
    %2189 = vmatpush.bf16.msra.mxu0 0
    %2190 = vmatpush.bf16.msra.mxu0 0
    %2191 = vmatpush.bf16.msra.mxu0 %v2043
    %2192 = vmatpush.bf16.msra.mxu0 %v1723
    %2193 = vmatpush.bf16.msra.mxu0 %v1715
    %2194 = vmatpush.bf16.msra.mxu0 %v1707
    %2195 = vmatpush.bf16.msra.mxu0 %v1699
    %2196 = vmatpush.bf16.msra.mxu0 %v1691
    %2197 = vmatmul.bf16.gmra.mxu0 %v2036
    %v2198 = vpop.f32.mrf.mxu0
    %v2199 = vadd.f32 %v2185, %v2198
    %v2200 = vpop.f32.mrf.mxu0
    %v2201 = vadd.f32 %v2187, %v2200
    %2202 = vdwg.mxu0
    %2203 = vmatpush.bf16.msra.mxu0 %v1492
    %2204 = vmatpush.bf16.msra.mxu0 %v1484
    %2205 = vmatpush.bf16.msra.mxu0 %v1476
    %2206 = vmatpush.bf16.msra.mxu0 %v1468
    %2207 = vmatpush.bf16.msra.mxu0 %v1460
    %2208 = vmatpush.bf16.msra.mxu0 %v1452
    %2209 = vmatpush.bf16.msra.mxu0 %v1444
    %2210 = vmatpush.bf16.msra.mxu0 %v1436
    %2211 = vmatmul.bf16.gmra.mxu0 %v211
    %v2212 = vpop.f32.mrf.mxu0
    %v2213 = vadd.f32 %v520, %v2212
    %v2214 = vpop.f32.mrf.mxu0
    %v2215 = vadd.f32 %v520, %v2214
    %2216 = vdwg.mxu0
    %2217 = vmatpush.bf16.msra.mxu0 %v1556
    %2218 = vmatpush.bf16.msra.mxu0 %v1548
    %2219 = vmatpush.bf16.msra.mxu0 %v1540
    %2220 = vmatpush.bf16.msra.mxu0 %v1532
    %2221 = vmatpush.bf16.msra.mxu0 %v1524
    %2222 = vmatpush.bf16.msra.mxu0 %v1516
    %2223 = vmatpush.bf16.msra.mxu0 %v1508
    %2224 = vmatpush.bf16.msra.mxu0 %v1500
    %2225 = vmatmul.bf16.gmra.mxu0 %v212
    %v2226 = vpop.f32.mrf.mxu0
    %v2227 = vadd.f32 %v2213, %v2226
    %v2228 = vpop.f32.mrf.mxu0
    %v2229 = vadd.f32 %v2215, %v2228
    %2230 = vdwg.mxu0
    %2231 = vmatpush.bf16.msra.mxu0 %v1620
    %2232 = vmatpush.bf16.msra.mxu0 %v1612
    %2233 = vmatpush.bf16.msra.mxu0 %v1604
    %2234 = vmatpush.bf16.msra.mxu0 %v1596
    %2235 = vmatpush.bf16.msra.mxu0 %v1588
    %2236 = vmatpush.bf16.msra.mxu0 %v1580
    %2237 = vmatpush.bf16.msra.mxu0 %v1572
    %2238 = vmatpush.bf16.msra.mxu0 %v1564
    %2239 = vmatmul.bf16.gmra.mxu0 %v213
    %v2240 = vpop.f32.mrf.mxu0
    %v2241 = vadd.f32 %v2227, %v2240
    %v2242 = vpop.f32.mrf.mxu0
    %v2243 = vadd.f32 %v2229, %v2242
    %2244 = vdwg.mxu0
    %2245 = vmatpush.bf16.msra.mxu0 %v1684
    %2246 = vmatpush.bf16.msra.mxu0 %v1676
    %2247 = vmatpush.bf16.msra.mxu0 %v1668
    %2248 = vmatpush.bf16.msra.mxu0 %v1660
    %2249 = vmatpush.bf16.msra.mxu0 %v1652
    %2250 = vmatpush.bf16.msra.mxu0 %v1644
    %2251 = vmatpush.bf16.msra.mxu0 %v1636
    %2252 = vmatpush.bf16.msra.mxu0 %v1628
    %2253 = vmatmul.bf16.gmra.mxu0 %v214
    %v2254 = vpop.f32.mrf.mxu0
    %v2255 = vadd.f32 %v2241, %v2254
    %v2256 = vpop.f32.mrf.mxu0
    %v2257 = vadd.f32 %v2243, %v2256
    %2258 = vdwg.mxu0
    %2259 = vmatpush.bf16.msra.mxu0 0
    %2260 = vmatpush.bf16.msra.mxu0 0
    %2261 = vmatpush.bf16.msra.mxu0 %v2046
    %2262 = vmatpush.bf16.msra.mxu0 %v1724
    %2263 = vmatpush.bf16.msra.mxu0 %v1716
    %2264 = vmatpush.bf16.msra.mxu0 %v1708
    %2265 = vmatpush.bf16.msra.mxu0 %v1700
    %2266 = vmatpush.bf16.msra.mxu0 %v1692
    %2267 = vmatmul.bf16.gmra.mxu0 %v2036
    %v2268 = vpop.f32.mrf.mxu0
    %v2269 = vadd.f32 %v2255, %v2268
    %v2270 = vpop.f32.mrf.mxu0
    %v2271 = vadd.f32 %v2257, %v2270
    %2272 = vdwg.mxu0
    %2273 = vmatpush.bf16.msra.mxu0 %v1493
    %2274 = vmatpush.bf16.msra.mxu0 %v1485
    %2275 = vmatpush.bf16.msra.mxu0 %v1477
    %2276 = vmatpush.bf16.msra.mxu0 %v1469
    %2277 = vmatpush.bf16.msra.mxu0 %v1461
    %2278 = vmatpush.bf16.msra.mxu0 %v1453
    %2279 = vmatpush.bf16.msra.mxu0 %v1445
    %2280 = vmatpush.bf16.msra.mxu0 %v1437
    %2281 = vmatmul.bf16.gmra.mxu0 %v211
    %v2282 = vpop.f32.mrf.mxu0
    %v2283 = vadd.f32 %v521, %v2282
    %v2284 = vpop.f32.mrf.mxu0
    %v2285 = vadd.f32 %v521, %v2284
    %2286 = vdwg.mxu0
    %2287 = vmatpush.bf16.msra.mxu0 %v1557
    %2288 = vmatpush.bf16.msra.mxu0 %v1549
    %2289 = vmatpush.bf16.msra.mxu0 %v1541
    %2290 = vmatpush.bf16.msra.mxu0 %v1533
    %2291 = vmatpush.bf16.msra.mxu0 %v1525
    %2292 = vmatpush.bf16.msra.mxu0 %v1517
    %2293 = vmatpush.bf16.msra.mxu0 %v1509
    %2294 = vmatpush.bf16.msra.mxu0 %v1501
    %2295 = vmatmul.bf16.gmra.mxu0 %v212
    %v2296 = vpop.f32.mrf.mxu0
    %v2297 = vadd.f32 %v2283, %v2296
    %v2298 = vpop.f32.mrf.mxu0
    %v2299 = vadd.f32 %v2285, %v2298
    %2300 = vdwg.mxu0
    %2301 = vmatpush.bf16.msra.mxu0 %v1621
    %2302 = vmatpush.bf16.msra.mxu0 %v1613
    %2303 = vmatpush.bf16.msra.mxu0 %v1605
    %2304 = vmatpush.bf16.msra.mxu0 %v1597
    %2305 = vmatpush.bf16.msra.mxu0 %v1589
    %2306 = vmatpush.bf16.msra.mxu0 %v1581
    %2307 = vmatpush.bf16.msra.mxu0 %v1573
    %2308 = vmatpush.bf16.msra.mxu0 %v1565
    %2309 = vmatmul.bf16.gmra.mxu0 %v213
    %v2310 = vpop.f32.mrf.mxu0
    %v2311 = vadd.f32 %v2297, %v2310
    %v2312 = vpop.f32.mrf.mxu0
    %v2313 = vadd.f32 %v2299, %v2312
    %2314 = vdwg.mxu0
    %2315 = vmatpush.bf16.msra.mxu0 %v1685
    %2316 = vmatpush.bf16.msra.mxu0 %v1677
    %2317 = vmatpush.bf16.msra.mxu0 %v1669
    %2318 = vmatpush.bf16.msra.mxu0 %v1661
    %2319 = vmatpush.bf16.msra.mxu0 %v1653
    %2320 = vmatpush.bf16.msra.mxu0 %v1645
    %2321 = vmatpush.bf16.msra.mxu0 %v1637
    %2322 = vmatpush.bf16.msra.mxu0 %v1629
    %2323 = vmatmul.bf16.gmra.mxu0 %v214
    %v2324 = vpop.f32.mrf.mxu0
    %v2325 = vadd.f32 %v2311, %v2324
    %v2326 = vpop.f32.mrf.mxu0
    %v2327 = vadd.f32 %v2313, %v2326
    %2328 = vdwg.mxu0
    %2329 = vmatpush.bf16.msra.mxu0 0
    %2330 = vmatpush.bf16.msra.mxu0 0
    %2331 = vmatpush.bf16.msra.mxu0 %v2049
    %2332 = vmatpush.bf16.msra.mxu0 %v1725
    %2333 = vmatpush.bf16.msra.mxu0 %v1717
    %2334 = vmatpush.bf16.msra.mxu0 %v1709
    %2335 = vmatpush.bf16.msra.mxu0 %v1701
    %2336 = vmatpush.bf16.msra.mxu0 %v1693
    %2337 = vmatmul.bf16.gmra.mxu0 %v2036
    %v2338 = vpop.f32.mrf.mxu0
    %v2339 = vadd.f32 %v2325, %v2338
    %v2340 = vpop.f32.mrf.mxu0
    %v2341 = vadd.f32 %v2327, %v2340
    %2342 = vdwg.mxu0
    %2343 = vmatpush.bf16.msra.mxu0 %v1494
    %2344 = vmatpush.bf16.msra.mxu0 %v1486
    %2345 = vmatpush.bf16.msra.mxu0 %v1478
    %2346 = vmatpush.bf16.msra.mxu0 %v1470
    %2347 = vmatpush.bf16.msra.mxu0 %v1462
    %2348 = vmatpush.bf16.msra.mxu0 %v1454
    %2349 = vmatpush.bf16.msra.mxu0 %v1446
    %2350 = vmatpush.bf16.msra.mxu0 %v1438
    %2351 = vmatmul.bf16.gmra.mxu0 %v211
    %v2352 = vpop.f32.mrf.mxu0
    %v2353 = vadd.f32 %v522, %v2352
    %v2354 = vpop.f32.mrf.mxu0
    %v2355 = vadd.f32 %v522, %v2354
    %2356 = vdwg.mxu0
    %2357 = vmatpush.bf16.msra.mxu0 %v1558
    %2358 = vmatpush.bf16.msra.mxu0 %v1550
    %2359 = vmatpush.bf16.msra.mxu0 %v1542
    %2360 = vmatpush.bf16.msra.mxu0 %v1534
    %2361 = vmatpush.bf16.msra.mxu0 %v1526
    %2362 = vmatpush.bf16.msra.mxu0 %v1518
    %2363 = vmatpush.bf16.msra.mxu0 %v1510
    %2364 = vmatpush.bf16.msra.mxu0 %v1502
    %2365 = vmatmul.bf16.gmra.mxu0 %v212
    %v2366 = vpop.f32.mrf.mxu0
    %v2367 = vadd.f32 %v2353, %v2366
    %v2368 = vpop.f32.mrf.mxu0
    %v2369 = vadd.f32 %v2355, %v2368
    %2370 = vdwg.mxu0
    %2371 = vmatpush.bf16.msra.mxu0 %v1622
    %2372 = vmatpush.bf16.msra.mxu0 %v1614
    %2373 = vmatpush.bf16.msra.mxu0 %v1606
    %2374 = vmatpush.bf16.msra.mxu0 %v1598
    %2375 = vmatpush.bf16.msra.mxu0 %v1590
    %2376 = vmatpush.bf16.msra.mxu0 %v1582
    %2377 = vmatpush.bf16.msra.mxu0 %v1574
    %2378 = vmatpush.bf16.msra.mxu0 %v1566
    %2379 = vmatmul.bf16.gmra.mxu0 %v213
    %v2380 = vpop.f32.mrf.mxu0
    %v2381 = vadd.f32 %v2367, %v2380
    %v2382 = vpop.f32.mrf.mxu0
    %v2383 = vadd.f32 %v2369, %v2382
    %2384 = vdwg.mxu0
    %2385 = vmatpush.bf16.msra.mxu0 %v1686
    %2386 = vmatpush.bf16.msra.mxu0 %v1678
    %2387 = vmatpush.bf16.msra.mxu0 %v1670
    %2388 = vmatpush.bf16.msra.mxu0 %v1662
    %2389 = vmatpush.bf16.msra.mxu0 %v1654
    %2390 = vmatpush.bf16.msra.mxu0 %v1646
    %2391 = vmatpush.bf16.msra.mxu0 %v1638
    %2392 = vmatpush.bf16.msra.mxu0 %v1630
    %2393 = vmatmul.bf16.gmra.mxu0 %v214
    %v2394 = vpop.f32.mrf.mxu0
    %v2395 = vadd.f32 %v2381, %v2394
    %v2396 = vpop.f32.mrf.mxu0
    %v2397 = vadd.f32 %v2383, %v2396
    %2398 = vdwg.mxu0
    %2399 = vmatpush.bf16.msra.mxu0 0
    %2400 = vmatpush.bf16.msra.mxu0 0
    %2401 = vmatpush.bf16.msra.mxu0 %v2052
    %2402 = vmatpush.bf16.msra.mxu0 %v1726
    %2403 = vmatpush.bf16.msra.mxu0 %v1718
    %2404 = vmatpush.bf16.msra.mxu0 %v1710
    %2405 = vmatpush.bf16.msra.mxu0 %v1702
    %2406 = vmatpush.bf16.msra.mxu0 %v1694
    %2407 = vmatmul.bf16.gmra.mxu0 %v2036
    %v2408 = vpop.f32.mrf.mxu0
    %v2409 = vadd.f32 %v2395, %v2408
    %v2410 = vpop.f32.mrf.mxu0
    %v2411 = vadd.f32 %v2397, %v2410
    %2412 = vdwg.mxu0
    %2413 = vmatpush.bf16.msra.mxu0 %v1495
    %2414 = vmatpush.bf16.msra.mxu0 %v1487
    %2415 = vmatpush.bf16.msra.mxu0 %v1479
    %2416 = vmatpush.bf16.msra.mxu0 %v1471
    %2417 = vmatpush.bf16.msra.mxu0 %v1463
    %2418 = vmatpush.bf16.msra.mxu0 %v1455
    %2419 = vmatpush.bf16.msra.mxu0 %v1447
    %2420 = vmatpush.bf16.msra.mxu0 %v1439
    %2421 = vmatmul.bf16.gmra.mxu0 %v211
    %v2422 = vpop.f32.mrf.mxu0
    %v2423 = vadd.f32 %v523, %v2422
    %v2424 = vpop.f32.mrf.mxu0
    %v2425 = vadd.f32 %v523, %v2424
    %2426 = vdwg.mxu0
    %2427 = vmatpush.bf16.msra.mxu0 %v1559
    %2428 = vmatpush.bf16.msra.mxu0 %v1551
    %2429 = vmatpush.bf16.msra.mxu0 %v1543
    %2430 = vmatpush.bf16.msra.mxu0 %v1535
    %2431 = vmatpush.bf16.msra.mxu0 %v1527
    %2432 = vmatpush.bf16.msra.mxu0 %v1519
    %2433 = vmatpush.bf16.msra.mxu0 %v1511
    %2434 = vmatpush.bf16.msra.mxu0 %v1503
    %2435 = vmatmul.bf16.gmra.mxu0 %v212
    %v2436 = vpop.f32.mrf.mxu0
    %v2437 = vadd.f32 %v2423, %v2436
    %v2438 = vpop.f32.mrf.mxu0
    %v2439 = vadd.f32 %v2425, %v2438
    %2440 = vdwg.mxu0
    %2441 = vmatpush.bf16.msra.mxu0 %v1623
    %2442 = vmatpush.bf16.msra.mxu0 %v1615
    %2443 = vmatpush.bf16.msra.mxu0 %v1607
    %2444 = vmatpush.bf16.msra.mxu0 %v1599
    %2445 = vmatpush.bf16.msra.mxu0 %v1591
    %2446 = vmatpush.bf16.msra.mxu0 %v1583
    %2447 = vmatpush.bf16.msra.mxu0 %v1575
    %2448 = vmatpush.bf16.msra.mxu0 %v1567
    %2449 = vmatmul.bf16.gmra.mxu0 %v213
    %v2450 = vpop.f32.mrf.mxu0
    %v2451 = vadd.f32 %v2437, %v2450
    %v2452 = vpop.f32.mrf.mxu0
    %v2453 = vadd.f32 %v2439, %v2452
    %2454 = vdwg.mxu0
    %2455 = vmatpush.bf16.msra.mxu0 %v1687
    %2456 = vmatpush.bf16.msra.mxu0 %v1679
    %2457 = vmatpush.bf16.msra.mxu0 %v1671
    %2458 = vmatpush.bf16.msra.mxu0 %v1663
    %2459 = vmatpush.bf16.msra.mxu0 %v1655
    %2460 = vmatpush.bf16.msra.mxu0 %v1647
    %2461 = vmatpush.bf16.msra.mxu0 %v1639
    %2462 = vmatpush.bf16.msra.mxu0 %v1631
    %2463 = vmatmul.bf16.gmra.mxu0 %v214
    %v2464 = vpop.f32.mrf.mxu0
    %v2465 = vadd.f32 %v2451, %v2464
    %v2466 = vpop.f32.mrf.mxu0
    %v2467 = vadd.f32 %v2453, %v2466
    %2468 = vdwg.mxu0
    %2469 = vmatpush.bf16.msra.mxu0 0
    %2470 = vmatpush.bf16.msra.mxu0 0
    %2471 = vmatpush.bf16.msra.mxu0 %v2055
    %2472 = vmatpush.bf16.msra.mxu0 %v1727
    %2473 = vmatpush.bf16.msra.mxu0 %v1719
    %2474 = vmatpush.bf16.msra.mxu0 %v1711
    %2475 = vmatpush.bf16.msra.mxu0 %v1703
    %2476 = vmatpush.bf16.msra.mxu0 %v1695
    %2477 = vmatmul.bf16.gmra.mxu0 %v2036
    %v2478 = vpop.f32.mrf.mxu0
    %v2479 = vadd.f32 %v2465, %v2478
    %v2480 = vpop.f32.mrf.mxu0
    %v2481 = vadd.f32 %v2467, %v2480
    %2482 = vdwg.mxu0
    %2483 = vmatpush.bf16.msra.mxu0 %v1496
    %2484 = vmatpush.bf16.msra.mxu0 %v1488
    %2485 = vmatpush.bf16.msra.mxu0 %v1480
    %2486 = vmatpush.bf16.msra.mxu0 %v1472
    %2487 = vmatpush.bf16.msra.mxu0 %v1464
    %2488 = vmatpush.bf16.msra.mxu0 %v1456
    %2489 = vmatpush.bf16.msra.mxu0 %v1448
    %2490 = vmatpush.bf16.msra.mxu0 %v1440
    %2491 = vmatmul.bf16.gmra.mxu0 %v211
    %v2492 = vpop.f32.mrf.mxu0
    %v2493 = vadd.f32 %v524, %v2492
    %v2494 = vpop.f32.mrf.mxu0
    %v2495 = vadd.f32 %v524, %v2494
    %2496 = vdwg.mxu0
    %2497 = vmatpush.bf16.msra.mxu0 %v1560
    %2498 = vmatpush.bf16.msra.mxu0 %v1552
    %2499 = vmatpush.bf16.msra.mxu0 %v1544
    %2500 = vmatpush.bf16.msra.mxu0 %v1536
    %2501 = vmatpush.bf16.msra.mxu0 %v1528
    %2502 = vmatpush.bf16.msra.mxu0 %v1520
    %2503 = vmatpush.bf16.msra.mxu0 %v1512
    %2504 = vmatpush.bf16.msra.mxu0 %v1504
    %2505 = vmatmul.bf16.gmra.mxu0 %v212
    %v2506 = vpop.f32.mrf.mxu0
    %v2507 = vadd.f32 %v2493, %v2506
    %v2508 = vpop.f32.mrf.mxu0
    %v2509 = vadd.f32 %v2495, %v2508
    %2510 = vdwg.mxu0
    %2511 = vmatpush.bf16.msra.mxu0 %v1624
    %2512 = vmatpush.bf16.msra.mxu0 %v1616
    %2513 = vmatpush.bf16.msra.mxu0 %v1608
    %2514 = vmatpush.bf16.msra.mxu0 %v1600
    %2515 = vmatpush.bf16.msra.mxu0 %v1592
    %2516 = vmatpush.bf16.msra.mxu0 %v1584
    %2517 = vmatpush.bf16.msra.mxu0 %v1576
    %2518 = vmatpush.bf16.msra.mxu0 %v1568
    %2519 = vmatmul.bf16.gmra.mxu0 %v213
    %v2520 = vpop.f32.mrf.mxu0
    %v2521 = vadd.f32 %v2507, %v2520
    %v2522 = vpop.f32.mrf.mxu0
    %v2523 = vadd.f32 %v2509, %v2522
    %2524 = vdwg.mxu0
    %2525 = vmatpush.bf16.msra.mxu0 %v1688
    %2526 = vmatpush.bf16.msra.mxu0 %v1680
    %2527 = vmatpush.bf16.msra.mxu0 %v1672
    %2528 = vmatpush.bf16.msra.mxu0 %v1664
    %2529 = vmatpush.bf16.msra.mxu0 %v1656
    %2530 = vmatpush.bf16.msra.mxu0 %v1648
    %2531 = vmatpush.bf16.msra.mxu0 %v1640
    %2532 = vmatpush.bf16.msra.mxu0 %v1632
    %2533 = vmatmul.bf16.gmra.mxu0 %v214
    %v2534 = vpop.f32.mrf.mxu0
    %v2535 = vadd.f32 %v2521, %v2534
    %v2536 = vpop.f32.mrf.mxu0
    %v2537 = vadd.f32 %v2523, %v2536
    %2538 = vdwg.mxu0
    %2539 = vmatpush.bf16.msra.mxu0 0
    %2540 = vmatpush.bf16.msra.mxu0 0
    %2541 = vmatpush.bf16.msra.mxu0 %v2058
    %2542 = vmatpush.bf16.msra.mxu0 %v1728
    %2543 = vmatpush.bf16.msra.mxu0 %v1720
    %2544 = vmatpush.bf16.msra.mxu0 %v1712
    %2545 = vmatpush.bf16.msra.mxu0 %v1704
    %2546 = vmatpush.bf16.msra.mxu0 %v1696
    %2547 = vmatmul.bf16.gmra.mxu0 %v2036
    %v2548 = vpop.f32.mrf.mxu0
    %v2549 = vadd.f32 %v2535, %v2548
    %v2550 = vpop.f32.mrf.mxu0
    %v2551 = vadd.f32 %v2537, %v2550
    %2552 = vdwg.mxu0
    %2553 = vmatpush.bf16.msra.mxu0 %v1497
    %2554 = vmatpush.bf16.msra.mxu0 %v1489
    %2555 = vmatpush.bf16.msra.mxu0 %v1481
    %2556 = vmatpush.bf16.msra.mxu0 %v1473
    %2557 = vmatpush.bf16.msra.mxu0 %v1465
    %2558 = vmatpush.bf16.msra.mxu0 %v1457
    %2559 = vmatpush.bf16.msra.mxu0 %v1449
    %2560 = vmatpush.bf16.msra.mxu0 %v1441
    %2561 = vmatmul.bf16.gmra.mxu0 %v211
    %v2562 = vpop.f32.mrf.mxu0
    %v2563 = vadd.f32 %v525, %v2562
    %v2564 = vpop.f32.mrf.mxu0
    %v2565 = vadd.f32 %v525, %v2564
    %2566 = vdwg.mxu0
    %2567 = vmatpush.bf16.msra.mxu0 %v1561
    %2568 = vmatpush.bf16.msra.mxu0 %v1553
    %2569 = vmatpush.bf16.msra.mxu0 %v1545
    %2570 = vmatpush.bf16.msra.mxu0 %v1537
    %2571 = vmatpush.bf16.msra.mxu0 %v1529
    %2572 = vmatpush.bf16.msra.mxu0 %v1521
    %2573 = vmatpush.bf16.msra.mxu0 %v1513
    %2574 = vmatpush.bf16.msra.mxu0 %v1505
    %2575 = vmatmul.bf16.gmra.mxu0 %v212
    %v2576 = vpop.f32.mrf.mxu0
    %v2577 = vadd.f32 %v2563, %v2576
    %v2578 = vpop.f32.mrf.mxu0
    %v2579 = vadd.f32 %v2565, %v2578
    %2580 = vdwg.mxu0
    %2581 = vmatpush.bf16.msra.mxu0 %v1625
    %2582 = vmatpush.bf16.msra.mxu0 %v1617
    %2583 = vmatpush.bf16.msra.mxu0 %v1609
    %2584 = vmatpush.bf16.msra.mxu0 %v1601
    %2585 = vmatpush.bf16.msra.mxu0 %v1593
    %2586 = vmatpush.bf16.msra.mxu0 %v1585
    %2587 = vmatpush.bf16.msra.mxu0 %v1577
    %2588 = vmatpush.bf16.msra.mxu0 %v1569
    %2589 = vmatmul.bf16.gmra.mxu0 %v213
    %v2590 = vpop.f32.mrf.mxu0
    %v2591 = vadd.f32 %v2577, %v2590
    %v2592 = vpop.f32.mrf.mxu0
    %v2593 = vadd.f32 %v2579, %v2592
    %2594 = vdwg.mxu0
    %2595 = vmatpush.bf16.msra.mxu0 %v1689
    %2596 = vmatpush.bf16.msra.mxu0 %v1681
    %2597 = vmatpush.bf16.msra.mxu0 %v1673
    %2598 = vmatpush.bf16.msra.mxu0 %v1665
    %2599 = vmatpush.bf16.msra.mxu0 %v1657
    %2600 = vmatpush.bf16.msra.mxu0 %v1649
    %2601 = vmatpush.bf16.msra.mxu0 %v1641
    %2602 = vmatpush.bf16.msra.mxu0 %v1633
    %2603 = vmatmul.bf16.gmra.mxu0 %v214
    %v2604 = vpop.f32.mrf.mxu0
    %v2605 = vadd.f32 %v2591, %v2604
    %v2606 = vpop.f32.mrf.mxu0
    %v2607 = vadd.f32 %v2593, %v2606
    %2608 = vdwg.mxu0
    %2609 = vmatpush.bf16.msra.mxu0 0
    %2610 = vmatpush.bf16.msra.mxu0 0
    %2611 = vmatpush.bf16.msra.mxu0 %v2061
    %2612 = vmatpush.bf16.msra.mxu0 %v1729
    %2613 = vmatpush.bf16.msra.mxu0 %v1721
    %2614 = vmatpush.bf16.msra.mxu0 %v1713
    %2615 = vmatpush.bf16.msra.mxu0 %v1705
    %2616 = vmatpush.bf16.msra.mxu0 %v1697
    %2617 = vmatmul.bf16.gmra.mxu0 %v2036
    %v2618 = vpop.f32.mrf.mxu0
    %v2619 = vadd.f32 %v2605, %v2618
    %v2620 = vpop.f32.mrf.mxu0
    %v2621 = vadd.f32 %v2607, %v2620
    %2622 = vdwg.mxu0
    %v2623 = vtanh.pop %v2129
    %v2624 = vtanh.pop %v2199
    %v2625 = vtanh.pop %v2269
    %v2626 = vtanh.pop %v2339
    %v2627 = vtanh.pop %v2409
    %v2628 = vtanh.pop %v2479
    %v2629 = vtanh.pop %v2549
    %v2630 = vtanh.pop %v2619
    %v2631 = vtanh.pop %v2131
    %v2632 = vtanh.pop %v2201
    %v2633 = vtanh.pop %v2271
    %v2634 = vtanh.pop %v2341
    %v2635 = vtanh.pop %v2411
    %v2636 = vtanh.pop %v2481
    %v2637 = vtanh.pop %v2551
    %v2638 = vtanh.pop %v2621
    %v2639 = vpack.c.bf16 %v2631, %v2623
    %v2640 = vpack.c.bf16 %v2632, %v2624
    %v2641 = vpack.c.bf16 %v2633, %v2625
    %v2642 = vpack.c.bf16 %v2634, %v2626
    %v2643 = vpack.c.bf16 %v2635, %v2627
    %v2644 = vpack.c.bf16 %v2636, %v2628
    %v2645 = vpack.c.bf16 %v2637, %v2629
    %v2646 = vpack.c.bf16 %v2638, %v2630
    %v2647 = vld [vmem:[#allocation8] sm:$0xff]
    %v2648 = vld [vmem:[#allocation8 + $0x8] sm:$0xff]
    %v2649 = vld [vmem:[#allocation8 + $0x10] sm:$0xff]
    %v2650 = vld [vmem:[#allocation8 + $0x18] sm:$0xff]
    %v2651 = vld [vmem:[#allocation8 + $0x20] sm:$0xff]
    %v2652 = vld [vmem:[#allocation8 + $0x28] sm:$0xff]
    %v2653 = vld [vmem:[#allocation8 + $0x30] sm:$0xff]
    %v2654 = vld [vmem:[#allocation8 + $0x38] sm:$0xff]
    %v2655 = vld [vmem:[#allocation8 + $0x40] sm:$0xff]
    %v2656 = vld [vmem:[#allocation8 + $0x48] sm:$0xff]
    %v2657 = vld [vmem:[#allocation8 + $0x50] sm:$0xff]
    %v2658 = vld [vmem:[#allocation8 + $0x58] sm:$0xff]
    %v2659 = vld [vmem:[#allocation8 + $0x60] sm:$0xff]
    %v2660 = vld [vmem:[#allocation8 + $0x68] sm:$0xff]
    %v2661 = vld [vmem:[#allocation8 + $0x70] sm:$0xff]
    %v2662 = vld [vmem:[#allocation8 + $0x78] sm:$0xff]
    %v2663 = vld [vmem:[#allocation8 + $0x80] sm:$0xff]
    %v2664 = vld [vmem:[#allocation8 + $0x88] sm:$0xff]
    %v2665 = vld [vmem:[#allocation8 + $0x90] sm:$0xff]
    %v2666 = vld [vmem:[#allocation8 + $0x98] sm:$0xff]
    %v2667 = vld [vmem:[#allocation8 + $0xa0] sm:$0xff]
    %v2668 = vld [vmem:[#allocation8 + $0xa8] sm:$0xff]
    %v2669 = vld [vmem:[#allocation8 + $0xb0] sm:$0xff]
    %v2670 = vld [vmem:[#allocation8 + $0xb8] sm:$0xff]
    %v2671 = vld [vmem:[#allocation8 + $0xc0] sm:$0xff]
    %v2672 = vld [vmem:[#allocation8 + $0xc8] sm:$0xff]
    %v2673 = vld [vmem:[#allocation8 + $0xd0] sm:$0xff]
    %v2674 = vld [vmem:[#allocation8 + $0xd8] sm:$0xff]
    %v2675 = vld [vmem:[#allocation8 + $0xe0] sm:$0xff]
    %v2676 = vld [vmem:[#allocation8 + $0xe8] sm:$0xff]
    %v2677 = vld [vmem:[#allocation8 + $0xf0] sm:$0xff]
    %v2678 = vld [vmem:[#allocation8 + $0xf8] sm:$0xff]
    %v2679 = vld [vmem:[#allocation8 + $0x100] sm:$0xff]
    %v2680 = vld [vmem:[#allocation8 + $0x108] sm:$0xff]
    %v2681 = vld [vmem:[#allocation8 + $0x110] sm:$0xff]
    %v2682 = vld [vmem:[#allocation8 + $0x118] sm:$0xff]
    %v2683 = vld [vmem:[#allocation8 + $0x120] sm:$0xff]
    %v2684 = vld [vmem:[#allocation8 + $0x128] sm:$0xff]
    %v2685 = vld [vmem:[#allocation8 + $0x130] sm:$0xff]
    %v2686 = vld [vmem:[#allocation8 + $0x138] sm:$0xff]
    %v2687 = vld [vmem:[#allocation8 + $0x140] sm:$0xff]
    %v2688 = vld [vmem:[#allocation8 + $0x148] sm:$0xff]
    %v2689 = vld [vmem:[#allocation8 + $0x150] sm:$0xff]
    %v2690 = vld [vmem:[#allocation8 + $0x158] sm:$0xff]
    %v2691 = vld [vmem:[#allocation8 + $0x160] sm:$0xff]
    %v2692 = vld [vmem:[#allocation8 + $0x168] sm:$0xff]
    %v2693 = vld [vmem:[#allocation8 + $0x170] sm:$0xff]
    %v2694 = vld [vmem:[#allocation8 + $0x178] sm:$0xff]
    %v2695 = vld [vmem:[#allocation8 + $0x180] sm:$0xff]
    %v2696 = vld [vmem:[#allocation8 + $0x188] sm:$0xff]
    %v2697 = vld [vmem:[#allocation8 + $0x190] sm:$0xff]
    %v2698 = vld [vmem:[#allocation8 + $0x198] sm:$0xff]
    %v2699 = vld [vmem:[#allocation8 + $0x1a0] sm:$0xff]
    %v2700 = vld [vmem:[#allocation8 + $0x1a8] sm:$0xff]
    %v2701 = vld [vmem:[#allocation8 + $0x1b0] sm:$0xff]
    %v2702 = vld [vmem:[#allocation8 + $0x1b8] sm:$0xff]
    %v2703 = vld [vmem:[#allocation8 + $0x1c0] sm:$0xff]
    %v2704 = vld [vmem:[#allocation8 + $0x1c8] sm:$0xff]
    %v2705 = vld [vmem:[#allocation8 + $0x1d0] sm:$0xff]
    %v2706 = vld [vmem:[#allocation8 + $0x1d8] sm:$0xff]
    %v2707 = vld [vmem:[#allocation8 + $0x1e0] sm:$0xff]
    %v2708 = vld [vmem:[#allocation8 + $0x1e8] sm:$0xff]
    %v2709 = vld [vmem:[#allocation8 + $0x1f0] sm:$0xff]
    %v2710 = vld [vmem:[#allocation8 + $0x1f8] sm:$0xff]
    %v2711 = vld [vmem:[#allocation8 + $0x200] sm:$0xff]
    %v2712 = vld [vmem:[#allocation8 + $0x208] sm:$0xff]
    %v2713 = vld [vmem:[#allocation8 + $0x210] sm:$0xff]
    %v2714 = vld [vmem:[#allocation8 + $0x218] sm:$0xff]
    %v2715 = vld [vmem:[#allocation8 + $0x220] sm:$0xff]
    %v2716 = vld [vmem:[#allocation8 + $0x228] sm:$0xff]
    %v2717 = vld [vmem:[#allocation8 + $0x230] sm:$0xff]
    %v2718 = vld [vmem:[#allocation8 + $0x238] sm:$0xff]
    %v2719 = vld [vmem:[#allocation8 + $0x240] sm:$0xff]
    %v2720 = vld [vmem:[#allocation8 + $0x248] sm:$0xff]
    %v2721 = vld [vmem:[#allocation8 + $0x250] sm:$0xff]
    %v2722 = vld [vmem:[#allocation8 + $0x258] sm:$0xff]
    %v2723 = vld [vmem:[#allocation8 + $0x260] sm:$0xff]
    %v2724 = vld [vmem:[#allocation8 + $0x268] sm:$0xff]
    %v2725 = vld [vmem:[#allocation8 + $0x270] sm:$0xff]
    %v2726 = vld [vmem:[#allocation8 + $0x278] sm:$0xff]
    %v2727 = vld [vmem:[#allocation8 + $0x280] sm:$0xff]
    %v2728 = vld [vmem:[#allocation8 + $0x288] sm:$0xff]
    %v2729 = vld [vmem:[#allocation8 + $0x290] sm:$0xff]
    %v2730 = vld [vmem:[#allocation8 + $0x298] sm:$0xff]
    %v2731 = vld [vmem:[#allocation8 + $0x2a0] sm:$0xff]
    %v2732 = vld [vmem:[#allocation8 + $0x2a8] sm:$0xff]
    %v2733 = vld [vmem:[#allocation8 + $0x2b0] sm:$0xff]
    %v2734 = vld [vmem:[#allocation8 + $0x2b8] sm:$0xff]
    %v2735 = vld [vmem:[#allocation8 + $0x2c0] sm:$0xff]
    %v2736 = vld [vmem:[#allocation8 + $0x2c8] sm:$0xff]
    %v2737 = vld [vmem:[#allocation8 + $0x2d0] sm:$0xff]
    %v2738 = vld [vmem:[#allocation8 + $0x2d8] sm:$0xff]
    %v2739 = vld [vmem:[#allocation8 + $0x2e0] sm:$0xff]
    %v2740 = vld [vmem:[#allocation8 + $0x2e8] sm:$0xff]
    %v2741 = vld [vmem:[#allocation8 + $0x2f0] sm:$0xff]
    %v2742 = vld [vmem:[#allocation8 + $0x2f8] sm:$0xff]
    %v2743 = vld [vmem:[#allocation8 + $0x300] sm:$0xff]
    %v2744 = vld [vmem:[#allocation8 + $0x308] sm:$0xff]
    %v2745 = vld [vmem:[#allocation8 + $0x310] sm:$0xff]
    %v2746 = vld [vmem:[#allocation8 + $0x318] sm:$0xff]
    %v2747 = vld [vmem:[#allocation8 + $0x320] sm:$0xff]
    %v2748 = vld [vmem:[#allocation8 + $0x328] sm:$0xff]
    %v2749 = vld [vmem:[#allocation8 + $0x330] sm:$0xff]
    %v2750 = vld [vmem:[#allocation8 + $0x338] sm:$0xff]
    %v2751 = vld [vmem:[#allocation8 + $0x340] sm:$0xff]
    %v2752 = vld [vmem:[#allocation8 + $0x348] sm:$0xff]
    %v2753 = vld [vmem:[#allocation8 + $0x350] sm:$0xff]
    %v2754 = vld [vmem:[#allocation8 + $0x358] sm:$0xff]
    %v2755 = vld [vmem:[#allocation8 + $0x360] sm:$0xff]
    %v2756 = vld [vmem:[#allocation8 + $0x368] sm:$0xff]
    %v2757 = vld [vmem:[#allocation8 + $0x370] sm:$0xff]
    %v2758 = vld [vmem:[#allocation8 + $0x378] sm:$0xff]
    %v2759 = vld [vmem:[#allocation8 + $0x380] sm:$0xff]
    %v2760 = vld [vmem:[#allocation8 + $0x388] sm:$0xff]
    %v2761 = vld [vmem:[#allocation8 + $0x390] sm:$0xff]
    %v2762 = vld [vmem:[#allocation8 + $0x398] sm:$0xff]
    %v2763 = vld [vmem:[#allocation8 + $0x3a0] sm:$0xff]
    %v2764 = vld [vmem:[#allocation8 + $0x3a8] sm:$0xff]
    %v2765 = vld [vmem:[#allocation8 + $0x3b0] sm:$0xff]
    %v2766 = vld [vmem:[#allocation8 + $0x3b8] sm:$0xff]
    %v2767 = vld [vmem:[#allocation8 + $0x3c0] sm:$0xff]
    %v2768 = vld [vmem:[#allocation8 + $0x3c8] sm:$0xff]
    %v2769 = vld [vmem:[#allocation8 + $0x3d0] sm:$0xff]
    %v2770 = vld [vmem:[#allocation8 + $0x3d8] sm:$0xff]
    %v2771 = vld [vmem:[#allocation8 + $0x3e0] sm:$0xff]
    %v2772 = vld [vmem:[#allocation8 + $0x3e8] sm:$0xff]
    %v2773 = vld [vmem:[#allocation8 + $0x3f0] sm:$0xff]
    %v2774 = vld [vmem:[#allocation8 + $0x3f8] sm:$0xff]
    %v2775 = vld [vmem:[#allocation8 + $0x400] sm:$0xff]
    %v2776 = vld [vmem:[#allocation8 + $0x408] sm:$0xff]
    %v2777 = vld [vmem:[#allocation8 + $0x410] sm:$0xff]
    %v2778 = vld [vmem:[#allocation8 + $0x418] sm:$0xff]
    %v2779 = vld [vmem:[#allocation8 + $0x420] sm:$0xff]
    %v2780 = vld [vmem:[#allocation8 + $0x428] sm:$0xff]
    %v2781 = vld [vmem:[#allocation8 + $0x430] sm:$0xff]
    %v2782 = vld [vmem:[#allocation8 + $0x438] sm:$0xff]
    %v2783 = vld [vmem:[#allocation8 + $0x440] sm:$0xff]
    %v2784 = vld [vmem:[#allocation8 + $0x448] sm:$0xff]
    %v2785 = vld [vmem:[#allocation8 + $0x450] sm:$0xff]
    %v2786 = vld [vmem:[#allocation8 + $0x458] sm:$0xff]
    %v2787 = vld [vmem:[#allocation8 + $0x460] sm:$0xff]
    %v2788 = vld [vmem:[#allocation8 + $0x468] sm:$0xff]
    %v2789 = vld [vmem:[#allocation8 + $0x470] sm:$0xff]
    %v2790 = vld [vmem:[#allocation8 + $0x478] sm:$0xff]
    %v2791 = vld [vmem:[#allocation8 + $0x480] sm:$0xff]
    %v2792 = vld [vmem:[#allocation8 + $0x488] sm:$0xff]
    %v2793 = vld [vmem:[#allocation8 + $0x490] sm:$0xff]
    %v2794 = vld [vmem:[#allocation8 + $0x498] sm:$0xff]
    %v2795 = vld [vmem:[#allocation8 + $0x4a0] sm:$0xff]
    %v2796 = vld [vmem:[#allocation8 + $0x4a8] sm:$0xff]
    %v2797 = vld [vmem:[#allocation8 + $0x4b0] sm:$0xff]
    %v2798 = vld [vmem:[#allocation8 + $0x4b8] sm:$0xff]
    %v2799 = vld [vmem:[#allocation8 + $0x4c0] sm:$0xff]
    %v2800 = vld [vmem:[#allocation8 + $0x4c8] sm:$0xff]
    %v2801 = vld [vmem:[#allocation8 + $0x4d0] sm:$0xff]
    %v2802 = vld [vmem:[#allocation8 + $0x4d8] sm:$0xff]
    %v2803 = vld [vmem:[#allocation8 + $0x4e0] sm:$0xff]
    %v2804 = vld [vmem:[#allocation8 + $0x4e8] sm:$0xff]
    %v2805 = vld [vmem:[#allocation8 + $0x4f0] sm:$0xff]
    %v2806 = vld [vmem:[#allocation8 + $0x4f8] sm:$0xff]
    %v2807 = vld [vmem:[#allocation8 + $0x500] sm:$0xff]
    %v2808 = vld [vmem:[#allocation8 + $0x508] sm:$0xff]
    %v2809 = vld [vmem:[#allocation8 + $0x510] sm:$0xff]
    %v2810 = vld [vmem:[#allocation8 + $0x518] sm:$0xff]
    %v2811 = vld [vmem:[#allocation8 + $0x520] sm:$0xff]
    %v2812 = vld [vmem:[#allocation8 + $0x528] sm:$0xff]
    %v2813 = vld [vmem:[#allocation8 + $0x530] sm:$0xff]
    %v2814 = vld [vmem:[#allocation8 + $0x538] sm:$0xff]
    %v2815 = vld [vmem:[#allocation8 + $0x540] sm:$0xff]
    %v2816 = vld [vmem:[#allocation8 + $0x548] sm:$0xff]
    %v2817 = vld [vmem:[#allocation8 + $0x550] sm:$0xff]
    %v2818 = vld [vmem:[#allocation8 + $0x558] sm:$0xff]
    %v2819 = vld [vmem:[#allocation8 + $0x560] sm:$0xff]
    %v2820 = vld [vmem:[#allocation8 + $0x568] sm:$0xff]
    %v2821 = vld [vmem:[#allocation8 + $0x570] sm:$0xff]
    %v2822 = vld [vmem:[#allocation8 + $0x578] sm:$0xff]
    %v2823 = vld [vmem:[#allocation8 + $0x580] sm:$0xff]
    %v2824 = vld [vmem:[#allocation8 + $0x588] sm:$0xff]
    %v2825 = vld [vmem:[#allocation8 + $0x590] sm:$0xff]
    %v2826 = vld [vmem:[#allocation8 + $0x598] sm:$0xff]
    %v2827 = vld [vmem:[#allocation8 + $0x5a0] sm:$0xff]
    %v2828 = vld [vmem:[#allocation8 + $0x5a8] sm:$0xff]
    %v2829 = vld [vmem:[#allocation8 + $0x5b0] sm:$0xff]
    %v2830 = vld [vmem:[#allocation8 + $0x5b8] sm:$0xff]
    %v2831 = vld [vmem:[#allocation8 + $0x5c0] sm:$0xff]
    %v2832 = vld [vmem:[#allocation8 + $0x5c8] sm:$0xff]
    %v2833 = vld [vmem:[#allocation8 + $0x5d0] sm:$0xff]
    %v2834 = vld [vmem:[#allocation8 + $0x5d8] sm:$0xff]
    %v2835 = vld [vmem:[#allocation8 + $0x5e0] sm:$0xff]
    %v2836 = vld [vmem:[#allocation8 + $0x5e8] sm:$0xff]
    %v2837 = vld [vmem:[#allocation8 + $0x5f0] sm:$0xff]
    %v2838 = vld [vmem:[#allocation8 + $0x5f8] sm:$0xff]
    %v2839 = vld [vmem:[#allocation8 + $0x600] sm:$0xff]
    %v2840 = vld [vmem:[#allocation8 + $0x608] sm:$0xff]
    %v2841 = vld [vmem:[#allocation8 + $0x610] sm:$0xff]
    %v2842 = vld [vmem:[#allocation8 + $0x618] sm:$0xff]
    %v2843 = vld [vmem:[#allocation8 + $0x620] sm:$0xff]
    %v2844 = vld [vmem:[#allocation8 + $0x628] sm:$0xff]
    %v2845 = vld [vmem:[#allocation8 + $0x630] sm:$0xff]
    %v2846 = vld [vmem:[#allocation8 + $0x638] sm:$0xff]
    %v2847 = vld [vmem:[#allocation8 + $0x640] sm:$0xff]
    %v2848 = vld [vmem:[#allocation8 + $0x648] sm:$0xff]
    %v2849 = vld [vmem:[#allocation8 + $0x650] sm:$0xff]
    %v2850 = vld [vmem:[#allocation8 + $0x658] sm:$0xff]
    %v2851 = vld [vmem:[#allocation8 + $0x660] sm:$0xff]
    %v2852 = vld [vmem:[#allocation8 + $0x668] sm:$0xff]
    %v2853 = vld [vmem:[#allocation8 + $0x670] sm:$0xff]
    %v2854 = vld [vmem:[#allocation8 + $0x678] sm:$0xff]
    %v2855 = vld [vmem:[#allocation8 + $0x680] sm:$0xff]
    %v2856 = vld [vmem:[#allocation8 + $0x688] sm:$0xff]
    %v2857 = vld [vmem:[#allocation8 + $0x690] sm:$0xff]
    %v2858 = vld [vmem:[#allocation8 + $0x698] sm:$0xff]
    %v2859 = vld [vmem:[#allocation8 + $0x6a0] sm:$0xff]
    %v2860 = vld [vmem:[#allocation8 + $0x6a8] sm:$0xff]
    %v2861 = vld [vmem:[#allocation8 + $0x6b0] sm:$0xff]
    %v2862 = vld [vmem:[#allocation8 + $0x6b8] sm:$0xff]
    %v2863 = vld [vmem:[#allocation8 + $0x6c0] sm:$0xff]
    %v2864 = vld [vmem:[#allocation8 + $0x6c8] sm:$0xff]
    %v2865 = vld [vmem:[#allocation8 + $0x6d0] sm:$0xff]
    %v2866 = vld [vmem:[#allocation8 + $0x6d8] sm:$0xff]
    %v2867 = vld [vmem:[#allocation8 + $0x6e0] sm:$0xff]
    %v2868 = vld [vmem:[#allocation8 + $0x6e8] sm:$0xff]
    %v2869 = vld [vmem:[#allocation8 + $0x6f0] sm:$0xff]
    %v2870 = vld [vmem:[#allocation8 + $0x6f8] sm:$0xff]
    %v2871 = vld [vmem:[#allocation8 + $0x700] sm:$0xff]
    %v2872 = vld [vmem:[#allocation8 + $0x708] sm:$0xff]
    %v2873 = vld [vmem:[#allocation8 + $0x710] sm:$0xff]
    %v2874 = vld [vmem:[#allocation8 + $0x718] sm:$0xff]
    %v2875 = vld [vmem:[#allocation8 + $0x720] sm:$0xff]
    %v2876 = vld [vmem:[#allocation8 + $0x728] sm:$0xff]
    %v2877 = vld [vmem:[#allocation8 + $0x730] sm:$0xff]
    %v2878 = vld [vmem:[#allocation8 + $0x738] sm:$0xff]
    %v2879 = vld [vmem:[#allocation8 + $0x740] sm:$0xff]
    %v2880 = vld [vmem:[#allocation8 + $0x748] sm:$0xff]
    %v2881 = vld [vmem:[#allocation8 + $0x750] sm:$0xff]
    %v2882 = vld [vmem:[#allocation8 + $0x758] sm:$0xff]
    %v2883 = vld [vmem:[#allocation8 + $0x760] sm:$0xff]
    %v2884 = vld [vmem:[#allocation8 + $0x768] sm:$0xff]
    %v2885 = vld [vmem:[#allocation8 + $0x770] sm:$0xff]
    %v2886 = vld [vmem:[#allocation8 + $0x778] sm:$0xff]
    %v2887 = vld [vmem:[#allocation8 + $0x780] sm:$0xff]
    %v2888 = vld [vmem:[#allocation8 + $0x788] sm:$0xff]
    %v2889 = vld [vmem:[#allocation8 + $0x790] sm:$0xff]
    %v2890 = vld [vmem:[#allocation8 + $0x798] sm:$0xff]
    %v2891 = vld [vmem:[#allocation8 + $0x7a0] sm:$0xff]
    %v2892 = vld [vmem:[#allocation8 + $0x7a8] sm:$0xff]
    %v2893 = vld [vmem:[#allocation8 + $0x7b0] sm:$0xff]
    %v2894 = vld [vmem:[#allocation8 + $0x7b8] sm:$0xff]
    %v2895 = vld [vmem:[#allocation8 + $0x7c0] sm:$0xff]
    %v2896 = vld [vmem:[#allocation8 + $0x7c8] sm:$0xff]
    %v2897 = vld [vmem:[#allocation8 + $0x7d0] sm:$0xff]
    %v2898 = vld [vmem:[#allocation8 + $0x7d8] sm:$0xff]
    %v2899 = vld [vmem:[#allocation8 + $0x7e0] sm:$0xff]
    %v2900 = vld [vmem:[#allocation8 + $0x7e8] sm:$0xff]
    %v2901 = vld [vmem:[#allocation8 + $0x7f0] sm:$0xff]
    %v2902 = vld [vmem:[#allocation8 + $0x7f8] sm:$0xff]
    %v2903 = vld [vmem:[#allocation10] sm:$0xf]
    %v2905 = vperm.slane %v2903, 0
    %v2906 = vperm.slane %v2903, 1
    %v2907 = vperm.slane %v2903, 2
    %v2908 = vperm.slane %v2903, 3
    %v3169 = vunpack.c.l.b16 %v2647
    %v3170 = vunpack.c.h.b16 %v2647
    %v3171 = vunpack.c.l.b16 %v2648
    %v3172 = vunpack.c.h.b16 %v2648
    %v3173 = vunpack.c.l.b16 %v2649
    %v3174 = vunpack.c.h.b16 %v2649
    %v3175 = vunpack.c.l.b16 %v2650
    %v3176 = vunpack.c.h.b16 %v2650
    %v3177 = vunpack.c.l.b16 %v2651
    %v3178 = vunpack.c.h.b16 %v2651
    %v3179 = vunpack.c.l.b16 %v2652
    %v3180 = vunpack.c.h.b16 %v2652
    %v3181 = vunpack.c.l.b16 %v2653
    %v3182 = vunpack.c.h.b16 %v2653
    %v3183 = vunpack.c.l.b16 %v2654
    %v3184 = vunpack.c.h.b16 %v2654
    %v3185 = vunpack.c.l.b16 %v2655
    %v3186 = vunpack.c.h.b16 %v2655
    %v3187 = vunpack.c.l.b16 %v2656
    %v3188 = vunpack.c.h.b16 %v2656
    %v3189 = vunpack.c.l.b16 %v2657
    %v3190 = vunpack.c.h.b16 %v2657
    %v3191 = vunpack.c.l.b16 %v2658
    %v3192 = vunpack.c.h.b16 %v2658
    %v3193 = vunpack.c.l.b16 %v2659
    %v3194 = vunpack.c.h.b16 %v2659
    %v3195 = vunpack.c.l.b16 %v2660
    %v3196 = vunpack.c.h.b16 %v2660
    %v3197 = vunpack.c.l.b16 %v2661
    %v3198 = vunpack.c.h.b16 %v2661
    %v3199 = vunpack.c.l.b16 %v2662
    %v3200 = vunpack.c.h.b16 %v2662
    %v3201 = vunpack.c.l.b16 %v2663
    %v3202 = vunpack.c.h.b16 %v2663
    %v3203 = vunpack.c.l.b16 %v2664
    %v3204 = vunpack.c.h.b16 %v2664
    %v3205 = vunpack.c.l.b16 %v2665
    %v3206 = vunpack.c.h.b16 %v2665
    %v3207 = vunpack.c.l.b16 %v2666
    %v3208 = vunpack.c.h.b16 %v2666
    %v3209 = vunpack.c.l.b16 %v2667
    %v3210 = vunpack.c.h.b16 %v2667
    %v3211 = vunpack.c.l.b16 %v2668
    %v3212 = vunpack.c.h.b16 %v2668
    %v3213 = vunpack.c.l.b16 %v2669
    %v3214 = vunpack.c.h.b16 %v2669
    %v3215 = vunpack.c.l.b16 %v2670
    %v3216 = vunpack.c.h.b16 %v2670
    %v3217 = vunpack.c.l.b16 %v2671
    %v3218 = vunpack.c.h.b16 %v2671
    %v3219 = vunpack.c.l.b16 %v2672
    %v3220 = vunpack.c.h.b16 %v2672
    %v3221 = vunpack.c.l.b16 %v2673
    %v3222 = vunpack.c.h.b16 %v2673
    %v3223 = vunpack.c.l.b16 %v2674
    %v3224 = vunpack.c.h.b16 %v2674
    %v3225 = vunpack.c.l.b16 %v2675
    %v3226 = vunpack.c.h.b16 %v2675
    %v3227 = vunpack.c.l.b16 %v2676
    %v3228 = vunpack.c.h.b16 %v2676
    %v3229 = vunpack.c.l.b16 %v2677
    %v3230 = vunpack.c.h.b16 %v2677
    %v3231 = vunpack.c.l.b16 %v2678
    %v3232 = vunpack.c.h.b16 %v2678
    %v3233 = vunpack.c.l.b16 %v2679
    %v3234 = vunpack.c.h.b16 %v2679
    %v3235 = vunpack.c.l.b16 %v2680
    %v3236 = vunpack.c.h.b16 %v2680
    %v3237 = vunpack.c.l.b16 %v2681
    %v3238 = vunpack.c.h.b16 %v2681
    %v3239 = vunpack.c.l.b16 %v2682
    %v3240 = vunpack.c.h.b16 %v2682
    %v3241 = vunpack.c.l.b16 %v2683
    %v3242 = vunpack.c.h.b16 %v2683
    %v3243 = vunpack.c.l.b16 %v2684
    %v3244 = vunpack.c.h.b16 %v2684
    %v3245 = vunpack.c.l.b16 %v2685
    %v3246 = vunpack.c.h.b16 %v2685
    %v3247 = vunpack.c.l.b16 %v2686
    %v3248 = vunpack.c.h.b16 %v2686
    %v3249 = vunpack.c.l.b16 %v2687
    %v3250 = vunpack.c.h.b16 %v2687
    %v3251 = vunpack.c.l.b16 %v2688
    %v3252 = vunpack.c.h.b16 %v2688
    %v3253 = vunpack.c.l.b16 %v2689
    %v3254 = vunpack.c.h.b16 %v2689
    %v3255 = vunpack.c.l.b16 %v2690
    %v3256 = vunpack.c.h.b16 %v2690
    %v3257 = vunpack.c.l.b16 %v2691
    %v3258 = vunpack.c.h.b16 %v2691
    %v3259 = vunpack.c.l.b16 %v2692
    %v3260 = vunpack.c.h.b16 %v2692
    %v3261 = vunpack.c.l.b16 %v2693
    %v3262 = vunpack.c.h.b16 %v2693
    %v3263 = vunpack.c.l.b16 %v2694
    %v3264 = vunpack.c.h.b16 %v2694
    %v3265 = vunpack.c.l.b16 %v2695
    %v3266 = vunpack.c.h.b16 %v2695
    %v3267 = vunpack.c.l.b16 %v2696
    %v3268 = vunpack.c.h.b16 %v2696
    %v3269 = vunpack.c.l.b16 %v2697
    %v3270 = vunpack.c.h.b16 %v2697
    %v3271 = vunpack.c.l.b16 %v2698
    %v3272 = vunpack.c.h.b16 %v2698
    %v3273 = vunpack.c.l.b16 %v2699
    %v3274 = vunpack.c.h.b16 %v2699
    %v3275 = vunpack.c.l.b16 %v2700
    %v3276 = vunpack.c.h.b16 %v2700
    %v3277 = vunpack.c.l.b16 %v2701
    %v3278 = vunpack.c.h.b16 %v2701
    %v3279 = vunpack.c.l.b16 %v2702
    %v3280 = vunpack.c.h.b16 %v2702
    %v3281 = vunpack.c.l.b16 %v2703
    %v3282 = vunpack.c.h.b16 %v2703
    %v3283 = vunpack.c.l.b16 %v2704
    %v3284 = vunpack.c.h.b16 %v2704
    %v3285 = vunpack.c.l.b16 %v2705
    %v3286 = vunpack.c.h.b16 %v2705
    %v3287 = vunpack.c.l.b16 %v2706
    %v3288 = vunpack.c.h.b16 %v2706
    %v3289 = vunpack.c.l.b16 %v2707
    %v3290 = vunpack.c.h.b16 %v2707
    %v3291 = vunpack.c.l.b16 %v2708
    %v3292 = vunpack.c.h.b16 %v2708
    %v3293 = vunpack.c.l.b16 %v2709
    %v3294 = vunpack.c.h.b16 %v2709
    %v3295 = vunpack.c.l.b16 %v2710
    %v3296 = vunpack.c.h.b16 %v2710
    %v3297 = vunpack.c.l.b16 %v2711
    %v3298 = vunpack.c.h.b16 %v2711
    %v3299 = vunpack.c.l.b16 %v2712
    %v3300 = vunpack.c.h.b16 %v2712
    %v3301 = vunpack.c.l.b16 %v2713
    %v3302 = vunpack.c.h.b16 %v2713
    %v3303 = vunpack.c.l.b16 %v2714
    %v3304 = vunpack.c.h.b16 %v2714
    %v3305 = vunpack.c.l.b16 %v2715
    %v3306 = vunpack.c.h.b16 %v2715
    %v3307 = vunpack.c.l.b16 %v2716
    %v3308 = vunpack.c.h.b16 %v2716
    %v3309 = vunpack.c.l.b16 %v2717
    %v3310 = vunpack.c.h.b16 %v2717
    %v3311 = vunpack.c.l.b16 %v2718
    %v3312 = vunpack.c.h.b16 %v2718
    %v3313 = vunpack.c.l.b16 %v2719
    %v3314 = vunpack.c.h.b16 %v2719
    %v3315 = vunpack.c.l.b16 %v2720
    %v3316 = vunpack.c.h.b16 %v2720
    %v3317 = vunpack.c.l.b16 %v2721
    %v3318 = vunpack.c.h.b16 %v2721
    %v3319 = vunpack.c.l.b16 %v2722
    %v3320 = vunpack.c.h.b16 %v2722
    %v3321 = vunpack.c.l.b16 %v2723
    %v3322 = vunpack.c.h.b16 %v2723
    %v3323 = vunpack.c.l.b16 %v2724
    %v3324 = vunpack.c.h.b16 %v2724
    %v3325 = vunpack.c.l.b16 %v2725
    %v3326 = vunpack.c.h.b16 %v2725
    %v3327 = vunpack.c.l.b16 %v2726
    %v3328 = vunpack.c.h.b16 %v2726
    %v3329 = vunpack.c.l.b16 %v2727
    %v3330 = vunpack.c.h.b16 %v2727
    %v3331 = vunpack.c.l.b16 %v2728
    %v3332 = vunpack.c.h.b16 %v2728
    %v3333 = vunpack.c.l.b16 %v2729
    %v3334 = vunpack.c.h.b16 %v2729
    %v3335 = vunpack.c.l.b16 %v2730
    %v3336 = vunpack.c.h.b16 %v2730
    %v3337 = vunpack.c.l.b16 %v2731
    %v3338 = vunpack.c.h.b16 %v2731
    %v3339 = vunpack.c.l.b16 %v2732
    %v3340 = vunpack.c.h.b16 %v2732
    %v3341 = vunpack.c.l.b16 %v2733
    %v3342 = vunpack.c.h.b16 %v2733
    %v3343 = vunpack.c.l.b16 %v2734
    %v3344 = vunpack.c.h.b16 %v2734
    %v3345 = vunpack.c.l.b16 %v2735
    %v3346 = vunpack.c.h.b16 %v2735
    %v3347 = vunpack.c.l.b16 %v2736
    %v3348 = vunpack.c.h.b16 %v2736
    %v3349 = vunpack.c.l.b16 %v2737
    %v3350 = vunpack.c.h.b16 %v2737
    %v3351 = vunpack.c.l.b16 %v2738
    %v3352 = vunpack.c.h.b16 %v2738
    %v3353 = vunpack.c.l.b16 %v2739
    %v3354 = vunpack.c.h.b16 %v2739
    %v3355 = vunpack.c.l.b16 %v2740
    %v3356 = vunpack.c.h.b16 %v2740
    %v3357 = vunpack.c.l.b16 %v2741
    %v3358 = vunpack.c.h.b16 %v2741
    %v3359 = vunpack.c.l.b16 %v2742
    %v3360 = vunpack.c.h.b16 %v2742
    %v3361 = vunpack.c.l.b16 %v2743
    %v3362 = vunpack.c.h.b16 %v2743
    %v3363 = vunpack.c.l.b16 %v2744
    %v3364 = vunpack.c.h.b16 %v2744
    %v3365 = vunpack.c.l.b16 %v2745
    %v3366 = vunpack.c.h.b16 %v2745
    %v3367 = vunpack.c.l.b16 %v2746
    %v3368 = vunpack.c.h.b16 %v2746
    %v3369 = vunpack.c.l.b16 %v2747
    %v3370 = vunpack.c.h.b16 %v2747
    %v3371 = vunpack.c.l.b16 %v2748
    %v3372 = vunpack.c.h.b16 %v2748
    %v3373 = vunpack.c.l.b16 %v2749
    %v3374 = vunpack.c.h.b16 %v2749
    %v3375 = vunpack.c.l.b16 %v2750
    %v3376 = vunpack.c.h.b16 %v2750
    %v3377 = vunpack.c.l.b16 %v2751
    %v3378 = vunpack.c.h.b16 %v2751
    %v3379 = vunpack.c.l.b16 %v2752
    %v3380 = vunpack.c.h.b16 %v2752
    %v3381 = vunpack.c.l.b16 %v2753
    %v3382 = vunpack.c.h.b16 %v2753
    %v3383 = vunpack.c.l.b16 %v2754
    %v3384 = vunpack.c.h.b16 %v2754
    %v3385 = vunpack.c.l.b16 %v2755
    %v3386 = vunpack.c.h.b16 %v2755
    %v3387 = vunpack.c.l.b16 %v2756
    %v3388 = vunpack.c.h.b16 %v2756
    %v3389 = vunpack.c.l.b16 %v2757
    %v3390 = vunpack.c.h.b16 %v2757
    %v3391 = vunpack.c.l.b16 %v2758
    %v3392 = vunpack.c.h.b16 %v2758
    %v3393 = vunpack.c.l.b16 %v2759
    %v3394 = vunpack.c.h.b16 %v2759
    %v3395 = vunpack.c.l.b16 %v2760
    %v3396 = vunpack.c.h.b16 %v2760
    %v3397 = vunpack.c.l.b16 %v2761
    %v3398 = vunpack.c.h.b16 %v2761
    %v3399 = vunpack.c.l.b16 %v2762
    %v3400 = vunpack.c.h.b16 %v2762
    %v3401 = vunpack.c.l.b16 %v2763
    %v3402 = vunpack.c.h.b16 %v2763
    %v3403 = vunpack.c.l.b16 %v2764
    %v3404 = vunpack.c.h.b16 %v2764
    %v3405 = vunpack.c.l.b16 %v2765
    %v3406 = vunpack.c.h.b16 %v2765
    %v3407 = vunpack.c.l.b16 %v2766
    %v3408 = vunpack.c.h.b16 %v2766
    %v3409 = vunpack.c.l.b16 %v2767
    %v3410 = vunpack.c.h.b16 %v2767
    %v3411 = vunpack.c.l.b16 %v2768
    %v3412 = vunpack.c.h.b16 %v2768
    %v3413 = vunpack.c.l.b16 %v2769
    %v3414 = vunpack.c.h.b16 %v2769
    %v3415 = vunpack.c.l.b16 %v2770
    %v3416 = vunpack.c.h.b16 %v2770
    %v3417 = vunpack.c.l.b16 %v2771
    %v3418 = vunpack.c.h.b16 %v2771
    %v3419 = vunpack.c.l.b16 %v2772
    %v3420 = vunpack.c.h.b16 %v2772
    %v3421 = vunpack.c.l.b16 %v2773
    %v3422 = vunpack.c.h.b16 %v2773
    %v3423 = vunpack.c.l.b16 %v2774
    %v3424 = vunpack.c.h.b16 %v2774
    %v3425 = vunpack.c.l.b16 %v2775
    %v3426 = vunpack.c.h.b16 %v2775
    %v3427 = vunpack.c.l.b16 %v2776
    %v3428 = vunpack.c.h.b16 %v2776
    %v3429 = vunpack.c.l.b16 %v2777
    %v3430 = vunpack.c.h.b16 %v2777
    %v3431 = vunpack.c.l.b16 %v2778
    %v3432 = vunpack.c.h.b16 %v2778
    %v3433 = vunpack.c.l.b16 %v2779
    %v3434 = vunpack.c.h.b16 %v2779
    %v3435 = vunpack.c.l.b16 %v2780
    %v3436 = vunpack.c.h.b16 %v2780
    %v3437 = vunpack.c.l.b16 %v2781
    %v3438 = vunpack.c.h.b16 %v2781
    %v3439 = vunpack.c.l.b16 %v2782
    %v3440 = vunpack.c.h.b16 %v2782
    %v3441 = vunpack.c.l.b16 %v2783
    %v3442 = vunpack.c.h.b16 %v2783
    %v3443 = vunpack.c.l.b16 %v2784
    %v3444 = vunpack.c.h.b16 %v2784
    %v3445 = vunpack.c.l.b16 %v2785
    %v3446 = vunpack.c.h.b16 %v2785
    %v3447 = vunpack.c.l.b16 %v2786
    %v3448 = vunpack.c.h.b16 %v2786
    %v3449 = vunpack.c.l.b16 %v2787
    %v3450 = vunpack.c.h.b16 %v2787
    %v3451 = vunpack.c.l.b16 %v2788
    %v3452 = vunpack.c.h.b16 %v2788
    %v3453 = vunpack.c.l.b16 %v2789
    %v3454 = vunpack.c.h.b16 %v2789
    %v3455 = vunpack.c.l.b16 %v2790
    %v3456 = vunpack.c.h.b16 %v2790
    %v3457 = vunpack.c.l.b16 %v2791
    %v3458 = vunpack.c.h.b16 %v2791
    %v3459 = vunpack.c.l.b16 %v2792
    %v3460 = vunpack.c.h.b16 %v2792
    %v3461 = vunpack.c.l.b16 %v2793
    %v3462 = vunpack.c.h.b16 %v2793
    %v3463 = vunpack.c.l.b16 %v2794
    %v3464 = vunpack.c.h.b16 %v2794
    %v3465 = vunpack.c.l.b16 %v2795
    %v3466 = vunpack.c.h.b16 %v2795
    %v3467 = vunpack.c.l.b16 %v2796
    %v3468 = vunpack.c.h.b16 %v2796
    %v3469 = vunpack.c.l.b16 %v2797
    %v3470 = vunpack.c.h.b16 %v2797
    %v3471 = vunpack.c.l.b16 %v2798
    %v3472 = vunpack.c.h.b16 %v2798
    %v3473 = vunpack.c.l.b16 %v2799
    %v3474 = vunpack.c.h.b16 %v2799
    %v3475 = vunpack.c.l.b16 %v2800
    %v3476 = vunpack.c.h.b16 %v2800
    %v3477 = vunpack.c.l.b16 %v2801
    %v3478 = vunpack.c.h.b16 %v2801
    %v3479 = vunpack.c.l.b16 %v2802
    %v3480 = vunpack.c.h.b16 %v2802
    %v3481 = vunpack.c.l.b16 %v2803
    %v3482 = vunpack.c.h.b16 %v2803
    %v3483 = vunpack.c.l.b16 %v2804
    %v3484 = vunpack.c.h.b16 %v2804
    %v3485 = vunpack.c.l.b16 %v2805
    %v3486 = vunpack.c.h.b16 %v2805
    %v3487 = vunpack.c.l.b16 %v2806
    %v3488 = vunpack.c.h.b16 %v2806
    %v3489 = vunpack.c.l.b16 %v2807
    %v3490 = vunpack.c.h.b16 %v2807
    %v3491 = vunpack.c.l.b16 %v2808
    %v3492 = vunpack.c.h.b16 %v2808
    %v3493 = vunpack.c.l.b16 %v2809
    %v3494 = vunpack.c.h.b16 %v2809
    %v3495 = vunpack.c.l.b16 %v2810
    %v3496 = vunpack.c.h.b16 %v2810
    %v3497 = vunpack.c.l.b16 %v2811
    %v3498 = vunpack.c.h.b16 %v2811
    %v3499 = vunpack.c.l.b16 %v2812
    %v3500 = vunpack.c.h.b16 %v2812
    %v3501 = vunpack.c.l.b16 %v2813
    %v3502 = vunpack.c.h.b16 %v2813
    %v3503 = vunpack.c.l.b16 %v2814
    %v3504 = vunpack.c.h.b16 %v2814
    %v3505 = vunpack.c.l.b16 %v2815
    %v3506 = vunpack.c.h.b16 %v2815
    %v3507 = vunpack.c.l.b16 %v2816
    %v3508 = vunpack.c.h.b16 %v2816
    %v3509 = vunpack.c.l.b16 %v2817
    %v3510 = vunpack.c.h.b16 %v2817
    %v3511 = vunpack.c.l.b16 %v2818
    %v3512 = vunpack.c.h.b16 %v2818
    %v3513 = vunpack.c.l.b16 %v2819
    %v3514 = vunpack.c.h.b16 %v2819
    %v3515 = vunpack.c.l.b16 %v2820
    %v3516 = vunpack.c.h.b16 %v2820
    %v3517 = vunpack.c.l.b16 %v2821
    %v3518 = vunpack.c.h.b16 %v2821
    %v3519 = vunpack.c.l.b16 %v2822
    %v3520 = vunpack.c.h.b16 %v2822
    %v3521 = vunpack.c.l.b16 %v2823
    %v3522 = vunpack.c.h.b16 %v2823
    %v3523 = vunpack.c.l.b16 %v2824
    %v3524 = vunpack.c.h.b16 %v2824
    %v3525 = vunpack.c.l.b16 %v2825
    %v3526 = vunpack.c.h.b16 %v2825
    %v3527 = vunpack.c.l.b16 %v2826
    %v3528 = vunpack.c.h.b16 %v2826
    %v3529 = vunpack.c.l.b16 %v2827
    %v3530 = vunpack.c.h.b16 %v2827
    %v3531 = vunpack.c.l.b16 %v2828
    %v3532 = vunpack.c.h.b16 %v2828
    %v3533 = vunpack.c.l.b16 %v2829
    %v3534 = vunpack.c.h.b16 %v2829
    %v3535 = vunpack.c.l.b16 %v2830
    %v3536 = vunpack.c.h.b16 %v2830
    %v3537 = vunpack.c.l.b16 %v2831
    %v3538 = vunpack.c.h.b16 %v2831
    %v3539 = vunpack.c.l.b16 %v2832
    %v3540 = vunpack.c.h.b16 %v2832
    %v3541 = vunpack.c.l.b16 %v2833
    %v3542 = vunpack.c.h.b16 %v2833
    %v3543 = vunpack.c.l.b16 %v2834
    %v3544 = vunpack.c.h.b16 %v2834
    %v3545 = vunpack.c.l.b16 %v2835
    %v3546 = vunpack.c.h.b16 %v2835
    %v3547 = vunpack.c.l.b16 %v2836
    %v3548 = vunpack.c.h.b16 %v2836
    %v3549 = vunpack.c.l.b16 %v2837
    %v3550 = vunpack.c.h.b16 %v2837
    %v3551 = vunpack.c.l.b16 %v2838
    %v3552 = vunpack.c.h.b16 %v2838
    %v3553 = vunpack.c.l.b16 %v2839
    %v3554 = vunpack.c.h.b16 %v2839
    %v3555 = vunpack.c.l.b16 %v2840
    %v3556 = vunpack.c.h.b16 %v2840
    %v3557 = vunpack.c.l.b16 %v2841
    %v3558 = vunpack.c.h.b16 %v2841
    %v3559 = vunpack.c.l.b16 %v2842
    %v3560 = vunpack.c.h.b16 %v2842
    %v3561 = vunpack.c.l.b16 %v2843
    %v3562 = vunpack.c.h.b16 %v2843
    %v3563 = vunpack.c.l.b16 %v2844
    %v3564 = vunpack.c.h.b16 %v2844
    %v3565 = vunpack.c.l.b16 %v2845
    %v3566 = vunpack.c.h.b16 %v2845
    %v3567 = vunpack.c.l.b16 %v2846
    %v3568 = vunpack.c.h.b16 %v2846
    %v3569 = vunpack.c.l.b16 %v2847
    %v3570 = vunpack.c.h.b16 %v2847
    %v3571 = vunpack.c.l.b16 %v2848
    %v3572 = vunpack.c.h.b16 %v2848
    %v3573 = vunpack.c.l.b16 %v2849
    %v3574 = vunpack.c.h.b16 %v2849
    %v3575 = vunpack.c.l.b16 %v2850
    %v3576 = vunpack.c.h.b16 %v2850
    %v3577 = vunpack.c.l.b16 %v2851
    %v3578 = vunpack.c.h.b16 %v2851
    %v3579 = vunpack.c.l.b16 %v2852
    %v3580 = vunpack.c.h.b16 %v2852
    %v3581 = vunpack.c.l.b16 %v2853
    %v3582 = vunpack.c.h.b16 %v2853
    %v3583 = vunpack.c.l.b16 %v2854
    %v3584 = vunpack.c.h.b16 %v2854
    %v3585 = vunpack.c.l.b16 %v2855
    %v3586 = vunpack.c.h.b16 %v2855
    %v3587 = vunpack.c.l.b16 %v2856
    %v3588 = vunpack.c.h.b16 %v2856
    %v3589 = vunpack.c.l.b16 %v2857
    %v3590 = vunpack.c.h.b16 %v2857
    %v3591 = vunpack.c.l.b16 %v2858
    %v3592 = vunpack.c.h.b16 %v2858
    %v3593 = vunpack.c.l.b16 %v2859
    %v3594 = vunpack.c.h.b16 %v2859
    %v3595 = vunpack.c.l.b16 %v2860
    %v3596 = vunpack.c.h.b16 %v2860
    %v3597 = vunpack.c.l.b16 %v2861
    %v3598 = vunpack.c.h.b16 %v2861
    %v3599 = vunpack.c.l.b16 %v2862
    %v3600 = vunpack.c.h.b16 %v2862
    %v3601 = vunpack.c.l.b16 %v2863
    %v3602 = vunpack.c.h.b16 %v2863
    %v3603 = vunpack.c.l.b16 %v2864
    %v3604 = vunpack.c.h.b16 %v2864
    %v3605 = vunpack.c.l.b16 %v2865
    %v3606 = vunpack.c.h.b16 %v2865
    %v3607 = vunpack.c.l.b16 %v2866
    %v3608 = vunpack.c.h.b16 %v2866
    %v3609 = vunpack.c.l.b16 %v2867
    %v3610 = vunpack.c.h.b16 %v2867
    %v3611 = vunpack.c.l.b16 %v2868
    %v3612 = vunpack.c.h.b16 %v2868
    %v3613 = vunpack.c.l.b16 %v2869
    %v3614 = vunpack.c.h.b16 %v2869
    %v3615 = vunpack.c.l.b16 %v2870
    %v3616 = vunpack.c.h.b16 %v2870
    %v3617 = vunpack.c.l.b16 %v2871
    %v3618 = vunpack.c.h.b16 %v2871
    %v3619 = vunpack.c.l.b16 %v2872
    %v3620 = vunpack.c.h.b16 %v2872
    %v3621 = vunpack.c.l.b16 %v2873
    %v3622 = vunpack.c.h.b16 %v2873
    %v3623 = vunpack.c.l.b16 %v2874
    %v3624 = vunpack.c.h.b16 %v2874
    %v3625 = vunpack.c.l.b16 %v2875
    %v3626 = vunpack.c.h.b16 %v2875
    %v3627 = vunpack.c.l.b16 %v2876
    %v3628 = vunpack.c.h.b16 %v2876
    %v3629 = vunpack.c.l.b16 %v2877
    %v3630 = vunpack.c.h.b16 %v2877
    %v3631 = vunpack.c.l.b16 %v2878
    %v3632 = vunpack.c.h.b16 %v2878
    %v3633 = vunpack.c.l.b16 %v2879
    %v3634 = vunpack.c.h.b16 %v2879
    %v3635 = vunpack.c.l.b16 %v2880
    %v3636 = vunpack.c.h.b16 %v2880
    %v3637 = vunpack.c.l.b16 %v2881
    %v3638 = vunpack.c.h.b16 %v2881
    %v3639 = vunpack.c.l.b16 %v2882
    %v3640 = vunpack.c.h.b16 %v2882
    %v3641 = vunpack.c.l.b16 %v2883
    %v3642 = vunpack.c.h.b16 %v2883
    %v3643 = vunpack.c.l.b16 %v2884
    %v3644 = vunpack.c.h.b16 %v2884
    %v3645 = vunpack.c.l.b16 %v2885
    %v3646 = vunpack.c.h.b16 %v2885
    %v3647 = vunpack.c.l.b16 %v2886
    %v3648 = vunpack.c.h.b16 %v2886
    %v3649 = vunpack.c.l.b16 %v2887
    %v3650 = vunpack.c.h.b16 %v2887
    %v3651 = vunpack.c.l.b16 %v2888
    %v3652 = vunpack.c.h.b16 %v2888
    %v3653 = vunpack.c.l.b16 %v2889
    %v3654 = vunpack.c.h.b16 %v2889
    %v3655 = vunpack.c.l.b16 %v2890
    %v3656 = vunpack.c.h.b16 %v2890
    %v3657 = vunpack.c.l.b16 %v2891
    %v3658 = vunpack.c.h.b16 %v2891
    %v3659 = vunpack.c.l.b16 %v2892
    %v3660 = vunpack.c.h.b16 %v2892
    %v3661 = vunpack.c.l.b16 %v2893
    %v3662 = vunpack.c.h.b16 %v2893
    %v3663 = vunpack.c.l.b16 %v2894
    %v3664 = vunpack.c.h.b16 %v2894
    %v3665 = vunpack.c.l.b16 %v2895
    %v3666 = vunpack.c.h.b16 %v2895
    %v3667 = vunpack.c.l.b16 %v2896
    %v3668 = vunpack.c.h.b16 %v2896
    %v3669 = vunpack.c.l.b16 %v2897
    %v3670 = vunpack.c.h.b16 %v2897
    %v3671 = vunpack.c.l.b16 %v2898
    %v3672 = vunpack.c.h.b16 %v2898
    %v3673 = vunpack.c.l.b16 %v2899
    %v3674 = vunpack.c.h.b16 %v2899
    %v3675 = vunpack.c.l.b16 %v2900
    %v3676 = vunpack.c.h.b16 %v2900
    %v3677 = vunpack.c.l.b16 %v2901
    %v3678 = vunpack.c.h.b16 %v2901
    %v3679 = vunpack.c.l.b16 %v2902
    %v3680 = vunpack.c.h.b16 %v2902
    %v3681 = vpack.c.b16 %v3173, %v3169
    %v3682 = vpack.c.b16 %v3174, %v3170
    %v3683 = vpack.c.b16 %v3175, %v3171
    %v3684 = vpack.c.b16 %v3176, %v3172
    %v3685 = vpack.c.b16 %v3181, %v3177
    %v3686 = vpack.c.b16 %v3182, %v3178
    %v3687 = vpack.c.b16 %v3183, %v3179
    %v3688 = vpack.c.b16 %v3184, %v3180
    %v3689 = vpack.c.b16 %v3189, %v3185
    %v3690 = vpack.c.b16 %v3190, %v3186
    %v3691 = vpack.c.b16 %v3191, %v3187
    %v3692 = vpack.c.b16 %v3192, %v3188
    %v3693 = vpack.c.b16 %v3197, %v3193
    %v3694 = vpack.c.b16 %v3198, %v3194
    %v3695 = vpack.c.b16 %v3199, %v3195
    %v3696 = vpack.c.b16 %v3200, %v3196
    %v3697 = vpack.c.b16 %v3205, %v3201
    %v3698 = vpack.c.b16 %v3206, %v3202
    %v3699 = vpack.c.b16 %v3207, %v3203
    %v3700 = vpack.c.b16 %v3208, %v3204
    %v3701 = vpack.c.b16 %v3213, %v3209
    %v3702 = vpack.c.b16 %v3214, %v3210
    %v3703 = vpack.c.b16 %v3215, %v3211
    %v3704 = vpack.c.b16 %v3216, %v3212
    %v3705 = vpack.c.b16 %v3221, %v3217
    %v3706 = vpack.c.b16 %v3222, %v3218
    %v3707 = vpack.c.b16 %v3223, %v3219
    %v3708 = vpack.c.b16 %v3224, %v3220
    %v3709 = vpack.c.b16 %v3229, %v3225
    %v3710 = vpack.c.b16 %v3230, %v3226
    %v3711 = vpack.c.b16 %v3231, %v3227
    %v3712 = vpack.c.b16 %v3232, %v3228
    %v3713 = vpack.c.b16 %v3237, %v3233
    %v3714 = vpack.c.b16 %v3238, %v3234
    %v3715 = vpack.c.b16 %v3239, %v3235
    %v3716 = vpack.c.b16 %v3240, %v3236
    %v3717 = vpack.c.b16 %v3245, %v3241
    %v3718 = vpack.c.b16 %v3246, %v3242
    %v3719 = vpack.c.b16 %v3247, %v3243
    %v3720 = vpack.c.b16 %v3248, %v3244
    %v3721 = vpack.c.b16 %v3253, %v3249
    %v3722 = vpack.c.b16 %v3254, %v3250
    %v3723 = vpack.c.b16 %v3255, %v3251
    %v3724 = vpack.c.b16 %v3256, %v3252
    %v3725 = vpack.c.b16 %v3261, %v3257
    %v3726 = vpack.c.b16 %v3262, %v3258
    %v3727 = vpack.c.b16 %v3263, %v3259
    %v3728 = vpack.c.b16 %v3264, %v3260
    %v3729 = vpack.c.b16 %v3269, %v3265
    %v3730 = vpack.c.b16 %v3270, %v3266
    %v3731 = vpack.c.b16 %v3271, %v3267
    %v3732 = vpack.c.b16 %v3272, %v3268
    %v3733 = vpack.c.b16 %v3277, %v3273
    %v3734 = vpack.c.b16 %v3278, %v3274
    %v3735 = vpack.c.b16 %v3279, %v3275
    %v3736 = vpack.c.b16 %v3280, %v3276
    %v3737 = vpack.c.b16 %v3285, %v3281
    %v3738 = vpack.c.b16 %v3286, %v3282
    %v3739 = vpack.c.b16 %v3287, %v3283
    %v3740 = vpack.c.b16 %v3288, %v3284
    %v3741 = vpack.c.b16 %v3293, %v3289
    %v3742 = vpack.c.b16 %v3294, %v3290
    %v3743 = vpack.c.b16 %v3295, %v3291
    %v3744 = vpack.c.b16 %v3296, %v3292
    %v3745 = vpack.c.b16 %v3301, %v3297
    %v3746 = vpack.c.b16 %v3302, %v3298
    %v3747 = vpack.c.b16 %v3303, %v3299
    %v3748 = vpack.c.b16 %v3304, %v3300
    %v3749 = vpack.c.b16 %v3309, %v3305
    %v3750 = vpack.c.b16 %v3310, %v3306
    %v3751 = vpack.c.b16 %v3311, %v3307
    %v3752 = vpack.c.b16 %v3312, %v3308
    %v3753 = vpack.c.b16 %v3317, %v3313
    %v3754 = vpack.c.b16 %v3318, %v3314
    %v3755 = vpack.c.b16 %v3319, %v3315
    %v3756 = vpack.c.b16 %v3320, %v3316
    %v3757 = vpack.c.b16 %v3325, %v3321
    %v3758 = vpack.c.b16 %v3326, %v3322
    %v3759 = vpack.c.b16 %v3327, %v3323
    %v3760 = vpack.c.b16 %v3328, %v3324
    %v3761 = vpack.c.b16 %v3333, %v3329
    %v3762 = vpack.c.b16 %v3334, %v3330
    %v3763 = vpack.c.b16 %v3335, %v3331
    %v3764 = vpack.c.b16 %v3336, %v3332
    %v3765 = vpack.c.b16 %v3341, %v3337
    %v3766 = vpack.c.b16 %v3342, %v3338
    %v3767 = vpack.c.b16 %v3343, %v3339
    %v3768 = vpack.c.b16 %v3344, %v3340
    %v3769 = vpack.c.b16 %v3349, %v3345
    %v3770 = vpack.c.b16 %v3350, %v3346
    %v3771 = vpack.c.b16 %v3351, %v3347
    %v3772 = vpack.c.b16 %v3352, %v3348
    %v3773 = vpack.c.b16 %v3357, %v3353
    %v3774 = vpack.c.b16 %v3358, %v3354
    %v3775 = vpack.c.b16 %v3359, %v3355
    %v3776 = vpack.c.b16 %v3360, %v3356
    %v3777 = vpack.c.b16 %v3365, %v3361
    %v3778 = vpack.c.b16 %v3366, %v3362
    %v3779 = vpack.c.b16 %v3367, %v3363
    %v3780 = vpack.c.b16 %v3368, %v3364
    %v3781 = vpack.c.b16 %v3373, %v3369
    %v3782 = vpack.c.b16 %v3374, %v3370
    %v3783 = vpack.c.b16 %v3375, %v3371
    %v3784 = vpack.c.b16 %v3376, %v3372
    %v3785 = vpack.c.b16 %v3381, %v3377
    %v3786 = vpack.c.b16 %v3382, %v3378
    %v3787 = vpack.c.b16 %v3383, %v3379
    %v3788 = vpack.c.b16 %v3384, %v3380
    %v3789 = vpack.c.b16 %v3389, %v3385
    %v3790 = vpack.c.b16 %v3390, %v3386
    %v3791 = vpack.c.b16 %v3391, %v3387
    %v3792 = vpack.c.b16 %v3392, %v3388
    %v3793 = vpack.c.b16 %v3397, %v3393
    %v3794 = vpack.c.b16 %v3398, %v3394
    %v3795 = vpack.c.b16 %v3399, %v3395
    %v3796 = vpack.c.b16 %v3400, %v3396
    %v3797 = vpack.c.b16 %v3405, %v3401
    %v3798 = vpack.c.b16 %v3406, %v3402
    %v3799 = vpack.c.b16 %v3407, %v3403
    %v3800 = vpack.c.b16 %v3408, %v3404
    %v3801 = vpack.c.b16 %v3413, %v3409
    %v3802 = vpack.c.b16 %v3414, %v3410
    %v3803 = vpack.c.b16 %v3415, %v3411
    %v3804 = vpack.c.b16 %v3416, %v3412
    %v3805 = vpack.c.b16 %v3421, %v3417
    %v3806 = vpack.c.b16 %v3422, %v3418
    %v3807 = vpack.c.b16 %v3423, %v3419
    %v3808 = vpack.c.b16 %v3424, %v3420
    %v3809 = vpack.c.b16 %v3429, %v3425
    %v3810 = vpack.c.b16 %v3430, %v3426
    %v3811 = vpack.c.b16 %v3431, %v3427
    %v3812 = vpack.c.b16 %v3432, %v3428
    %v3813 = vpack.c.b16 %v3437, %v3433
    %v3814 = vpack.c.b16 %v3438, %v3434
    %v3815 = vpack.c.b16 %v3439, %v3435
    %v3816 = vpack.c.b16 %v3440, %v3436
    %v3817 = vpack.c.b16 %v3445, %v3441
    %v3818 = vpack.c.b16 %v3446, %v3442
    %v3819 = vpack.c.b16 %v3447, %v3443
    %v3820 = vpack.c.b16 %v3448, %v3444
    %v3821 = vpack.c.b16 %v3453, %v3449
    %v3822 = vpack.c.b16 %v3454, %v3450
    %v3823 = vpack.c.b16 %v3455, %v3451
    %v3824 = vpack.c.b16 %v3456, %v3452
    %v3825 = vpack.c.b16 %v3461, %v3457
    %v3826 = vpack.c.b16 %v3462, %v3458
    %v3827 = vpack.c.b16 %v3463, %v3459
    %v3828 = vpack.c.b16 %v3464, %v3460
    %v3829 = vpack.c.b16 %v3469, %v3465
    %v3830 = vpack.c.b16 %v3470, %v3466
    %v3831 = vpack.c.b16 %v3471, %v3467
    %v3832 = vpack.c.b16 %v3472, %v3468
    %v3833 = vpack.c.b16 %v3477, %v3473
    %v3834 = vpack.c.b16 %v3478, %v3474
    %v3835 = vpack.c.b16 %v3479, %v3475
    %v3836 = vpack.c.b16 %v3480, %v3476
    %v3837 = vpack.c.b16 %v3485, %v3481
    %v3838 = vpack.c.b16 %v3486, %v3482
    %v3839 = vpack.c.b16 %v3487, %v3483
    %v3840 = vpack.c.b16 %v3488, %v3484
    %v3841 = vpack.c.b16 %v3493, %v3489
    %v3842 = vpack.c.b16 %v3494, %v3490
    %v3843 = vpack.c.b16 %v3495, %v3491
    %v3844 = vpack.c.b16 %v3496, %v3492
    %v3845 = vpack.c.b16 %v3501, %v3497
    %v3846 = vpack.c.b16 %v3502, %v3498
    %v3847 = vpack.c.b16 %v3503, %v3499
    %v3848 = vpack.c.b16 %v3504, %v3500
    %v3849 = vpack.c.b16 %v3509, %v3505
    %v3850 = vpack.c.b16 %v3510, %v3506
    %v3851 = vpack.c.b16 %v3511, %v3507
    %v3852 = vpack.c.b16 %v3512, %v3508
    %v3853 = vpack.c.b16 %v3517, %v3513
    %v3854 = vpack.c.b16 %v3518, %v3514
    %v3855 = vpack.c.b16 %v3519, %v3515
    %v3856 = vpack.c.b16 %v3520, %v3516
    %v3857 = vpack.c.b16 %v3525, %v3521
    %v3858 = vpack.c.b16 %v3526, %v3522
    %v3859 = vpack.c.b16 %v3527, %v3523
    %v3860 = vpack.c.b16 %v3528, %v3524
    %v3861 = vpack.c.b16 %v3533, %v3529
    %v3862 = vpack.c.b16 %v3534, %v3530
    %v3863 = vpack.c.b16 %v3535, %v3531
    %v3864 = vpack.c.b16 %v3536, %v3532
    %v3865 = vpack.c.b16 %v3541, %v3537
    %v3866 = vpack.c.b16 %v3542, %v3538
    %v3867 = vpack.c.b16 %v3543, %v3539
    %v3868 = vpack.c.b16 %v3544, %v3540
    %v3869 = vpack.c.b16 %v3549, %v3545
    %v3870 = vpack.c.b16 %v3550, %v3546
    %v3871 = vpack.c.b16 %v3551, %v3547
    %v3872 = vpack.c.b16 %v3552, %v3548
    %v3873 = vpack.c.b16 %v3557, %v3553
    %v3874 = vpack.c.b16 %v3558, %v3554
    %v3875 = vpack.c.b16 %v3559, %v3555
    %v3876 = vpack.c.b16 %v3560, %v3556
    %v3877 = vpack.c.b16 %v3565, %v3561
    %v3878 = vpack.c.b16 %v3566, %v3562
    %v3879 = vpack.c.b16 %v3567, %v3563
    %v3880 = vpack.c.b16 %v3568, %v3564
    %v3881 = vpack.c.b16 %v3573, %v3569
    %v3882 = vpack.c.b16 %v3574, %v3570
    %v3883 = vpack.c.b16 %v3575, %v3571
    %v3884 = vpack.c.b16 %v3576, %v3572
    %v3885 = vpack.c.b16 %v3581, %v3577
    %v3886 = vpack.c.b16 %v3582, %v3578
    %v3887 = vpack.c.b16 %v3583, %v3579
    %v3888 = vpack.c.b16 %v3584, %v3580
    %v3889 = vpack.c.b16 %v3589, %v3585
    %v3890 = vpack.c.b16 %v3590, %v3586
    %v3891 = vpack.c.b16 %v3591, %v3587
    %v3892 = vpack.c.b16 %v3592, %v3588
    %v3893 = vpack.c.b16 %v3597, %v3593
    %v3894 = vpack.c.b16 %v3598, %v3594
    %v3895 = vpack.c.b16 %v3599, %v3595
    %v3896 = vpack.c.b16 %v3600, %v3596
    %v3897 = vpack.c.b16 %v3605, %v3601
    %v3898 = vpack.c.b16 %v3606, %v3602
    %v3899 = vpack.c.b16 %v3607, %v3603
    %v3900 = vpack.c.b16 %v3608, %v3604
    %v3901 = vpack.c.b16 %v3613, %v3609
    %v3902 = vpack.c.b16 %v3614, %v3610
    %v3903 = vpack.c.b16 %v3615, %v3611
    %v3904 = vpack.c.b16 %v3616, %v3612
    %v3905 = vpack.c.b16 %v3621, %v3617
    %v3906 = vpack.c.b16 %v3622, %v3618
    %v3907 = vpack.c.b16 %v3623, %v3619
    %v3908 = vpack.c.b16 %v3624, %v3620
    %v3909 = vpack.c.b16 %v3629, %v3625
    %v3910 = vpack.c.b16 %v3630, %v3626
    %v3911 = vpack.c.b16 %v3631, %v3627
    %v3912 = vpack.c.b16 %v3632, %v3628
    %v3913 = vpack.c.b16 %v3637, %v3633
    %v3914 = vpack.c.b16 %v3638, %v3634
    %v3915 = vpack.c.b16 %v3639, %v3635
    %v3916 = vpack.c.b16 %v3640, %v3636
    %v3917 = vpack.c.b16 %v3645, %v3641
    %v3918 = vpack.c.b16 %v3646, %v3642
    %v3919 = vpack.c.b16 %v3647, %v3643
    %v3920 = vpack.c.b16 %v3648, %v3644
    %v3921 = vpack.c.b16 %v3653, %v3649
    %v3922 = vpack.c.b16 %v3654, %v3650
    %v3923 = vpack.c.b16 %v3655, %v3651
    %v3924 = vpack.c.b16 %v3656, %v3652
    %v3925 = vpack.c.b16 %v3661, %v3657
    %v3926 = vpack.c.b16 %v3662, %v3658
    %v3927 = vpack.c.b16 %v3663, %v3659
    %v3928 = vpack.c.b16 %v3664, %v3660
    %v3929 = vpack.c.b16 %v3669, %v3665
    %v3930 = vpack.c.b16 %v3670, %v3666
    %v3931 = vpack.c.b16 %v3671, %v3667
    %v3932 = vpack.c.b16 %v3672, %v3668
    %v3933 = vpack.c.b16 %v3677, %v3673
    %v3934 = vpack.c.b16 %v3678, %v3674
    %v3935 = vpack.c.b16 %v3679, %v3675
    %v3936 = vpack.c.b16 %v3680, %v3676
    %4193 = vmatpush.bf16.msra.mxu0 %v3709
    %4194 = vmatpush.bf16.msra.mxu0 %v3705
    %4195 = vmatpush.bf16.msra.mxu0 %v3701
    %4196 = vmatpush.bf16.msra.mxu0 %v3697
    %4197 = vmatpush.bf16.msra.mxu0 %v3693
    %4198 = vmatpush.bf16.msra.mxu0 %v3689
    %4199 = vmatpush.bf16.msra.mxu0 %v3685
    %4200 = vmatpush.bf16.msra.mxu0 %v3681
    %4201 = vmatmul.bf16.gmra.mxu0 %v2639
    %v4202 = vpop.f32.mrf.mxu0
    %v4203 = vadd.f32 %v2905, %v4202
    %v4204 = vpop.f32.mrf.mxu0
    %v4205 = vadd.f32 %v2905, %v4204
    %4206 = vdwg.mxu0
    %4207 = vmatpush.bf16.msra.mxu0 %v3741
    %4208 = vmatpush.bf16.msra.mxu0 %v3737
    %4209 = vmatpush.bf16.msra.mxu0 %v3733
    %4210 = vmatpush.bf16.msra.mxu0 %v3729
    %4211 = vmatpush.bf16.msra.mxu0 %v3725
    %4212 = vmatpush.bf16.msra.mxu0 %v3721
    %4213 = vmatpush.bf16.msra.mxu0 %v3717
    %4214 = vmatpush.bf16.msra.mxu0 %v3713
    %4215 = vmatmul.bf16.gmra.mxu0 %v2640
    %v4216 = vpop.f32.mrf.mxu0
    %v4217 = vadd.f32 %v4203, %v4216
    %v4218 = vpop.f32.mrf.mxu0
    %v4219 = vadd.f32 %v4205, %v4218
    %4220 = vdwg.mxu0
    %4221 = vmatpush.bf16.msra.mxu0 %v3773
    %4222 = vmatpush.bf16.msra.mxu0 %v3769
    %4223 = vmatpush.bf16.msra.mxu0 %v3765
    %4224 = vmatpush.bf16.msra.mxu0 %v3761
    %4225 = vmatpush.bf16.msra.mxu0 %v3757
    %4226 = vmatpush.bf16.msra.mxu0 %v3753
    %4227 = vmatpush.bf16.msra.mxu0 %v3749
    %4228 = vmatpush.bf16.msra.mxu0 %v3745
    %4229 = vmatmul.bf16.gmra.mxu0 %v2641
    %v4230 = vpop.f32.mrf.mxu0
    %v4231 = vadd.f32 %v4217, %v4230
    %v4232 = vpop.f32.mrf.mxu0
    %v4233 = vadd.f32 %v4219, %v4232
    %4234 = vdwg.mxu0
    %4235 = vmatpush.bf16.msra.mxu0 %v3805
    %4236 = vmatpush.bf16.msra.mxu0 %v3801
    %4237 = vmatpush.bf16.msra.mxu0 %v3797
    %4238 = vmatpush.bf16.msra.mxu0 %v3793
    %4239 = vmatpush.bf16.msra.mxu0 %v3789
    %4240 = vmatpush.bf16.msra.mxu0 %v3785
    %4241 = vmatpush.bf16.msra.mxu0 %v3781
    %4242 = vmatpush.bf16.msra.mxu0 %v3777
    %4243 = vmatmul.bf16.gmra.mxu0 %v2642
    %v4244 = vpop.f32.mrf.mxu0
    %v4245 = vadd.f32 %v4231, %v4244
    %v4246 = vpop.f32.mrf.mxu0
    %v4247 = vadd.f32 %v4233, %v4246
    %4248 = vdwg.mxu0
    %4249 = vmatpush.bf16.msra.mxu0 %v3837
    %4250 = vmatpush.bf16.msra.mxu0 %v3833
    %4251 = vmatpush.bf16.msra.mxu0 %v3829
    %4252 = vmatpush.bf16.msra.mxu0 %v3825
    %4253 = vmatpush.bf16.msra.mxu0 %v3821
    %4254 = vmatpush.bf16.msra.mxu0 %v3817
    %4255 = vmatpush.bf16.msra.mxu0 %v3813
    %4256 = vmatpush.bf16.msra.mxu0 %v3809
    %4257 = vmatmul.bf16.gmra.mxu0 %v2643
    %v4258 = vpop.f32.mrf.mxu0
    %v4259 = vadd.f32 %v4245, %v4258
    %v4260 = vpop.f32.mrf.mxu0
    %v4261 = vadd.f32 %v4247, %v4260
    %4262 = vdwg.mxu0
    %4263 = vmatpush.bf16.msra.mxu0 %v3869
    %4264 = vmatpush.bf16.msra.mxu0 %v3865
    %4265 = vmatpush.bf16.msra.mxu0 %v3861
    %4266 = vmatpush.bf16.msra.mxu0 %v3857
    %4267 = vmatpush.bf16.msra.mxu0 %v3853
    %4268 = vmatpush.bf16.msra.mxu0 %v3849
    %4269 = vmatpush.bf16.msra.mxu0 %v3845
    %4270 = vmatpush.bf16.msra.mxu0 %v3841
    %4271 = vmatmul.bf16.gmra.mxu0 %v2644
    %v4272 = vpop.f32.mrf.mxu0
    %v4273 = vadd.f32 %v4259, %v4272
    %v4274 = vpop.f32.mrf.mxu0
    %v4275 = vadd.f32 %v4261, %v4274
    %4276 = vdwg.mxu0
    %4277 = vmatpush.bf16.msra.mxu0 %v3901
    %4278 = vmatpush.bf16.msra.mxu0 %v3897
    %4279 = vmatpush.bf16.msra.mxu0 %v3893
    %4280 = vmatpush.bf16.msra.mxu0 %v3889
    %4281 = vmatpush.bf16.msra.mxu0 %v3885
    %4282 = vmatpush.bf16.msra.mxu0 %v3881
    %4283 = vmatpush.bf16.msra.mxu0 %v3877
    %4284 = vmatpush.bf16.msra.mxu0 %v3873
    %4285 = vmatmul.bf16.gmra.mxu0 %v2645
    %v4286 = vpop.f32.mrf.mxu0
    %v4287 = vadd.f32 %v4273, %v4286
    %v4288 = vpop.f32.mrf.mxu0
    %v4289 = vadd.f32 %v4275, %v4288
    %4290 = vdwg.mxu0
    %4291 = vmatpush.bf16.msra.mxu0 %v3933
    %4292 = vmatpush.bf16.msra.mxu0 %v3929
    %4293 = vmatpush.bf16.msra.mxu0 %v3925
    %4294 = vmatpush.bf16.msra.mxu0 %v3921
    %4295 = vmatpush.bf16.msra.mxu0 %v3917
    %4296 = vmatpush.bf16.msra.mxu0 %v3913
    %4297 = vmatpush.bf16.msra.mxu0 %v3909
    %4298 = vmatpush.bf16.msra.mxu0 %v3905
    %4299 = vmatmul.bf16.gmra.mxu0 %v2646
    %v4300 = vpop.f32.mrf.mxu0
    %v4301 = vadd.f32 %v4287, %v4300
    %v4302 = vpop.f32.mrf.mxu0
    %v4303 = vadd.f32 %v4289, %v4302
    %4304 = vdwg.mxu0
    %4305 = vmatpush.bf16.msra.mxu0 %v3710
    %4306 = vmatpush.bf16.msra.mxu0 %v3706
    %4307 = vmatpush.bf16.msra.mxu0 %v3702
    %4308 = vmatpush.bf16.msra.mxu0 %v3698
    %4309 = vmatpush.bf16.msra.mxu0 %v3694
    %4310 = vmatpush.bf16.msra.mxu0 %v3690
    %4311 = vmatpush.bf16.msra.mxu0 %v3686
    %4312 = vmatpush.bf16.msra.mxu0 %v3682
    %4313 = vmatmul.bf16.gmra.mxu0 %v2639
    %v4314 = vpop.f32.mrf.mxu0
    %v4315 = vadd.f32 %v2906, %v4314
    %v4316 = vpop.f32.mrf.mxu0
    %v4317 = vadd.f32 %v2906, %v4316
    %4318 = vdwg.mxu0
    %4319 = vmatpush.bf16.msra.mxu0 %v3742
    %4320 = vmatpush.bf16.msra.mxu0 %v3738
    %4321 = vmatpush.bf16.msra.mxu0 %v3734
    %4322 = vmatpush.bf16.msra.mxu0 %v3730
    %4323 = vmatpush.bf16.msra.mxu0 %v3726
    %4324 = vmatpush.bf16.msra.mxu0 %v3722
    %4325 = vmatpush.bf16.msra.mxu0 %v3718
    %4326 = vmatpush.bf16.msra.mxu0 %v3714
    %4327 = vmatmul.bf16.gmra.mxu0 %v2640
    %v4328 = vpop.f32.mrf.mxu0
    %v4329 = vadd.f32 %v4315, %v4328
    %v4330 = vpop.f32.mrf.mxu0
    %v4331 = vadd.f32 %v4317, %v4330
    %4332 = vdwg.mxu0
    %4333 = vmatpush.bf16.msra.mxu0 %v3774
    %4334 = vmatpush.bf16.msra.mxu0 %v3770
    %4335 = vmatpush.bf16.msra.mxu0 %v3766
    %4336 = vmatpush.bf16.msra.mxu0 %v3762
    %4337 = vmatpush.bf16.msra.mxu0 %v3758
    %4338 = vmatpush.bf16.msra.mxu0 %v3754
    %4339 = vmatpush.bf16.msra.mxu0 %v3750
    %4340 = vmatpush.bf16.msra.mxu0 %v3746
    %4341 = vmatmul.bf16.gmra.mxu0 %v2641
    %v4342 = vpop.f32.mrf.mxu0
    %v4343 = vadd.f32 %v4329, %v4342
    %v4344 = vpop.f32.mrf.mxu0
    %v4345 = vadd.f32 %v4331, %v4344
    %4346 = vdwg.mxu0
    %4347 = vmatpush.bf16.msra.mxu0 %v3806
    %4348 = vmatpush.bf16.msra.mxu0 %v3802
    %4349 = vmatpush.bf16.msra.mxu0 %v3798
    %4350 = vmatpush.bf16.msra.mxu0 %v3794
    %4351 = vmatpush.bf16.msra.mxu0 %v3790
    %4352 = vmatpush.bf16.msra.mxu0 %v3786
    %4353 = vmatpush.bf16.msra.mxu0 %v3782
    %4354 = vmatpush.bf16.msra.mxu0 %v3778
    %4355 = vmatmul.bf16.gmra.mxu0 %v2642
    %v4356 = vpop.f32.mrf.mxu0
    %v4357 = vadd.f32 %v4343, %v4356
    %v4358 = vpop.f32.mrf.mxu0
    %v4359 = vadd.f32 %v4345, %v4358
    %4360 = vdwg.mxu0
    %4361 = vmatpush.bf16.msra.mxu0 %v3838
    %4362 = vmatpush.bf16.msra.mxu0 %v3834
    %4363 = vmatpush.bf16.msra.mxu0 %v3830
    %4364 = vmatpush.bf16.msra.mxu0 %v3826
    %4365 = vmatpush.bf16.msra.mxu0 %v3822
    %4366 = vmatpush.bf16.msra.mxu0 %v3818
    %4367 = vmatpush.bf16.msra.mxu0 %v3814
    %4368 = vmatpush.bf16.msra.mxu0 %v3810
    %4369 = vmatmul.bf16.gmra.mxu0 %v2643
    %v4370 = vpop.f32.mrf.mxu0
    %v4371 = vadd.f32 %v4357, %v4370
    %v4372 = vpop.f32.mrf.mxu0
    %v4373 = vadd.f32 %v4359, %v4372
    %4374 = vdwg.mxu0
    %4375 = vmatpush.bf16.msra.mxu0 %v3870
    %4376 = vmatpush.bf16.msra.mxu0 %v3866
    %4377 = vmatpush.bf16.msra.mxu0 %v3862
    %4378 = vmatpush.bf16.msra.mxu0 %v3858
    %4379 = vmatpush.bf16.msra.mxu0 %v3854
    %4380 = vmatpush.bf16.msra.mxu0 %v3850
    %4381 = vmatpush.bf16.msra.mxu0 %v3846
    %4382 = vmatpush.bf16.msra.mxu0 %v3842
    %4383 = vmatmul.bf16.gmra.mxu0 %v2644
    %v4384 = vpop.f32.mrf.mxu0
    %v4385 = vadd.f32 %v4371, %v4384
    %v4386 = vpop.f32.mrf.mxu0
    %v4387 = vadd.f32 %v4373, %v4386
    %4388 = vdwg.mxu0
    %4389 = vmatpush.bf16.msra.mxu0 %v3902
    %4390 = vmatpush.bf16.msra.mxu0 %v3898
    %4391 = vmatpush.bf16.msra.mxu0 %v3894
    %4392 = vmatpush.bf16.msra.mxu0 %v3890
    %4393 = vmatpush.bf16.msra.mxu0 %v3886
    %4394 = vmatpush.bf16.msra.mxu0 %v3882
    %4395 = vmatpush.bf16.msra.mxu0 %v3878
    %4396 = vmatpush.bf16.msra.mxu0 %v3874
    %4397 = vmatmul.bf16.gmra.mxu0 %v2645
    %v4398 = vpop.f32.mrf.mxu0
    %v4399 = vadd.f32 %v4385, %v4398
    %v4400 = vpop.f32.mrf.mxu0
    %v4401 = vadd.f32 %v4387, %v4400
    %4402 = vdwg.mxu0
    %4403 = vmatpush.bf16.msra.mxu0 %v3934
    %4404 = vmatpush.bf16.msra.mxu0 %v3930
    %4405 = vmatpush.bf16.msra.mxu0 %v3926
    %4406 = vmatpush.bf16.msra.mxu0 %v3922
    %4407 = vmatpush.bf16.msra.mxu0 %v3918
    %4408 = vmatpush.bf16.msra.mxu0 %v3914
    %4409 = vmatpush.bf16.msra.mxu0 %v3910
    %4410 = vmatpush.bf16.msra.mxu0 %v3906
    %4411 = vmatmul.bf16.gmra.mxu0 %v2646
    %v4412 = vpop.f32.mrf.mxu0
    %v4413 = vadd.f32 %v4399, %v4412
    %v4414 = vpop.f32.mrf.mxu0
    %v4415 = vadd.f32 %v4401, %v4414
    %4416 = vdwg.mxu0
    %4417 = vmatpush.bf16.msra.mxu0 %v3711
    %4418 = vmatpush.bf16.msra.mxu0 %v3707
    %4419 = vmatpush.bf16.msra.mxu0 %v3703
    %4420 = vmatpush.bf16.msra.mxu0 %v3699
    %4421 = vmatpush.bf16.msra.mxu0 %v3695
    %4422 = vmatpush.bf16.msra.mxu0 %v3691
    %4423 = vmatpush.bf16.msra.mxu0 %v3687
    %4424 = vmatpush.bf16.msra.mxu0 %v3683
    %4425 = vmatmul.bf16.gmra.mxu0 %v2639
    %v4426 = vpop.f32.mrf.mxu0
    %v4427 = vadd.f32 %v2907, %v4426
    %v4428 = vpop.f32.mrf.mxu0
    %v4429 = vadd.f32 %v2907, %v4428
    %4430 = vdwg.mxu0
    %4431 = vmatpush.bf16.msra.mxu0 %v3743
    %4432 = vmatpush.bf16.msra.mxu0 %v3739
    %4433 = vmatpush.bf16.msra.mxu0 %v3735
    %4434 = vmatpush.bf16.msra.mxu0 %v3731
    %4435 = vmatpush.bf16.msra.mxu0 %v3727
    %4436 = vmatpush.bf16.msra.mxu0 %v3723
    %4437 = vmatpush.bf16.msra.mxu0 %v3719
    %4438 = vmatpush.bf16.msra.mxu0 %v3715
    %4439 = vmatmul.bf16.gmra.mxu0 %v2640
    %v4440 = vpop.f32.mrf.mxu0
    %v4441 = vadd.f32 %v4427, %v4440
    %v4442 = vpop.f32.mrf.mxu0
    %v4443 = vadd.f32 %v4429, %v4442
    %4444 = vdwg.mxu0
    %4445 = vmatpush.bf16.msra.mxu0 %v3775
    %4446 = vmatpush.bf16.msra.mxu0 %v3771
    %4447 = vmatpush.bf16.msra.mxu0 %v3767
    %4448 = vmatpush.bf16.msra.mxu0 %v3763
    %4449 = vmatpush.bf16.msra.mxu0 %v3759
    %4450 = vmatpush.bf16.msra.mxu0 %v3755
    %4451 = vmatpush.bf16.msra.mxu0 %v3751
    %4452 = vmatpush.bf16.msra.mxu0 %v3747
    %4453 = vmatmul.bf16.gmra.mxu0 %v2641
    %v4454 = vpop.f32.mrf.mxu0
    %v4455 = vadd.f32 %v4441, %v4454
    %v4456 = vpop.f32.mrf.mxu0
    %v4457 = vadd.f32 %v4443, %v4456
    %4458 = vdwg.mxu0
    %4459 = vmatpush.bf16.msra.mxu0 %v3807
    %4460 = vmatpush.bf16.msra.mxu0 %v3803
    %4461 = vmatpush.bf16.msra.mxu0 %v3799
    %4462 = vmatpush.bf16.msra.mxu0 %v3795
    %4463 = vmatpush.bf16.msra.mxu0 %v3791
    %4464 = vmatpush.bf16.msra.mxu0 %v3787
    %4465 = vmatpush.bf16.msra.mxu0 %v3783
    %4466 = vmatpush.bf16.msra.mxu0 %v3779
    %4467 = vmatmul.bf16.gmra.mxu0 %v2642
    %v4468 = vpop.f32.mrf.mxu0
    %v4469 = vadd.f32 %v4455, %v4468
    %v4470 = vpop.f32.mrf.mxu0
    %v4471 = vadd.f32 %v4457, %v4470
    %4472 = vdwg.mxu0
    %4473 = vmatpush.bf16.msra.mxu0 %v3839
    %4474 = vmatpush.bf16.msra.mxu0 %v3835
    %4475 = vmatpush.bf16.msra.mxu0 %v3831
    %4476 = vmatpush.bf16.msra.mxu0 %v3827
    %4477 = vmatpush.bf16.msra.mxu0 %v3823
    %4478 = vmatpush.bf16.msra.mxu0 %v3819
    %4479 = vmatpush.bf16.msra.mxu0 %v3815
    %4480 = vmatpush.bf16.msra.mxu0 %v3811
    %4481 = vmatmul.bf16.gmra.mxu0 %v2643
    %v4482 = vpop.f32.mrf.mxu0
    %v4483 = vadd.f32 %v4469, %v4482
    %v4484 = vpop.f32.mrf.mxu0
    %v4485 = vadd.f32 %v4471, %v4484
    %4486 = vdwg.mxu0
    %4487 = vmatpush.bf16.msra.mxu0 %v3871
    %4488 = vmatpush.bf16.msra.mxu0 %v3867
    %4489 = vmatpush.bf16.msra.mxu0 %v3863
    %4490 = vmatpush.bf16.msra.mxu0 %v3859
    %4491 = vmatpush.bf16.msra.mxu0 %v3855
    %4492 = vmatpush.bf16.msra.mxu0 %v3851
    %4493 = vmatpush.bf16.msra.mxu0 %v3847
    %4494 = vmatpush.bf16.msra.mxu0 %v3843
    %4495 = vmatmul.bf16.gmra.mxu0 %v2644
    %v4496 = vpop.f32.mrf.mxu0
    %v4497 = vadd.f32 %v4483, %v4496
    %v4498 = vpop.f32.mrf.mxu0
    %v4499 = vadd.f32 %v4485, %v4498
    %4500 = vdwg.mxu0
    %4501 = vmatpush.bf16.msra.mxu0 %v3903
    %4502 = vmatpush.bf16.msra.mxu0 %v3899
    %4503 = vmatpush.bf16.msra.mxu0 %v3895
    %4504 = vmatpush.bf16.msra.mxu0 %v3891
    %4505 = vmatpush.bf16.msra.mxu0 %v3887
    %4506 = vmatpush.bf16.msra.mxu0 %v3883
    %4507 = vmatpush.bf16.msra.mxu0 %v3879
    %4508 = vmatpush.bf16.msra.mxu0 %v3875
    %4509 = vmatmul.bf16.gmra.mxu0 %v2645
    %v4510 = vpop.f32.mrf.mxu0
    %v4511 = vadd.f32 %v4497, %v4510
    %v4512 = vpop.f32.mrf.mxu0
    %v4513 = vadd.f32 %v4499, %v4512
    %4514 = vdwg.mxu0
    %4515 = vmatpush.bf16.msra.mxu0 %v3935
    %4516 = vmatpush.bf16.msra.mxu0 %v3931
    %4517 = vmatpush.bf16.msra.mxu0 %v3927
    %4518 = vmatpush.bf16.msra.mxu0 %v3923
    %4519 = vmatpush.bf16.msra.mxu0 %v3919
    %4520 = vmatpush.bf16.msra.mxu0 %v3915
    %4521 = vmatpush.bf16.msra.mxu0 %v3911
    %4522 = vmatpush.bf16.msra.mxu0 %v3907
    %4523 = vmatmul.bf16.gmra.mxu0 %v2646
    %v4524 = vpop.f32.mrf.mxu0
    %v4525 = vadd.f32 %v4511, %v4524
    %v4526 = vpop.f32.mrf.mxu0
    %v4527 = vadd.f32 %v4513, %v4526
    %4528 = vdwg.mxu0
    %4529 = vmatpush.bf16.msra.mxu0 %v3712
    %4530 = vmatpush.bf16.msra.mxu0 %v3708
    %4531 = vmatpush.bf16.msra.mxu0 %v3704
    %4532 = vmatpush.bf16.msra.mxu0 %v3700
    %4533 = vmatpush.bf16.msra.mxu0 %v3696
    %4534 = vmatpush.bf16.msra.mxu0 %v3692
    %4535 = vmatpush.bf16.msra.mxu0 %v3688
    %4536 = vmatpush.bf16.msra.mxu0 %v3684
    %4537 = vmatmul.bf16.gmra.mxu0 %v2639
    %v4538 = vpop.f32.mrf.mxu0
    %v4539 = vadd.f32 %v2908, %v4538
    %v4540 = vpop.f32.mrf.mxu0
    %v4541 = vadd.f32 %v2908, %v4540
    %4542 = vdwg.mxu0
    %4543 = vmatpush.bf16.msra.mxu0 %v3744
    %4544 = vmatpush.bf16.msra.mxu0 %v3740
    %4545 = vmatpush.bf16.msra.mxu0 %v3736
    %4546 = vmatpush.bf16.msra.mxu0 %v3732
    %4547 = vmatpush.bf16.msra.mxu0 %v3728
    %4548 = vmatpush.bf16.msra.mxu0 %v3724
    %4549 = vmatpush.bf16.msra.mxu0 %v3720
    %4550 = vmatpush.bf16.msra.mxu0 %v3716
    %4551 = vmatmul.bf16.gmra.mxu0 %v2640
    %v4552 = vpop.f32.mrf.mxu0
    %v4553 = vadd.f32 %v4539, %v4552
    %v4554 = vpop.f32.mrf.mxu0
    %v4555 = vadd.f32 %v4541, %v4554
    %4556 = vdwg.mxu0
    %4557 = vmatpush.bf16.msra.mxu0 %v3776
    %4558 = vmatpush.bf16.msra.mxu0 %v3772
    %4559 = vmatpush.bf16.msra.mxu0 %v3768
    %4560 = vmatpush.bf16.msra.mxu0 %v3764
    %4561 = vmatpush.bf16.msra.mxu0 %v3760
    %4562 = vmatpush.bf16.msra.mxu0 %v3756
    %4563 = vmatpush.bf16.msra.mxu0 %v3752
    %4564 = vmatpush.bf16.msra.mxu0 %v3748
    %4565 = vmatmul.bf16.gmra.mxu0 %v2641
    %v4566 = vpop.f32.mrf.mxu0
    %v4567 = vadd.f32 %v4553, %v4566
    %v4568 = vpop.f32.mrf.mxu0
    %v4569 = vadd.f32 %v4555, %v4568
    %4570 = vdwg.mxu0
    %4571 = vmatpush.bf16.msra.mxu0 %v3808
    %4572 = vmatpush.bf16.msra.mxu0 %v3804
    %4573 = vmatpush.bf16.msra.mxu0 %v3800
    %4574 = vmatpush.bf16.msra.mxu0 %v3796
    %4575 = vmatpush.bf16.msra.mxu0 %v3792
    %4576 = vmatpush.bf16.msra.mxu0 %v3788
    %4577 = vmatpush.bf16.msra.mxu0 %v3784
    %4578 = vmatpush.bf16.msra.mxu0 %v3780
    %4579 = vmatmul.bf16.gmra.mxu0 %v2642
    %v4580 = vpop.f32.mrf.mxu0
    %v4581 = vadd.f32 %v4567, %v4580
    %v4582 = vpop.f32.mrf.mxu0
    %v4583 = vadd.f32 %v4569, %v4582
    %4584 = vdwg.mxu0
    %4585 = vmatpush.bf16.msra.mxu0 %v3840
    %4586 = vmatpush.bf16.msra.mxu0 %v3836
    %4587 = vmatpush.bf16.msra.mxu0 %v3832
    %4588 = vmatpush.bf16.msra.mxu0 %v3828
    %4589 = vmatpush.bf16.msra.mxu0 %v3824
    %4590 = vmatpush.bf16.msra.mxu0 %v3820
    %4591 = vmatpush.bf16.msra.mxu0 %v3816
    %4592 = vmatpush.bf16.msra.mxu0 %v3812
    %4593 = vmatmul.bf16.gmra.mxu0 %v2643
    %v4594 = vpop.f32.mrf.mxu0
    %v4595 = vadd.f32 %v4581, %v4594
    %v4596 = vpop.f32.mrf.mxu0
    %v4597 = vadd.f32 %v4583, %v4596
    %4598 = vdwg.mxu0
    %4599 = vmatpush.bf16.msra.mxu0 %v3872
    %4600 = vmatpush.bf16.msra.mxu0 %v3868
    %4601 = vmatpush.bf16.msra.mxu0 %v3864
    %4602 = vmatpush.bf16.msra.mxu0 %v3860
    %4603 = vmatpush.bf16.msra.mxu0 %v3856
    %4604 = vmatpush.bf16.msra.mxu0 %v3852
    %4605 = vmatpush.bf16.msra.mxu0 %v3848
    %4606 = vmatpush.bf16.msra.mxu0 %v3844
    %4607 = vmatmul.bf16.gmra.mxu0 %v2644
    %v4608 = vpop.f32.mrf.mxu0
    %v4609 = vadd.f32 %v4595, %v4608
    %v4610 = vpop.f32.mrf.mxu0
    %v4611 = vadd.f32 %v4597, %v4610
    %4612 = vdwg.mxu0
    %4613 = vmatpush.bf16.msra.mxu0 %v3904
    %4614 = vmatpush.bf16.msra.mxu0 %v3900
    %4615 = vmatpush.bf16.msra.mxu0 %v3896
    %4616 = vmatpush.bf16.msra.mxu0 %v3892
    %4617 = vmatpush.bf16.msra.mxu0 %v3888
    %4618 = vmatpush.bf16.msra.mxu0 %v3884
    %4619 = vmatpush.bf16.msra.mxu0 %v3880
    %4620 = vmatpush.bf16.msra.mxu0 %v3876
    %4621 = vmatmul.bf16.gmra.mxu0 %v2645
    %v4622 = vpop.f32.mrf.mxu0
    %v4623 = vadd.f32 %v4609, %v4622
    %v4624 = vpop.f32.mrf.mxu0
    %v4625 = vadd.f32 %v4611, %v4624
    %4626 = vdwg.mxu0
    %4627 = vmatpush.bf16.msra.mxu0 %v3936
    %4628 = vmatpush.bf16.msra.mxu0 %v3932
    %4629 = vmatpush.bf16.msra.mxu0 %v3928
    %4630 = vmatpush.bf16.msra.mxu0 %v3924
    %4631 = vmatpush.bf16.msra.mxu0 %v3920
    %4632 = vmatpush.bf16.msra.mxu0 %v3916
    %4633 = vmatpush.bf16.msra.mxu0 %v3912
    %4634 = vmatpush.bf16.msra.mxu0 %v3908
    %4635 = vmatmul.bf16.gmra.mxu0 %v2646
    %v4636 = vpop.f32.mrf.mxu0
    %v4637 = vadd.f32 %v4623, %v4636
    %v4638 = vpop.f32.mrf.mxu0
    %v4639 = vadd.f32 %v4625, %v4638
    %4640 = vdwg.mxu0
    %v4641 = vtanh.pop %v4301
    %v4642 = vtanh.pop %v4413
    %v4643 = vtanh.pop %v4525
    %v4644 = vtanh.pop %v4637
    %v4645 = vtanh.pop %v4303
    %v4646 = vtanh.pop %v4415
    %v4647 = vtanh.pop %v4527
    %v4648 = vtanh.pop %v4639
    %v4649 = vpack.c.bf16 %v4645, %v4641
    %v4650 = vpack.c.bf16 %v4646, %v4642
    %v4651 = vpack.c.bf16 %v4647, %v4643
    %v4652 = vpack.c.bf16 %v4648, %v4644
    %v4653 = vld [vmem:[#allocation11] sm:$0xff]
    %v4654 = vld [vmem:[#allocation11 + $0x8] sm:$0xff]
    %v4655 = vld [vmem:[#allocation11 + $0x10] sm:$0xff]
    %v4656 = vld [vmem:[#allocation11 + $0x18] sm:$0xff]
    %v4657 = vld [vmem:[#allocation11 + $0x20] sm:$0xff]
    %v4658 = vld [vmem:[#allocation11 + $0x28] sm:$0xff]
    %v4659 = vld [vmem:[#allocation11 + $0x30] sm:$0xff]
    %v4660 = vld [vmem:[#allocation11 + $0x38] sm:$0xff]
    %v4661 = vld [vmem:[#allocation11 + $0x40] sm:$0xff]
    %v4662 = vld [vmem:[#allocation11 + $0x48] sm:$0xff]
    %v4663 = vld [vmem:[#allocation11 + $0x50] sm:$0xff]
    %v4664 = vld [vmem:[#allocation11 + $0x58] sm:$0xff]
    %v4665 = vld [vmem:[#allocation11 + $0x60] sm:$0xff]
    %v4666 = vld [vmem:[#allocation11 + $0x68] sm:$0xff]
    %v4667 = vld [vmem:[#allocation11 + $0x70] sm:$0xff]
    %v4668 = vld [vmem:[#allocation11 + $0x78] sm:$0xff]
    %v4669 = vld [vmem:[#allocation11 + $0x80] sm:$0xff]
    %v4670 = vld [vmem:[#allocation11 + $0x88] sm:$0xff]
    %v4671 = vld [vmem:[#allocation11 + $0x90] sm:$0xff]
    %v4672 = vld [vmem:[#allocation11 + $0x98] sm:$0xff]
    %v4673 = vld [vmem:[#allocation11 + $0xa0] sm:$0xff]
    %v4674 = vld [vmem:[#allocation11 + $0xa8] sm:$0xff]
    %v4675 = vld [vmem:[#allocation11 + $0xb0] sm:$0xff]
    %v4676 = vld [vmem:[#allocation11 + $0xb8] sm:$0xff]
    %v4677 = vld [vmem:[#allocation11 + $0xc0] sm:$0xff]
    %v4678 = vld [vmem:[#allocation11 + $0xc8] sm:$0xff]
    %v4679 = vld [vmem:[#allocation11 + $0xd0] sm:$0xff]
    %v4680 = vld [vmem:[#allocation11 + $0xd8] sm:$0xff]
    %v4681 = vld [vmem:[#allocation11 + $0xe0] sm:$0xff]
    %v4682 = vld [vmem:[#allocation11 + $0xe8] sm:$0xff]
    %v4683 = vld [vmem:[#allocation11 + $0xf0] sm:$0xff]
    %v4684 = vld [vmem:[#allocation11 + $0xf8] sm:$0xff]
    %v4685 = vld [vmem:[#allocation11 + $0x100] sm:$0xff]
    %v4686 = vld [vmem:[#allocation11 + $0x108] sm:$0xff]
    %v4687 = vld [vmem:[#allocation11 + $0x110] sm:$0xff]
    %v4688 = vld [vmem:[#allocation11 + $0x118] sm:$0xff]
    %v4689 = vld [vmem:[#allocation11 + $0x120] sm:$0xff]
    %v4690 = vld [vmem:[#allocation11 + $0x128] sm:$0xff]
    %v4691 = vld [vmem:[#allocation11 + $0x130] sm:$0xff]
    %v4692 = vld [vmem:[#allocation11 + $0x138] sm:$0xff]
    %v4693 = vld [vmem:[#allocation11 + $0x140] sm:$0xff]
    %v4694 = vld [vmem:[#allocation11 + $0x148] sm:$0xff]
    %v4695 = vld [vmem:[#allocation11 + $0x150] sm:$0xff]
    %v4696 = vld [vmem:[#allocation11 + $0x158] sm:$0xff]
    %v4697 = vld [vmem:[#allocation11 + $0x160] sm:$0xff]
    %v4698 = vld [vmem:[#allocation11 + $0x168] sm:$0xff]
    %v4699 = vld [vmem:[#allocation11 + $0x170] sm:$0xff]
    %v4700 = vld [vmem:[#allocation11 + $0x178] sm:$0xff]
    %v4701 = vld [vmem:[#allocation11 + $0x180] sm:$0xff]
    %v4702 = vld [vmem:[#allocation11 + $0x188] sm:$0xff]
    %v4703 = vld [vmem:[#allocation11 + $0x190] sm:$0xff]
    %v4704 = vld [vmem:[#allocation11 + $0x198] sm:$0xff]
    %v4705 = vld [vmem:[#allocation11 + $0x1a0] sm:$0xff]
    %v4706 = vld [vmem:[#allocation11 + $0x1a8] sm:$0xff]
    %v4707 = vld [vmem:[#allocation11 + $0x1b0] sm:$0xff]
    %v4708 = vld [vmem:[#allocation11 + $0x1b8] sm:$0xff]
    %v4709 = vld [vmem:[#allocation11 + $0x1c0] sm:$0xff]
    %v4710 = vld [vmem:[#allocation11 + $0x1c8] sm:$0xff]
    %v4711 = vld [vmem:[#allocation11 + $0x1d0] sm:$0xff]
    %v4712 = vld [vmem:[#allocation11 + $0x1d8] sm:$0xff]
    %v4713 = vld [vmem:[#allocation11 + $0x1e0] sm:$0xff]
    %v4714 = vld [vmem:[#allocation11 + $0x1e8] sm:$0xff]
    %v4715 = vld [vmem:[#allocation11 + $0x1f0] sm:$0xff]
    %v4716 = vld [vmem:[#allocation11 + $0x1f8] sm:$0xff]
    %v4717 = vld [vmem:[#allocation13] sm:$0x3]
    %v4719 = vperm.slane %v4717, 0
    %v4720 = vperm.slane %v4717, 1
    %v4787 = vunpack.c.l.b16 %v4653
    %v4788 = vunpack.c.h.b16 %v4653
    %v4789 = vunpack.c.l.b16 %v4654
    %v4790 = vunpack.c.h.b16 %v4654
    %v4791 = vunpack.c.l.b16 %v4655
    %v4792 = vunpack.c.h.b16 %v4655
    %v4793 = vunpack.c.l.b16 %v4656
    %v4794 = vunpack.c.h.b16 %v4656
    %v4795 = vunpack.c.l.b16 %v4657
    %v4796 = vunpack.c.h.b16 %v4657
    %v4797 = vunpack.c.l.b16 %v4658
    %v4798 = vunpack.c.h.b16 %v4658
    %v4799 = vunpack.c.l.b16 %v4659
    %v4800 = vunpack.c.h.b16 %v4659
    %v4801 = vunpack.c.l.b16 %v4660
    %v4802 = vunpack.c.h.b16 %v4660
    %v4803 = vunpack.c.l.b16 %v4661
    %v4804 = vunpack.c.h.b16 %v4661
    %v4805 = vunpack.c.l.b16 %v4662
    %v4806 = vunpack.c.h.b16 %v4662
    %v4807 = vunpack.c.l.b16 %v4663
    %v4808 = vunpack.c.h.b16 %v4663
    %v4809 = vunpack.c.l.b16 %v4664
    %v4810 = vunpack.c.h.b16 %v4664
    %v4811 = vunpack.c.l.b16 %v4665
    %v4812 = vunpack.c.h.b16 %v4665
    %v4813 = vunpack.c.l.b16 %v4666
    %v4814 = vunpack.c.h.b16 %v4666
    %v4815 = vunpack.c.l.b16 %v4667
    %v4816 = vunpack.c.h.b16 %v4667
    %v4817 = vunpack.c.l.b16 %v4668
    %v4818 = vunpack.c.h.b16 %v4668
    %v4819 = vunpack.c.l.b16 %v4669
    %v4820 = vunpack.c.h.b16 %v4669
    %v4821 = vunpack.c.l.b16 %v4670
    %v4822 = vunpack.c.h.b16 %v4670
    %v4823 = vunpack.c.l.b16 %v4671
    %v4824 = vunpack.c.h.b16 %v4671
    %v4825 = vunpack.c.l.b16 %v4672
    %v4826 = vunpack.c.h.b16 %v4672
    %v4827 = vunpack.c.l.b16 %v4673
    %v4828 = vunpack.c.h.b16 %v4673
    %v4829 = vunpack.c.l.b16 %v4674
    %v4830 = vunpack.c.h.b16 %v4674
    %v4831 = vunpack.c.l.b16 %v4675
    %v4832 = vunpack.c.h.b16 %v4675
    %v4833 = vunpack.c.l.b16 %v4676
    %v4834 = vunpack.c.h.b16 %v4676
    %v4835 = vunpack.c.l.b16 %v4677
    %v4836 = vunpack.c.h.b16 %v4677
    %v4837 = vunpack.c.l.b16 %v4678
    %v4838 = vunpack.c.h.b16 %v4678
    %v4839 = vunpack.c.l.b16 %v4679
    %v4840 = vunpack.c.h.b16 %v4679
    %v4841 = vunpack.c.l.b16 %v4680
    %v4842 = vunpack.c.h.b16 %v4680
    %v4843 = vunpack.c.l.b16 %v4681
    %v4844 = vunpack.c.h.b16 %v4681
    %v4845 = vunpack.c.l.b16 %v4682
    %v4846 = vunpack.c.h.b16 %v4682
    %v4847 = vunpack.c.l.b16 %v4683
    %v4848 = vunpack.c.h.b16 %v4683
    %v4849 = vunpack.c.l.b16 %v4684
    %v4850 = vunpack.c.h.b16 %v4684
    %v4851 = vunpack.c.l.b16 %v4685
    %v4852 = vunpack.c.h.b16 %v4685
    %v4853 = vunpack.c.l.b16 %v4686
    %v4854 = vunpack.c.h.b16 %v4686
    %v4855 = vunpack.c.l.b16 %v4687
    %v4856 = vunpack.c.h.b16 %v4687
    %v4857 = vunpack.c.l.b16 %v4688
    %v4858 = vunpack.c.h.b16 %v4688
    %v4859 = vunpack.c.l.b16 %v4689
    %v4860 = vunpack.c.h.b16 %v4689
    %v4861 = vunpack.c.l.b16 %v4690
    %v4862 = vunpack.c.h.b16 %v4690
    %v4863 = vunpack.c.l.b16 %v4691
    %v4864 = vunpack.c.h.b16 %v4691
    %v4865 = vunpack.c.l.b16 %v4692
    %v4866 = vunpack.c.h.b16 %v4692
    %v4867 = vunpack.c.l.b16 %v4693
    %v4868 = vunpack.c.h.b16 %v4693
    %v4869 = vunpack.c.l.b16 %v4694
    %v4870 = vunpack.c.h.b16 %v4694
    %v4871 = vunpack.c.l.b16 %v4695
    %v4872 = vunpack.c.h.b16 %v4695
    %v4873 = vunpack.c.l.b16 %v4696
    %v4874 = vunpack.c.h.b16 %v4696
    %v4875 = vunpack.c.l.b16 %v4697
    %v4876 = vunpack.c.h.b16 %v4697
    %v4877 = vunpack.c.l.b16 %v4698
    %v4878 = vunpack.c.h.b16 %v4698
    %v4879 = vunpack.c.l.b16 %v4699
    %v4880 = vunpack.c.h.b16 %v4699
    %v4881 = vunpack.c.l.b16 %v4700
    %v4882 = vunpack.c.h.b16 %v4700
    %v4883 = vunpack.c.l.b16 %v4701
    %v4884 = vunpack.c.h.b16 %v4701
    %v4885 = vunpack.c.l.b16 %v4702
    %v4886 = vunpack.c.h.b16 %v4702
    %v4887 = vunpack.c.l.b16 %v4703
    %v4888 = vunpack.c.h.b16 %v4703
    %v4889 = vunpack.c.l.b16 %v4704
    %v4890 = vunpack.c.h.b16 %v4704
    %v4891 = vunpack.c.l.b16 %v4705
    %v4892 = vunpack.c.h.b16 %v4705
    %v4893 = vunpack.c.l.b16 %v4706
    %v4894 = vunpack.c.h.b16 %v4706
    %v4895 = vunpack.c.l.b16 %v4707
    %v4896 = vunpack.c.h.b16 %v4707
    %v4897 = vunpack.c.l.b16 %v4708
    %v4898 = vunpack.c.h.b16 %v4708
    %v4899 = vunpack.c.l.b16 %v4709
    %v4900 = vunpack.c.h.b16 %v4709
    %v4901 = vunpack.c.l.b16 %v4710
    %v4902 = vunpack.c.h.b16 %v4710
    %v4903 = vunpack.c.l.b16 %v4711
    %v4904 = vunpack.c.h.b16 %v4711
    %v4905 = vunpack.c.l.b16 %v4712
    %v4906 = vunpack.c.h.b16 %v4712
    %v4907 = vunpack.c.l.b16 %v4713
    %v4908 = vunpack.c.h.b16 %v4713
    %v4909 = vunpack.c.l.b16 %v4714
    %v4910 = vunpack.c.h.b16 %v4714
    %v4911 = vunpack.c.l.b16 %v4715
    %v4912 = vunpack.c.h.b16 %v4715
    %v4913 = vunpack.c.l.b16 %v4716
    %v4914 = vunpack.c.h.b16 %v4716
    %v4915 = vpack.c.b16 %v4789, %v4787
    %v4916 = vpack.c.b16 %v4790, %v4788
    %v4917 = vpack.c.b16 %v4793, %v4791
    %v4918 = vpack.c.b16 %v4794, %v4792
    %v4919 = vpack.c.b16 %v4797, %v4795
    %v4920 = vpack.c.b16 %v4798, %v4796
    %v4921 = vpack.c.b16 %v4801, %v4799
    %v4922 = vpack.c.b16 %v4802, %v4800
    %v4923 = vpack.c.b16 %v4805, %v4803
    %v4924 = vpack.c.b16 %v4806, %v4804
    %v4925 = vpack.c.b16 %v4809, %v4807
    %v4926 = vpack.c.b16 %v4810, %v4808
    %v4927 = vpack.c.b16 %v4813, %v4811
    %v4928 = vpack.c.b16 %v4814, %v4812
    %v4929 = vpack.c.b16 %v4817, %v4815
    %v4930 = vpack.c.b16 %v4818, %v4816
    %v4931 = vpack.c.b16 %v4821, %v4819
    %v4932 = vpack.c.b16 %v4822, %v4820
    %v4933 = vpack.c.b16 %v4825, %v4823
    %v4934 = vpack.c.b16 %v4826, %v4824
    %v4935 = vpack.c.b16 %v4829, %v4827
    %v4936 = vpack.c.b16 %v4830, %v4828
    %v4937 = vpack.c.b16 %v4833, %v4831
    %v4938 = vpack.c.b16 %v4834, %v4832
    %v4939 = vpack.c.b16 %v4837, %v4835
    %v4940 = vpack.c.b16 %v4838, %v4836
    %v4941 = vpack.c.b16 %v4841, %v4839
    %v4942 = vpack.c.b16 %v4842, %v4840
    %v4943 = vpack.c.b16 %v4845, %v4843
    %v4944 = vpack.c.b16 %v4846, %v4844
    %v4945 = vpack.c.b16 %v4849, %v4847
    %v4946 = vpack.c.b16 %v4850, %v4848
    %v4947 = vpack.c.b16 %v4853, %v4851
    %v4948 = vpack.c.b16 %v4854, %v4852
    %v4949 = vpack.c.b16 %v4857, %v4855
    %v4950 = vpack.c.b16 %v4858, %v4856
    %v4951 = vpack.c.b16 %v4861, %v4859
    %v4952 = vpack.c.b16 %v4862, %v4860
    %v4953 = vpack.c.b16 %v4865, %v4863
    %v4954 = vpack.c.b16 %v4866, %v4864
    %v4955 = vpack.c.b16 %v4869, %v4867
    %v4956 = vpack.c.b16 %v4870, %v4868
    %v4957 = vpack.c.b16 %v4873, %v4871
    %v4958 = vpack.c.b16 %v4874, %v4872
    %v4959 = vpack.c.b16 %v4877, %v4875
    %v4960 = vpack.c.b16 %v4878, %v4876
    %v4961 = vpack.c.b16 %v4881, %v4879
    %v4962 = vpack.c.b16 %v4882, %v4880
    %v4963 = vpack.c.b16 %v4885, %v4883
    %v4964 = vpack.c.b16 %v4886, %v4884
    %v4965 = vpack.c.b16 %v4889, %v4887
    %v4966 = vpack.c.b16 %v4890, %v4888
    %v4967 = vpack.c.b16 %v4893, %v4891
    %v4968 = vpack.c.b16 %v4894, %v4892
    %v4969 = vpack.c.b16 %v4897, %v4895
    %v4970 = vpack.c.b16 %v4898, %v4896
    %v4971 = vpack.c.b16 %v4901, %v4899
    %v4972 = vpack.c.b16 %v4902, %v4900
    %v4973 = vpack.c.b16 %v4905, %v4903
    %v4974 = vpack.c.b16 %v4906, %v4904
    %v4975 = vpack.c.b16 %v4909, %v4907
    %v4976 = vpack.c.b16 %v4910, %v4908
    %v4977 = vpack.c.b16 %v4913, %v4911
    %v4978 = vpack.c.b16 %v4914, %v4912
    %5043 = vmatpush.bf16.msra.mxu0 %v4929
    %5044 = vmatpush.bf16.msra.mxu0 %v4927
    %5045 = vmatpush.bf16.msra.mxu0 %v4925
    %5046 = vmatpush.bf16.msra.mxu0 %v4923
    %5047 = vmatpush.bf16.msra.mxu0 %v4921
    %5048 = vmatpush.bf16.msra.mxu0 %v4919
    %5049 = vmatpush.bf16.msra.mxu0 %v4917
    %5050 = vmatpush.bf16.msra.mxu0 %v4915
    %5051 = vmatmul.bf16.gmra.mxu0 %v4649
    %v5052 = vpop.f32.mrf.mxu0
    %v5053 = vadd.f32 %v4719, %v5052
    %v5054 = vpop.f32.mrf.mxu0
    %v5055 = vadd.f32 %v4719, %v5054
    %5056 = vdwg.mxu0
    %5057 = vmatpush.bf16.msra.mxu0 %v4945
    %5058 = vmatpush.bf16.msra.mxu0 %v4943
    %5059 = vmatpush.bf16.msra.mxu0 %v4941
    %5060 = vmatpush.bf16.msra.mxu0 %v4939
    %5061 = vmatpush.bf16.msra.mxu0 %v4937
    %5062 = vmatpush.bf16.msra.mxu0 %v4935
    %5063 = vmatpush.bf16.msra.mxu0 %v4933
    %5064 = vmatpush.bf16.msra.mxu0 %v4931
    %5065 = vmatmul.bf16.gmra.mxu0 %v4650
    %v5066 = vpop.f32.mrf.mxu0
    %v5067 = vadd.f32 %v5053, %v5066
    %v5068 = vpop.f32.mrf.mxu0
    %v5069 = vadd.f32 %v5055, %v5068
    %5070 = vdwg.mxu0
    %5071 = vmatpush.bf16.msra.mxu0 %v4961
    %5072 = vmatpush.bf16.msra.mxu0 %v4959
    %5073 = vmatpush.bf16.msra.mxu0 %v4957
    %5074 = vmatpush.bf16.msra.mxu0 %v4955
    %5075 = vmatpush.bf16.msra.mxu0 %v4953
    %5076 = vmatpush.bf16.msra.mxu0 %v4951
    %5077 = vmatpush.bf16.msra.mxu0 %v4949
    %5078 = vmatpush.bf16.msra.mxu0 %v4947
    %5079 = vmatmul.bf16.gmra.mxu0 %v4651
    %v5080 = vpop.f32.mrf.mxu0
    %v5081 = vadd.f32 %v5067, %v5080
    %v5082 = vpop.f32.mrf.mxu0
    %v5083 = vadd.f32 %v5069, %v5082
    %5084 = vdwg.mxu0
    %5085 = vmatpush.bf16.msra.mxu0 %v4977
    %5086 = vmatpush.bf16.msra.mxu0 %v4975
    %5087 = vmatpush.bf16.msra.mxu0 %v4973
    %5088 = vmatpush.bf16.msra.mxu0 %v4971
    %5089 = vmatpush.bf16.msra.mxu0 %v4969
    %5090 = vmatpush.bf16.msra.mxu0 %v4967
    %5091 = vmatpush.bf16.msra.mxu0 %v4965
    %5092 = vmatpush.bf16.msra.mxu0 %v4963
    %5093 = vmatmul.bf16.gmra.mxu0 %v4652
    %v5094 = vpop.f32.mrf.mxu0
    %v5095 = vadd.f32 %v5081, %v5094
    %v5096 = vpop.f32.mrf.mxu0
    %v5097 = vadd.f32 %v5083, %v5096
    %5098 = vdwg.mxu0
    %5099 = vmatpush.bf16.msra.mxu0 %v4930
    %5100 = vmatpush.bf16.msra.mxu0 %v4928
    %5101 = vmatpush.bf16.msra.mxu0 %v4926
    %5102 = vmatpush.bf16.msra.mxu0 %v4924
    %5103 = vmatpush.bf16.msra.mxu0 %v4922
    %5104 = vmatpush.bf16.msra.mxu0 %v4920
    %5105 = vmatpush.bf16.msra.mxu0 %v4918
    %5106 = vmatpush.bf16.msra.mxu0 %v4916
    %5107 = vmatmul.bf16.gmra.mxu0 %v4649
    %v5108 = vpop.f32.mrf.mxu0
    %v5109 = vadd.f32 %v4720, %v5108
    %v5110 = vpop.f32.mrf.mxu0
    %v5111 = vadd.f32 %v4720, %v5110
    %5112 = vdwg.mxu0
    %5113 = vmatpush.bf16.msra.mxu0 %v4946
    %5114 = vmatpush.bf16.msra.mxu0 %v4944
    %5115 = vmatpush.bf16.msra.mxu0 %v4942
    %5116 = vmatpush.bf16.msra.mxu0 %v4940
    %5117 = vmatpush.bf16.msra.mxu0 %v4938
    %5118 = vmatpush.bf16.msra.mxu0 %v4936
    %5119 = vmatpush.bf16.msra.mxu0 %v4934
    %5120 = vmatpush.bf16.msra.mxu0 %v4932
    %5121 = vmatmul.bf16.gmra.mxu0 %v4650
    %v5122 = vpop.f32.mrf.mxu0
    %v5123 = vadd.f32 %v5109, %v5122
    %v5124 = vpop.f32.mrf.mxu0
    %v5125 = vadd.f32 %v5111, %v5124
    %5126 = vdwg.mxu0
    %5127 = vmatpush.bf16.msra.mxu0 %v4962
    %5128 = vmatpush.bf16.msra.mxu0 %v4960
    %5129 = vmatpush.bf16.msra.mxu0 %v4958
    %5130 = vmatpush.bf16.msra.mxu0 %v4956
    %5131 = vmatpush.bf16.msra.mxu0 %v4954
    %5132 = vmatpush.bf16.msra.mxu0 %v4952
    %5133 = vmatpush.bf16.msra.mxu0 %v4950
    %5134 = vmatpush.bf16.msra.mxu0 %v4948
    %5135 = vmatmul.bf16.gmra.mxu0 %v4651
    %v5136 = vpop.f32.mrf.mxu0
    %v5137 = vadd.f32 %v5123, %v5136
    %v5138 = vpop.f32.mrf.mxu0
    %v5139 = vadd.f32 %v5125, %v5138
    %5140 = vdwg.mxu0
    %5141 = vmatpush.bf16.msra.mxu0 %v4978
    %5142 = vmatpush.bf16.msra.mxu0 %v4976
    %5143 = vmatpush.bf16.msra.mxu0 %v4974
    %5144 = vmatpush.bf16.msra.mxu0 %v4972
    %5145 = vmatpush.bf16.msra.mxu0 %v4970
    %5146 = vmatpush.bf16.msra.mxu0 %v4968
    %5147 = vmatpush.bf16.msra.mxu0 %v4966
    %5148 = vmatpush.bf16.msra.mxu0 %v4964
    %5149 = vmatmul.bf16.gmra.mxu0 %v4652
    %v5150 = vpop.f32.mrf.mxu0
    %v5151 = vadd.f32 %v5137, %v5150
    %v5152 = vpop.f32.mrf.mxu0
    %v5153 = vadd.f32 %v5139, %v5152
    %5154 = vdwg.mxu0
    %v5155 = vtanh.pop %v5095
    %v5156 = vtanh.pop %v5151
    %v5157 = vtanh.pop %v5097
    %v5158 = vtanh.pop %v5153
    %v5159 = vpack.c.bf16 %v5157, %v5155
    %v5160 = vpack.c.bf16 %v5158, %v5156
    %v5161 = vld [vmem:[#allocation14] sm:$0xf]
    %v5162 = vld [vmem:[#allocation14 + $0x4] sm:$0xf]
    %v5163 = vld [vmem:[#allocation14 + $0x8] sm:$0xf]
    %v5164 = vld [vmem:[#allocation14 + $0xc] sm:$0xf]
    %v5165 = vld [vmem:[#allocation14 + $0x10] sm:$0xf]
    %v5166 = vld [vmem:[#allocation14 + $0x14] sm:$0xf]
    %v5167 = vld [vmem:[#allocation14 + $0x18] sm:$0xf]
    %v5168 = vld [vmem:[#allocation14 + $0x1c] sm:$0xf]
    %v5169 = vld [vmem:[#allocation14 + $0x20] sm:$0xf]
    %v5170 = vld [vmem:[#allocation14 + $0x24] sm:$0xf]
    %v5171 = vld [vmem:[#allocation14 + $0x28] sm:$0xf]
    %v5172 = vld [vmem:[#allocation14 + $0x2c] sm:$0xf]
    %v5173 = vld [vmem:[#allocation14 + $0x30] sm:$0xf]
    %v5174 = vld [vmem:[#allocation14 + $0x34] sm:$0xf]
    %v5175 = vld [vmem:[#allocation14 + $0x38] sm:$0xf]
    %v5176 = vld [vmem:[#allocation14 + $0x3c] sm:$0xf]
    %v5177 = vld [vmem:[#allocation14 + $0x40] sm:$0xf]
    %v5178 = vld [vmem:[#allocation14 + $0x44] sm:$0xf]
    %v5179 = vld [vmem:[#allocation14 + $0x48] sm:$0xf]
    %v5180 = vld [vmem:[#allocation14 + $0x4c] sm:$0xf]
    %v5181 = vld [vmem:[#allocation14 + $0x50] sm:$0xf]
    %v5182 = vld [vmem:[#allocation14 + $0x54] sm:$0xf]
    %v5183 = vld [vmem:[#allocation14 + $0x58] sm:$0xf]
    %v5184 = vld [vmem:[#allocation14 + $0x5c] sm:$0xf]
    %v5185 = vld [vmem:[#allocation14 + $0x60] sm:$0xf]
    %v5186 = vld [vmem:[#allocation14 + $0x64] sm:$0xf]
    %v5187 = vld [vmem:[#allocation14 + $0x68] sm:$0xf]
    %v5188 = vld [vmem:[#allocation14 + $0x6c] sm:$0xf]
    %v5189 = vld [vmem:[#allocation14 + $0x70] sm:$0xf]
    %v5190 = vld [vmem:[#allocation14 + $0x74] sm:$0xf]
    %v5191 = vld [vmem:[#allocation14 + $0x78] sm:$0xf]
    %v5192 = vld [vmem:[#allocation14 + $0x7c] sm:$0xf]
    %v5193 = vld [vmem:[#allocation16] sm:$0x1]
    %v5195 = vperm.slane %v5193, 0
    %v5229 = vunpack.c.l.b16 %v5161
    %v5230 = vunpack.c.l.b16 %v5162
    %v5231 = vunpack.c.l.b16 %v5163
    %v5232 = vunpack.c.l.b16 %v5164
    %v5233 = vunpack.c.l.b16 %v5165
    %v5234 = vunpack.c.l.b16 %v5166
    %v5235 = vunpack.c.l.b16 %v5167
    %v5236 = vunpack.c.l.b16 %v5168
    %v5237 = vunpack.c.l.b16 %v5169
    %v5238 = vunpack.c.l.b16 %v5170
    %v5239 = vunpack.c.l.b16 %v5171
    %v5240 = vunpack.c.l.b16 %v5172
    %v5241 = vunpack.c.l.b16 %v5173
    %v5242 = vunpack.c.l.b16 %v5174
    %v5243 = vunpack.c.l.b16 %v5175
    %v5244 = vunpack.c.l.b16 %v5176
    %v5245 = vunpack.c.l.b16 %v5177
    %v5246 = vunpack.c.l.b16 %v5178
    %v5247 = vunpack.c.l.b16 %v5179
    %v5248 = vunpack.c.l.b16 %v5180
    %v5249 = vunpack.c.l.b16 %v5181
    %v5250 = vunpack.c.l.b16 %v5182
    %v5251 = vunpack.c.l.b16 %v5183
    %v5252 = vunpack.c.l.b16 %v5184
    %v5253 = vunpack.c.l.b16 %v5185
    %v5254 = vunpack.c.l.b16 %v5186
    %v5255 = vunpack.c.l.b16 %v5187
    %v5256 = vunpack.c.l.b16 %v5188
    %v5257 = vunpack.c.l.b16 %v5189
    %v5258 = vunpack.c.l.b16 %v5190
    %v5259 = vunpack.c.l.b16 %v5191
    %v5260 = vunpack.c.l.b16 %v5192
    %v5261 = vpack.c.b16 %v5230, %v5229
    %v5262 = vpack.c.b16 %v5232, %v5231
    %v5263 = vpack.c.b16 %v5234, %v5233
    %v5264 = vpack.c.b16 %v5236, %v5235
    %v5265 = vpack.c.b16 %v5238, %v5237
    %v5266 = vpack.c.b16 %v5240, %v5239
    %v5267 = vpack.c.b16 %v5242, %v5241
    %v5268 = vpack.c.b16 %v5244, %v5243
    %v5269 = vpack.c.b16 %v5246, %v5245
    %v5270 = vpack.c.b16 %v5248, %v5247
    %v5271 = vpack.c.b16 %v5250, %v5249
    %v5272 = vpack.c.b16 %v5252, %v5251
    %v5273 = vpack.c.b16 %v5254, %v5253
    %v5274 = vpack.c.b16 %v5256, %v5255
    %v5275 = vpack.c.b16 %v5258, %v5257
    %v5276 = vpack.c.b16 %v5260, %v5259
    %5293 = vmatpush.bf16.msra.mxu0 %v5268
    %5294 = vmatpush.bf16.msra.mxu0 %v5267
    %5295 = vmatpush.bf16.msra.mxu0 %v5266
    %5296 = vmatpush.bf16.msra.mxu0 %v5265
    %5297 = vmatpush.bf16.msra.mxu0 %v5264
    %5298 = vmatpush.bf16.msra.mxu0 %v5263
    %5299 = vmatpush.bf16.msra.mxu0 %v5262
    %5300 = vmatpush.bf16.msra.mxu0 %v5261
    %5301 = vmatmul.bf16.gmra.mxu0 %v5159
    %v5302 = vpop.f32.mrf.mxu0
    %v5303 = vadd.f32 %v5195, %v5302
    %v5304 = vpop.f32.mrf.mxu0
    %v5305 = vadd.f32 %v5195, %v5304
    %5306 = vdwg.mxu0
    %5307 = vmatpush.bf16.msra.mxu0 %v5276
    %5308 = vmatpush.bf16.msra.mxu0 %v5275
    %5309 = vmatpush.bf16.msra.mxu0 %v5274
    %5310 = vmatpush.bf16.msra.mxu0 %v5273
    %5311 = vmatpush.bf16.msra.mxu0 %v5272
    %5312 = vmatpush.bf16.msra.mxu0 %v5271
    %5313 = vmatpush.bf16.msra.mxu0 %v5270
    %5314 = vmatpush.bf16.msra.mxu0 %v5269
    %5315 = vmatmul.bf16.gmra.mxu0 %v5160
    %v5316 = vpop.f32.mrf.mxu0
    %v5317 = vadd.f32 %v5303, %v5316
    %v5318 = vpop.f32.mrf.mxu0
    %v5319 = vadd.f32 %v5305, %v5318
    %5320 = vdwg.mxu0
    %v5321 = vtanh.pop %v5317
    %v5322 = vtanh.pop %v5319
    %v5323 = vpack.c.bf16 %v5322, %v5321
    %v5324 = vld [vmem:[#allocation17] sm:$0xf]
    %v5325 = vld [vmem:[#allocation17 + $0x4] sm:$0xf]
    %v5326 = vld [vmem:[#allocation17 + $0x8] sm:$0xf]
    %v5327 = vld [vmem:[#allocation17 + $0xc] sm:$0xf]
    %v5328 = vld [vmem:[#allocation17 + $0x10] sm:$0xf]
    %v5329 = vld [vmem:[#allocation17 + $0x14] sm:$0xf]
    %v5330 = vld [vmem:[#allocation17 + $0x18] sm:$0xf]
    %v5331 = vld [vmem:[#allocation17 + $0x1c] sm:$0xf]
    %v5332 = vld [vmem:[#allocation17 + $0x20] sm:$0xf]
    %v5333 = vld [vmem:[#allocation17 + $0x24] sm:$0xf]
    %v5334 = vld [vmem:[#allocation17 + $0x28] sm:$0xf]
    %v5335 = vld [vmem:[#allocation17 + $0x2c] sm:$0xf]
    %v5336 = vld [vmem:[#allocation17 + $0x30] sm:$0xf]
    %v5337 = vld [vmem:[#allocation17 + $0x34] sm:$0xf]
    %v5338 = vld [vmem:[#allocation17 + $0x38] sm:$0xf]
    %v5339 = vld [vmem:[#allocation17 + $0x3c] sm:$0xf]
    %v5340 = vld [vmem:[#allocation19] sm:$0x1]
    %v5342 = vperm.slane %v5340, 0
    %v5360 = vunpack.c.l.b16 %v5324
    %v5361 = vunpack.c.l.b16 %v5325
    %v5362 = vunpack.c.l.b16 %v5326
    %v5363 = vunpack.c.l.b16 %v5327
    %v5364 = vunpack.c.l.b16 %v5328
    %v5365 = vunpack.c.l.b16 %v5329
    %v5366 = vunpack.c.l.b16 %v5330
    %v5367 = vunpack.c.l.b16 %v5331
    %v5368 = vunpack.c.l.b16 %v5332
    %v5369 = vunpack.c.l.b16 %v5333
    %v5370 = vunpack.c.l.b16 %v5334
    %v5371 = vunpack.c.l.b16 %v5335
    %v5372 = vunpack.c.l.b16 %v5336
    %v5373 = vunpack.c.l.b16 %v5337
    %v5374 = vunpack.c.l.b16 %v5338
    %v5375 = vunpack.c.l.b16 %v5339
    %v5376 = vpack.c.b16 %v5361, %v5360
    %v5377 = vpack.c.b16 %v5363, %v5362
    %v5378 = vpack.c.b16 %v5365, %v5364
    %v5379 = vpack.c.b16 %v5367, %v5366
    %v5380 = vpack.c.b16 %v5369, %v5368
    %v5381 = vpack.c.b16 %v5371, %v5370
    %v5382 = vpack.c.b16 %v5373, %v5372
    %v5383 = vpack.c.b16 %v5375, %v5374
    %5392 = vmatpush.bf16.msra.mxu0 %v5383
    %5393 = vmatpush.bf16.msra.mxu0 %v5382
    %5394 = vmatpush.bf16.msra.mxu0 %v5381
    %5395 = vmatpush.bf16.msra.mxu0 %v5380
    %5396 = vmatpush.bf16.msra.mxu0 %v5379
    %5397 = vmatpush.bf16.msra.mxu0 %v5378
    %5398 = vmatpush.bf16.msra.mxu0 %v5377
    %5399 = vmatpush.bf16.msra.mxu0 %v5376
    %5400 = vmatmul.bf16.gmra.mxu0 %v5323
    %v5401 = vpop.f32.mrf.mxu0
    %v5402 = vadd.f32 %v5342, %v5401
    %v5403 = vpop.f32.mrf.mxu0
    %v5404 = vadd.f32 %v5342, %v5403
    %5405 = vdwg.mxu0
    %5406 = vst [vmem:[#allocation20] sm:$0xff] %v5402
    %5407 = vst [vmem:[#allocation20 + $0x8] sm:$0xff] %v5404
    // Predicated region
    $region90: #{purchase_classifier_forward.1} parent=1 // pred_check
      _
    $region91: #{purchase_classifier_forward.1} parent=1 // pred_check_branch
      %5409 = sbr.rel (0) target = $region93
    $region92: #{purchase_classifier_forward.1} parent=1 // pred_region
      %5411 = vsyncadd [#allocation4], 0
      %s5412 = sshll.u32 [#allocation20], 4
      %s5413 = int_to_ptr.vmem [resolvable:$true] %s5412
      %s5414 = sshll.u32 %s11, 4
      %s5415 = int_to_ptr.hbm [resolvable:$true] %s5414
      %5420 = dma.vmem_to_hbm [thread:$0]  %s5413, 256, %s5415, [#allocation4], 128, 128, 8
    $region93: #{purchase_classifier_forward.1} parent=1 // pred_fallthru
      _
    // Predicated region
    $region94: #{purchase_classifier_forward.1} parent=1 // pred_check
      _
    $region95: #{purchase_classifier_forward.1} parent=1 // pred_check_branch
      %5422 = sbr.rel (0) target = $region97
    $region96: #{purchase_classifier_forward.1} parent=1 // pred_region
      %5424 = dma.done [#allocation4], 256
    $region97: #{purchase_classifier_forward.1} parent=1 // pred_fallthru
      _
    %5425 = vsyncpa [#allocation3], 1
    %5426 = vsyncpa [#allocation6], 1
    %5427 = vsyncpa [#allocation9], 1
    %5428 = vsyncpa [#allocation12], 1
    %5429 = vsyncpa [#allocation15], 1
    %5430 = vsyncpa [#allocation18], 1
    %5431 = vsyncpa [#allocation4], 1

</llo_original>
